<compile_context>
chip_gen: v5e
topology: v5e:2x2
jax: 0.10.0
libtpu: 0.0.40
codegen_flags: <defaults>
</compile_context>

<pallas_src>
import functools

import jax
import jax.numpy as jnp
import numpy as np
from jax.experimental import pallas as pl
from jax.experimental.pallas import tpu as pltpu


def _siren_kernel(x_ref, w0_ref, b0_ref, wh_ref, bh_ref, wl_ref, bl_ref, o_ref,
                  *, first_omega_0, hidden_omega_0, n_hidden, outermost_linear):
    # x_ref: (c_in, TN) tile of pixel coordinates (input rescale already folded
    # into w0/b0 by the wrapper).
    x = x_ref[...].astype(jnp.float32)
    c_in = x.shape[0]

    # First SineLayer. K = c_in is tiny (2), so skip the MXU entirely and use
    # broadcast FMAs on the VPU:  h = sum_c w0[:, c] * x[c, :] + b0.
    h = w0_ref[:, 0:1] * x[0:1, :]                       # (hidden, TN)
    for c in range(1, c_in):
        h = h + w0_ref[:, c:c + 1] * x[c:c + 1, :]
    h = h + b0_ref[...]                                  # (hidden, 1) broadcast
    h = jnp.sin(h * first_omega_0)

    # Hidden SineLayers (statically unrolled; weights stacked on leading axis).
    for i in range(n_hidden):
        z = jnp.dot(wh_ref[i], h, preferred_element_type=jnp.float32) + bh_ref[i]
        h = jnp.sin(z * hidden_omega_0)

    # Last layer.
    y = jnp.dot(wl_ref[...], h, preferred_element_type=jnp.float32) + bl_ref[...]
    if outermost_linear:
        # /2 + 0.5 already folded into wl/bl by the wrapper.
        o_ref[...] = y
    else:
        o_ref[...] = jnp.sin(y * hidden_omega_0) * 0.5 + 0.5


def init_siren_params(key, input_size, output_size, depth, hidden_size,
                      first_omega_0, hidden_omega_0):
    """Init matching the PyTorch module's distributions.

    Weights are stored in nn.Linear layout (out_features, in_features);
    biases as (out_features, 1).
    weight ~ U(-bound, bound): bound = 1/in (first), sqrt(6/in)/omega_0 (rest);
    bias keeps the nn.Linear default U(-1/sqrt(in), 1/sqrt(in)).
    """
    params = {}
    keys = jax.random.split(key, 2 * depth)

    def unif(k, shape, bound):
        return jax.random.uniform(k, shape, jnp.float32, -bound, bound)

    # first layer: input_size -> hidden_size
    params["w0"] = unif(keys[0], (hidden_size, input_size), 1.0 / input_size)
    params["b0"] = unif(keys[1], (hidden_size, 1), 1.0 / np.sqrt(input_size))

    # hidden layers: hidden_size -> hidden_size, stacked
    n_hidden = depth - 2
    wb = float(np.sqrt(6.0 / hidden_size) / hidden_omega_0)
    wh, bh = [], []
    for i in range(n_hidden):
        wh.append(unif(keys[2 + 2 * i], (hidden_size, hidden_size), wb))
        bh.append(unif(keys[3 + 2 * i], (hidden_size, 1),
                       1.0 / np.sqrt(hidden_size)))
    params["wh"] = (jnp.stack(wh) if n_hidden > 0 else
                    jnp.zeros((0, hidden_size, hidden_size), jnp.float32))
    params["bh"] = (jnp.stack(bh) if n_hidden > 0 else
                    jnp.zeros((0, hidden_size, 1), jnp.float32))

    # last layer: hidden_size -> output_size
    params["wl"] = unif(keys[-2], (output_size, hidden_size), wb)
    params["bl"] = unif(keys[-1], (output_size, 1), 1.0 / np.sqrt(hidden_size))
    return params


def _choose_pixel_tile(n, row_tile):
    """Lane-axis tile: multiple of 128, large, and >= 2 grid steps if possible."""
    if n <= 128:
        return n
    tn = max(128, (min(row_tile, n) // 128) * 128)
    if pl.cdiv(n, tn) < 2:
        tn = max(128, ((n // 2) // 128) * 128)
    return tn


def siren_forward(grid, params, *, first_omega_0=50.0, hidden_omega_0=50.0,
                  outermost_linear=True, row_tile=2048):
    """grid: (H, W, input_size) float32 coordinates (typically in [0, 1])."""
    h, w, c_in = grid.shape
    n = h * w
    hidden_size = params["w0"].shape[0]
    output_size = params["wl"].shape[0]
    n_hidden = params["wh"].shape[0]

    # Feature-major: pixels on the lane axis.
    x = grid.reshape(n, c_in).T                            # (c_in, n)

    tn = _choose_pixel_tile(n, row_tile)
    grid_rows = pl.cdiv(n, tn)
    n_pad = grid_rows * tn
    if n_pad != n:
        # Zero-pad pixels; padded columns produce finite garbage and the extra
        # output columns are sliced off below.
        x = jnp.pad(x, ((0, 0), (0, n_pad - n)))

    # Fold (x - 0.5) * 2 into the first layer:  W(2x - 1) + b = (2W)x + (b - W·1)
    w0 = params["w0"] * 2.0
    b0 = params["b0"] - params["w0"].sum(axis=1, keepdims=True)
    # Fold /2 + 0.5 into the last (linear) layer.
    if outermost_linear:
        wl = params["wl"] * 0.5
        bl = params["bl"] * 0.5 + 0.5
    else:
        wl, bl = params["wl"], params["bl"]

    # Keep non-empty refs even when there are no hidden layers.
    wh = (params["wh"] if n_hidden > 0
          else jnp.zeros((1, hidden_size, hidden_size), jnp.float32))
    bh = (params["bh"] if n_hidden > 0
          else jnp.zeros((1, hidden_size, 1), jnp.float32))

    kernel = functools.partial(
        _siren_kernel,
        first_omega_0=float(first_omega_0),
        hidden_omega_0=float(hidden_omega_0),
        n_hidden=int(n_hidden),
        outermost_linear=bool(outermost_linear),
    )

    def _full(shape):
        # Grid-invariant (weights/biases): whole array, block index (0, ...).
        # TODO(synk): could add pipeline_mode=pl.Buffered(1) to skip pointless
        # double-buffering of these tiny constant blocks.
        return pl.BlockSpec(shape, lambda i, _z=(0,) * len(shape): _z)

    out = pl.pallas_call(
        kernel,
        out_shape=jax.ShapeDtypeStruct((output_size, n_pad), jnp.float32),
        grid_spec=pltpu.PrefetchScalarGridSpec(
            num_scalar_prefetch=0,
            grid=(grid_rows,),
            in_specs=[
                pl.BlockSpec((c_in, tn), lambda i: (0, i)),   # x tile (lane-dense)
                _full(w0.shape),                              # w0 (hidden, c_in)
                _full(b0.shape),                              # b0 (hidden, 1)
                _full(wh.shape),                              # wh stack
                _full(bh.shape),                              # bh stack
                _full(wl.shape),                              # wl (out, hidden)
                _full(bl.shape),                              # bl (out, 1)
            ],
            out_specs=pl.BlockSpec((output_size, tn), lambda i: (0, i)),
        ),
        compiler_params=pltpu.CompilerParams(
            dimension_semantics=("parallel",)),
    )(x, w0, b0, wh, bh, wl, bl)

    return out[:, :n].T.reshape(h, w, output_size)


def siren_reference(grid, params, *, first_omega_0=50.0, hidden_omega_0=50.0,
                    outermost_linear=True):
    """Pure-JAX reference matching the PyTorch module semantics."""
    h, w, c_in = grid.shape
    x = grid.reshape(h * w, c_in)
    x = (x - 0.5) * 2.0
    x = jnp.sin(first_omega_0 * (x @ params["w0"].T + params["b0"][:, 0]))
    for i in range(params["wh"].shape[0]):
        x = jnp.sin(hidden_omega_0 * (x @ params["wh"][i].T + params["bh"][i][:, 0]))
    x = x @ params["wl"].T + params["bl"][:, 0]
    if not outermost_linear:
        x = jnp.sin(hidden_omega_0 * x)
    x = x / 2.0 + 0.5
    return x.reshape(h, w, -1)


if __name__ == "__main__":
    # Small config consistent with the module: input_size=2 (x,y coords),
    # output_size=3 (RGB), depth=8, hidden_size=32, image 16x16.
    INPUT_SIZE, OUTPUT_SIZE, DEPTH, HIDDEN = 2, 3, 8, 32
    FIRST_OMEGA, HIDDEN_OMEGA = 50.0, 50.0
    H, W = 16, 16

    key = jax.random.PRNGKey(0)
    kp, kg = jax.random.split(key)
    params = init_siren_params(kp, INPUT_SIZE, OUTPUT_SIZE, DEPTH, HIDDEN,
                               FIRST_OMEGA, HIDDEN_OMEGA)

    # coordinate grid in [0, 1], shape (H, W, 2), lightly perturbed
    ys = jnp.linspace(0.0, 1.0, H)
    xs = jnp.linspace(0.0, 1.0, W)
    coord = jnp.stack(jnp.meshgrid(ys, xs, indexing="ij"), axis=-1).astype(jnp.float32)
    coord = jnp.clip(coord + 0.01 * jax.random.normal(kg, coord.shape), 0.0, 1.0)

    out = siren_forward(coord, params,
                        first_omega_0=FIRST_OMEGA, hidden_omega_0=HIDDEN_OMEGA,
                        outermost_linear=True)
    out = jax.block_until_ready(out)

    ref = siren_reference(coord, params,
                          first_omega_0=FIRST_OMEGA, hidden_omega_0=HIDDEN_OMEGA,
                          outermost_linear=True)
    assert out.shape == (H, W, OUTPUT_SIZE), out.shape
    # Slightly loosened vs 1e-5: the folded input/output rescale and MXU vs XLA
    # accumulation order differ at ~1e-7 and get amplified by sin(50 * .) depth.
    np.testing.assert_allclose(np.asarray(out), np.asarray(ref),
                               rtol=1e-4, atol=1e-4)

    print("KERNEL_OK")
</pallas_src>

<mosaic_0001>
module attributes {stable_mosaic.version = 11 : i64} {
  func.func @_siren_kernel(%arg0: i32, %arg1: memref<2x128xf32, #tpu.memory_space<vmem>>, %arg2: memref<32x2xf32, #tpu.memory_space<vmem>>, %arg3: memref<32x1xf32, #tpu.memory_space<vmem>>, %arg4: memref<6x32x32xf32, #tpu.memory_space<vmem>>, %arg5: memref<6x32x1xf32, #tpu.memory_space<vmem>>, %arg6: memref<3x32xf32, #tpu.memory_space<vmem>>, %arg7: memref<3x1xf32, #tpu.memory_space<vmem>>, %arg8: memref<3x128xf32, #tpu.memory_space<vmem>>) attributes {dimension_semantics = [#tpu.dimension_semantics<parallel>], iteration_bounds = array<i64: 2>, scalar_prefetch = 0 : i64, scratch_operands = 0 : i64, tpu.core_type = #tpu.core_type<tc>, window_params = [{transform_indices = @transform_0, window_bounds = array<i64: 2, 128>}, {pipeline_mode = #tpu.pipeline_mode<synchronous>, transform_indices = @transform_1, window_bounds = array<i64: 32, 2>}, {pipeline_mode = #tpu.pipeline_mode<synchronous>, transform_indices = @transform_2, window_bounds = array<i64: 32, 1>}, {pipeline_mode = #tpu.pipeline_mode<synchronous>, transform_indices = @transform_3, window_bounds = array<i64: 6, 32, 32>}, {pipeline_mode = #tpu.pipeline_mode<synchronous>, transform_indices = @transform_4, window_bounds = array<i64: 6, 32, 1>}, {pipeline_mode = #tpu.pipeline_mode<synchronous>, transform_indices = @transform_5, window_bounds = array<i64: 3, 32>}, {pipeline_mode = #tpu.pipeline_mode<synchronous>, transform_indices = @transform_6, window_bounds = array<i64: 3, 1>}, {transform_indices = @transform_7, window_bounds = array<i64: 3, 128>}]} {
    %c0 = arith.constant 0 : index
    %c0_0 = arith.constant 0 : index
    %0 = vector.load %arg1[%c0, %c0_0] : memref<2x128xf32, #tpu.memory_space<vmem>>, vector<2x128xf32>
    %c0_1 = arith.constant 0 : index
    %c0_2 = arith.constant 0 : index
    %1 = vector.load %arg2[%c0_1, %c0_2] : memref<32x2xf32, #tpu.memory_space<vmem>>, vector<32x1xf32>
    %2 = vector.extract_strided_slice %0 {offsets = [0, 0], sizes = [1, 128], strides = [1, 1]} : vector<2x128xf32> to vector<1x128xf32>
    %3 = vector.broadcast %1 : vector<32x1xf32> to vector<32x128xf32>
    %4 = vector.broadcast %2 : vector<1x128xf32> to vector<32x128xf32>
    %5 = arith.mulf %3, %4 : vector<32x128xf32>
    %c0_3 = arith.constant 0 : index
    %c1 = arith.constant 1 : index
    %6 = vector.load %arg2[%c0_3, %c1] : memref<32x2xf32, #tpu.memory_space<vmem>>, vector<32x1xf32>
    %7 = vector.extract_strided_slice %0 {offsets = [1, 0], sizes = [1, 128], strides = [1, 1]} : vector<2x128xf32> to vector<1x128xf32>
    %8 = vector.broadcast %6 : vector<32x1xf32> to vector<32x128xf32>
    %9 = vector.broadcast %7 : vector<1x128xf32> to vector<32x128xf32>
    %10 = arith.mulf %8, %9 : vector<32x128xf32>
    %11 = arith.addf %5, %10 : vector<32x128xf32>
    %c0_4 = arith.constant 0 : index
    %c0_5 = arith.constant 0 : index
    %12 = vector.load %arg3[%c0_4, %c0_5] : memref<32x1xf32, #tpu.memory_space<vmem>>, vector<32x1xf32>
    %13 = vector.broadcast %12 : vector<32x1xf32> to vector<32x128xf32>
    %14 = arith.addf %11, %13 : vector<32x128xf32>
    %cst = arith.constant 5.000000e+01 : f32
    %15 = vector.broadcast %cst : f32 to vector<32x128xf32>
    %16 = arith.mulf %14, %15 : vector<32x128xf32>
    %17 = math.sin %16 : vector<32x128xf32>
    %c0_6 = arith.constant 0 : index
    %c0_7 = arith.constant 0 : index
    %c0_8 = arith.constant 0 : index
    %18 = vector.load %arg4[%c0_6, %c0_7, %c0_8] : memref<6x32x32xf32, #tpu.memory_space<vmem>>, vector<1x32x32xf32>
    %19 = vector.shape_cast %18 : vector<1x32x32xf32> to vector<32x32xf32>
    %cst_9 = arith.constant dense<0.000000e+00> : vector<32x128xf32>
    %20 = tpu.matmul %19, %17, %cst_9 {dimension_numbers = #tpu.dot_dimension_numbers<[1], [0], [0], [1], [0, 0, 1, 1], [], []>} : vector<32x32xf32>, vector<32x128xf32>, vector<32x128xf32> -> vector<32x128xf32>
    %c0_10 = arith.constant 0 : index
    %c0_11 = arith.constant 0 : index
    %c0_12 = arith.constant 0 : index
    %21 = vector.load %arg5[%c0_10, %c0_11, %c0_12] : memref<6x32x1xf32, #tpu.memory_space<vmem>>, vector<1x32x1xf32>
    %22 = vector.shape_cast %21 : vector<1x32x1xf32> to vector<32x1xf32>
    %23 = vector.broadcast %22 : vector<32x1xf32> to vector<32x128xf32>
    %24 = arith.addf %20, %23 : vector<32x128xf32>
    %cst_13 = arith.constant 5.000000e+01 : f32
    %25 = vector.broadcast %cst_13 : f32 to vector<32x128xf32>
    %26 = arith.mulf %24, %25 : vector<32x128xf32>
    %27 = math.sin %26 : vector<32x128xf32>
    %c1_14 = arith.constant 1 : index
    %c0_15 = arith.constant 0 : index
    %c0_16 = arith.constant 0 : index
    %28 = vector.load %arg4[%c1_14, %c0_15, %c0_16] : memref<6x32x32xf32, #tpu.memory_space<vmem>>, vector<1x32x32xf32>
    %29 = vector.shape_cast %28 : vector<1x32x32xf32> to vector<32x32xf32>
    %cst_17 = arith.constant dense<0.000000e+00> : vector<32x128xf32>
    %30 = tpu.matmul %29, %27, %cst_17 {dimension_numbers = #tpu.dot_dimension_numbers<[1], [0], [0], [1], [0, 0, 1, 1], [], []>} : vector<32x32xf32>, vector<32x128xf32>, vector<32x128xf32> -> vector<32x128xf32>
    %c1_18 = arith.constant 1 : index
    %c0_19 = arith.constant 0 : index
    %c0_20 = arith.constant 0 : index
    %31 = vector.load %arg5[%c1_18, %c0_19, %c0_20] : memref<6x32x1xf32, #tpu.memory_space<vmem>>, vector<1x32x1xf32>
    %32 = vector.shape_cast %31 : vector<1x32x1xf32> to vector<32x1xf32>
    %33 = vector.broadcast %32 : vector<32x1xf32> to vector<32x128xf32>
    %34 = arith.addf %30, %33 : vector<32x128xf32>
    %cst_21 = arith.constant 5.000000e+01 : f32
    %35 = vector.broadcast %cst_21 : f32 to vector<32x128xf32>
    %36 = arith.mulf %34, %35 : vector<32x128xf32>
    %37 = math.sin %36 : vector<32x128xf32>
    %c2 = arith.constant 2 : index
    %c0_22 = arith.constant 0 : index
    %c0_23 = arith.constant 0 : index
    %38 = vector.load %arg4[%c2, %c0_22, %c0_23] : memref<6x32x32xf32, #tpu.memory_space<vmem>>, vector<1x32x32xf32>
    %39 = vector.shape_cast %38 : vector<1x32x32xf32> to vector<32x32xf32>
    %cst_24 = arith.constant dense<0.000000e+00> : vector<32x128xf32>
    %40 = tpu.matmul %39, %37, %cst_24 {dimension_numbers = #tpu.dot_dimension_numbers<[1], [0], [0], [1], [0, 0, 1, 1], [], []>} : vector<32x32xf32>, vector<32x128xf32>, vector<32x128xf32> -> vector<32x128xf32>
    %c2_25 = arith.constant 2 : index
    %c0_26 = arith.constant 0 : index
    %c0_27 = arith.constant 0 : index
    %41 = vector.load %arg5[%c2_25, %c0_26, %c0_27] : memref<6x32x1xf32, #tpu.memory_space<vmem>>, vector<1x32x1xf32>
    %42 = vector.shape_cast %41 : vector<1x32x1xf32> to vector<32x1xf32>
    %43 = vector.broadcast %42 : vector<32x1xf32> to vector<32x128xf32>
    %44 = arith.addf %40, %43 : vector<32x128xf32>
    %cst_28 = arith.constant 5.000000e+01 : f32
    %45 = vector.broadcast %cst_28 : f32 to vector<32x128xf32>
    %46 = arith.mulf %44, %45 : vector<32x128xf32>
    %47 = math.sin %46 : vector<32x128xf32>
    %c3 = arith.constant 3 : index
    %c0_29 = arith.constant 0 : index
    %c0_30 = arith.constant 0 : index
    %48 = vector.load %arg4[%c3, %c0_29, %c0_30] : memref<6x32x32xf32, #tpu.memory_space<vmem>>, vector<1x32x32xf32>
    %49 = vector.shape_cast %48 : vector<1x32x32xf32> to vector<32x32xf32>
    %cst_31 = arith.constant dense<0.000000e+00> : vector<32x128xf32>
    %50 = tpu.matmul %49, %47, %cst_31 {dimension_numbers = #tpu.dot_dimension_numbers<[1], [0], [0], [1], [0, 0, 1, 1], [], []>} : vector<32x32xf32>, vector<32x128xf32>, vector<32x128xf32> -> vector<32x128xf32>
    %c3_32 = arith.constant 3 : index
    %c0_33 = arith.constant 0 : index
    %c0_34 = arith.constant 0 : index
    %51 = vector.load %arg5[%c3_32, %c0_33, %c0_34] : memref<6x32x1xf32, #tpu.memory_space<vmem>>, vector<1x32x1xf32>
    %52 = vector.shape_cast %51 : vector<1x32x1xf32> to vector<32x1xf32>
    %53 = vector.broadcast %52 : vector<32x1xf32> to vector<32x128xf32>
    %54 = arith.addf %50, %53 : vector<32x128xf32>
    %cst_35 = arith.constant 5.000000e+01 : f32
    %55 = vector.broadcast %cst_35 : f32 to vector<32x128xf32>
    %56 = arith.mulf %54, %55 : vector<32x128xf32>
    %57 = math.sin %56 : vector<32x128xf32>
    %c4 = arith.constant 4 : index
    %c0_36 = arith.constant 0 : index
    %c0_37 = arith.constant 0 : index
    %58 = vector.load %arg4[%c4, %c0_36, %c0_37] : memref<6x32x32xf32, #tpu.memory_space<vmem>>, vector<1x32x32xf32>
    %59 = vector.shape_cast %58 : vector<1x32x32xf32> to vector<32x32xf32>
    %cst_38 = arith.constant dense<0.000000e+00> : vector<32x128xf32>
    %60 = tpu.matmul %59, %57, %cst_38 {dimension_numbers = #tpu.dot_dimension_numbers<[1], [0], [0], [1], [0, 0, 1, 1], [], []>} : vector<32x32xf32>, vector<32x128xf32>, vector<32x128xf32> -> vector<32x128xf32>
    %c4_39 = arith.constant 4 : index
    %c0_40 = arith.constant 0 : index
    %c0_41 = arith.constant 0 : index
    %61 = vector.load %arg5[%c4_39, %c0_40, %c0_41] : memref<6x32x1xf32, #tpu.memory_space<vmem>>, vector<1x32x1xf32>
    %62 = vector.shape_cast %61 : vector<1x32x1xf32> to vector<32x1xf32>
    %63 = vector.broadcast %62 : vector<32x1xf32> to vector<32x128xf32>
    %64 = arith.addf %60, %63 : vector<32x128xf32>
    %cst_42 = arith.constant 5.000000e+01 : f32
    %65 = vector.broadcast %cst_42 : f32 to vector<32x128xf32>
    %66 = arith.mulf %64, %65 : vector<32x128xf32>
    %67 = math.sin %66 : vector<32x128xf32>
    %c5 = arith.constant 5 : index
    %c0_43 = arith.constant 0 : index
    %c0_44 = arith.constant 0 : index
    %68 = vector.load %arg4[%c5, %c0_43, %c0_44] : memref<6x32x32xf32, #tpu.memory_space<vmem>>, vector<1x32x32xf32>
    %69 = vector.shape_cast %68 : vector<1x32x32xf32> to vector<32x32xf32>
    %cst_45 = arith.constant dense<0.000000e+00> : vector<32x128xf32>
    %70 = tpu.matmul %69, %67, %cst_45 {dimension_numbers = #tpu.dot_dimension_numbers<[1], [0], [0], [1], [0, 0, 1, 1], [], []>} : vector<32x32xf32>, vector<32x128xf32>, vector<32x128xf32> -> vector<32x128xf32>
    %c5_46 = arith.constant 5 : index
    %c0_47 = arith.constant 0 : index
    %c0_48 = arith.constant 0 : index
    %71 = vector.load %arg5[%c5_46, %c0_47, %c0_48] : memref<6x32x1xf32, #tpu.memory_space<vmem>>, vector<1x32x1xf32>
    %72 = vector.shape_cast %71 : vector<1x32x1xf32> to vector<32x1xf32>
    %73 = vector.broadcast %72 : vector<32x1xf32> to vector<32x128xf32>
    %74 = arith.addf %70, %73 : vector<32x128xf32>
    %cst_49 = arith.constant 5.000000e+01 : f32
    %75 = vector.broadcast %cst_49 : f32 to vector<32x128xf32>
    %76 = arith.mulf %74, %75 : vector<32x128xf32>
    %77 = math.sin %76 : vector<32x128xf32>
    %c0_50 = arith.constant 0 : index
    %c0_51 = arith.constant 0 : index
    %78 = vector.load %arg6[%c0_50, %c0_51] : memref<3x32xf32, #tpu.memory_space<vmem>>, vector<3x32xf32>
    %cst_52 = arith.constant dense<0.000000e+00> : vector<3x128xf32>
    %79 = tpu.matmul %78, %77, %cst_52 {dimension_numbers = #tpu.dot_dimension_numbers<[1], [0], [0], [1], [0, 0, 1, 1], [], []>} : vector<3x32xf32>, vector<32x128xf32>, vector<3x128xf32> -> vector<3x128xf32>
    %c0_53 = arith.constant 0 : index
    %c0_54 = arith.constant 0 : index
    %80 = vector.load %arg7[%c0_53, %c0_54] : memref<3x1xf32, #tpu.memory_space<vmem>>, vector<3x1xf32>
    %81 = vector.broadcast %80 : vector<3x1xf32> to vector<3x128xf32>
    %82 = arith.addf %79, %81 : vector<3x128xf32>
    %c0_55 = arith.constant 0 : index
    %c0_56 = arith.constant 0 : index
    %83 = vector.load %arg8[%c0_55, %c0_56] : memref<3x128xf32, #tpu.memory_space<vmem>>, vector<3x128xf32>
    tpu.vector_store %arg8[%c0_55, %c0_56], %82 {strides = array<i32>} : memref<3x128xf32, #tpu.memory_space<vmem>>, vector<3x128xf32>,
    return
  }
  func.func @transform_0(%arg0: i32) -> (i32, i32) {
    %c0_i32 = arith.constant 0 : i32
    %c0_i32_0 = arith.constant 0 : i32
    return %c0_i32, %arg0 : i32, i32
  }
  func.func @transform_1(%arg0: i32) -> (i32, i32) {
    %c0_i32 = arith.constant 0 : i32
    %c0_i32_0 = arith.constant 0 : i32
    %c0_i32_1 = arith.constant 0 : i32
    return %c0_i32, %c0_i32_0 : i32, i32
  }
  func.func @transform_2(%arg0: i32) -> (i32, i32) {
    %c0_i32 = arith.constant 0 : i32
    %c0_i32_0 = arith.constant 0 : i32
    %c0_i32_1 = arith.constant 0 : i32
    return %c0_i32, %c0_i32_0 : i32, i32
  }
  func.func @transform_3(%arg0: i32) -> (i32, i32, i32) {
    %c0_i32 = arith.constant 0 : i32
    %c0_i32_0 = arith.constant 0 : i32
    %c0_i32_1 = arith.constant 0 : i32
    %c0_i32_2 = arith.constant 0 : i32
    return %c0_i32, %c0_i32_0, %c0_i32_1 : i32, i32, i32
  }
  func.func @transform_4(%arg0: i32) -> (i32, i32, i32) {
    %c0_i32 = arith.constant 0 : i32
    %c0_i32_0 = arith.constant 0 : i32
    %c0_i32_1 = arith.constant 0 : i32
    %c0_i32_2 = arith.constant 0 : i32
    return %c0_i32, %c0_i32_0, %c0_i32_1 : i32, i32, i32
  }
  func.func @transform_5(%arg0: i32) -> (i32, i32) {
    %c0_i32 = arith.constant 0 : i32
    %c0_i32_0 = arith.constant 0 : i32
    %c0_i32_1 = arith.constant 0 : i32
    return %c0_i32, %c0_i32_0 : i32, i32
  }
  func.func @transform_6(%arg0: i32) -> (i32, i32) {
    %c0_i32 = arith.constant 0 : i32
    %c0_i32_0 = arith.constant 0 : i32
    %c0_i32_1 = arith.constant 0 : i32
    return %c0_i32, %c0_i32_0 : i32, i32
  }
  func.func @transform_7(%arg0: i32) -> (i32, i32) {
    %c0_i32 = arith.constant 0 : i32
    %c0_i32_0 = arith.constant 0 : i32
    return %c0_i32, %arg0 : i32, i32
  }
}

</mosaic_0001>

<llo_original>
// kernel: tpu_custom_call.1
$region0: #{tpu_custom_call.1}
  #allocation0 [shape = 'u32[]', space=smem, size = 0x4, offset = 0x4, fixed_abs, tag = 'smem constant byte address 0x4 - core index']
  #allocation1 [shape = 'u32[72,128]{1,0:T(1,128)}', space=vmem, size = 0x9000, scoped, tag = 'internal scratch']
  %s0 = inlined_call_operand.vmem [shape: f32[2,256], index: 0, kind: input, shape index: {}]
  %s1 = inlined_call_operand.vmem [shape: f32[32,2], index: 1, kind: input, shape index: {}]
  %s2 = inlined_call_operand.vmem [shape: f32[32,1], index: 2, kind: input, shape index: {}]
  %s3 = inlined_call_operand.vmem [shape: f32[6,32,32], index: 3, kind: input, shape index: {}]
  %s4 = inlined_call_operand.vmem [shape: f32[6,32,1], index: 4, kind: input, shape index: {}]
  %s5 = inlined_call_operand.vmem [shape: f32[3,32], index: 5, kind: input, shape index: {}]
  %s6 = inlined_call_operand.vmem [shape: f32[3,1], index: 6, kind: input, shape index: {}]
  %s7 = inlined_call_operand.hbm [shape: f32[3,256], index: 7, kind: output, shape index: {}]
  %s8 = sld [smem:[#allocation0]]
  $region61: #{tpu_custom_call.1} parent=0
    _
  %s10 = ssub.s32 1, %s8
  %s11 = scalar_select 0, %s10, %s8
  $region1: #{tpu_custom_call.1} parent=0
    #allocation2 [shape = 'u8[4096]{0}', space=vmem, size = 0x1000, scoped, tag = 'output window, operand 0']
    #allocation3 [shape = 's32[2]{0}', space=sflag, size = 0x8, scoped, tag = 'scoped memory for tpu_custom_call.1']
    %12 = vsyncpa [#allocation3], 0
    %s13 = scalar_lea.sflag [#allocation3], 1
    %14 = vsyncpa %s13, 0
    loop: start=0, step=1, limit=4
    $region2: #{tpu_custom_call.1} parent=1 // loop_pre_header
      _
    $region3: #{tpu_custom_call.1} parent=1 // loop_header
      %s16 = sphi 0, %s20
      %p17 = scmp.ge.s32.totalorder %s16, 4
      %s26 = sphi 0, %s28
      %s29 = sphi 0, %s26
      %s30 = sphi 0, %s29
      %s46 = sphi 0, %s30
      %s50 = sphi 0, %s50
      %s52 = sphi 0, %s50
      %s53 = sphi 0, %s52
      %s67 = sphi 0, %s53
      %s71 = sphi 0, %s71
      %s73 = sphi 0, %s71
      %s74 = sphi 0, %s73
      %s88 = sphi 0, %s74
      %s92 = sphi 0, %s92
      %s94 = sphi 0, %s92
      %s95 = sphi 0, %s94
      %s109 = sphi 0, %s95
      %s113 = sphi 0, %s113
      %s115 = sphi 0, %s113
      %s116 = sphi 0, %s115
      %s130 = sphi 0, %s116
      %s134 = sphi 0, %s134
      %s136 = sphi 0, %s134
      %s137 = sphi 0, %s136
      %s151 = sphi 0, %s137
      %s155 = sphi 0, %s155
      %s157 = sphi 0, %s155
      %s158 = sphi 0, %s157
      %s172 = sphi 0, %s158
      %s178 = sphi 0, %s180
      %s181 = sphi 0, %s178
      %s182 = sphi 0, %s181
      %s198 = sphi 0, %s182
    $region4: #{tpu_custom_call.1} parent=1 // loop_header_branch
      %19 = sbr.rel (%p17) target = $region8
    $region5: #{tpu_custom_call.1} parent=1 // loop_body
      %s21 = ssub.s32 %s16, 1
      %s22 = ssub.s32 %s16, 2
      %s23 = sadd.s32 %s16, 1
      %s24 = ssub.s32 %s16, %s23
      %p25 = scmp.eq.s32.totalorder %s24, 0
      %s27 = sadd.s32 %s26, 1
      %s28 = scalar_select %p25, %s26, %s27
      %p31 = pneg %p25
      %p32 = scmp.eq.s32.totalorder %s16, 1
      %p33 = por %p31, %p32
      %p34 = scmp.ne.s32.totalorder %s26, %s29
      %p35 = scmp.eq.s32.totalorder %s16, 0
      %p36 = por %p34, %p35
      %p37 = scmp.ne.s32.totalorder %s26, %s29
      %p38 = scmp.eq.s32.totalorder %s21, 1
      %p39 = por %p37, %p38
      %p40 = scmp.ne.s32.totalorder %s29, %s30
      %p41 = scmp.eq.s32.totalorder %s21, 0
      %p42 = por %p40, %p41
      %p43 = scmp.ne.s32.totalorder %s29, %s30
      %p44 = scmp.eq.s32.totalorder %s22, 1
      %p45 = por %p43, %p44
      %p47 = scmp.ne.s32.totalorder %s30, %s46
      %p48 = scmp.eq.s32.totalorder %s22, 0
      %p49 = por %p47, %p48
      %s51 = sadd.s32 %s50, 1
      %p54 = scmp.eq.s32.totalorder %s16, 1
      %p55 = scmp.ne.s32.totalorder %s50, %s52
      %p56 = scmp.eq.s32.totalorder %s16, 0
      %p57 = por %p55, %p56
      %p58 = scmp.ne.s32.totalorder %s50, %s52
      %p59 = scmp.eq.s32.totalorder %s21, 1
      %p60 = por %p58, %p59
      %p61 = scmp.ne.s32.totalorder %s52, %s53
      %p62 = scmp.eq.s32.totalorder %s21, 0
      %p63 = por %p61, %p62
      %p64 = scmp.ne.s32.totalorder %s52, %s53
      %p65 = scmp.eq.s32.totalorder %s22, 1
      %p66 = por %p64, %p65
      %p68 = scmp.ne.s32.totalorder %s53, %s67
      %p69 = scmp.eq.s32.totalorder %s22, 0
      %p70 = por %p68, %p69
      %s72 = sadd.s32 %s71, 1
      %p75 = scmp.eq.s32.totalorder %s16, 1
      %p76 = scmp.ne.s32.totalorder %s71, %s73
      %p77 = scmp.eq.s32.totalorder %s16, 0
      %p78 = por %p76, %p77
      %p79 = scmp.ne.s32.totalorder %s71, %s73
      %p80 = scmp.eq.s32.totalorder %s21, 1
      %p81 = por %p79, %p80
      %p82 = scmp.ne.s32.totalorder %s73, %s74
      %p83 = scmp.eq.s32.totalorder %s21, 0
      %p84 = por %p82, %p83
      %p85 = scmp.ne.s32.totalorder %s73, %s74
      %p86 = scmp.eq.s32.totalorder %s22, 1
      %p87 = por %p85, %p86
      %p89 = scmp.ne.s32.totalorder %s74, %s88
      %p90 = scmp.eq.s32.totalorder %s22, 0
      %p91 = por %p89, %p90
      %s93 = sadd.s32 %s92, 1
      %p96 = scmp.eq.s32.totalorder %s16, 1
      %p97 = scmp.ne.s32.totalorder %s92, %s94
      %p98 = scmp.eq.s32.totalorder %s16, 0
      %p99 = por %p97, %p98
      %p100 = scmp.ne.s32.totalorder %s92, %s94
      %p101 = scmp.eq.s32.totalorder %s21, 1
      %p102 = por %p100, %p101
      %p103 = scmp.ne.s32.totalorder %s94, %s95
      %p104 = scmp.eq.s32.totalorder %s21, 0
      %p105 = por %p103, %p104
      %p106 = scmp.ne.s32.totalorder %s94, %s95
      %p107 = scmp.eq.s32.totalorder %s22, 1
      %p108 = por %p106, %p107
      %p110 = scmp.ne.s32.totalorder %s95, %s109
      %p111 = scmp.eq.s32.totalorder %s22, 0
      %p112 = por %p110, %p111
      %s114 = sadd.s32 %s113, 1
      %p117 = scmp.eq.s32.totalorder %s16, 1
      %p118 = scmp.ne.s32.totalorder %s113, %s115
      %p119 = scmp.eq.s32.totalorder %s16, 0
      %p120 = por %p118, %p119
      %p121 = scmp.ne.s32.totalorder %s113, %s115
      %p122 = scmp.eq.s32.totalorder %s21, 1
      %p123 = por %p121, %p122
      %p124 = scmp.ne.s32.totalorder %s115, %s116
      %p125 = scmp.eq.s32.totalorder %s21, 0
      %p126 = por %p124, %p125
      %p127 = scmp.ne.s32.totalorder %s115, %s116
      %p128 = scmp.eq.s32.totalorder %s22, 1
      %p129 = por %p127, %p128
      %p131 = scmp.ne.s32.totalorder %s116, %s130
      %p132 = scmp.eq.s32.totalorder %s22, 0
      %p133 = por %p131, %p132
      %s135 = sadd.s32 %s134, 1
      %p138 = scmp.eq.s32.totalorder %s16, 1
      %p139 = scmp.ne.s32.totalorder %s134, %s136
      %p140 = scmp.eq.s32.totalorder %s16, 0
      %p141 = por %p139, %p140
      %p142 = scmp.ne.s32.totalorder %s134, %s136
      %p143 = scmp.eq.s32.totalorder %s21, 1
      %p144 = por %p142, %p143
      %p145 = scmp.ne.s32.totalorder %s136, %s137
      %p146 = scmp.eq.s32.totalorder %s21, 0
      %p147 = por %p145, %p146
      %p148 = scmp.ne.s32.totalorder %s136, %s137
      %p149 = scmp.eq.s32.totalorder %s22, 1
      %p150 = por %p148, %p149
      %p152 = scmp.ne.s32.totalorder %s137, %s151
      %p153 = scmp.eq.s32.totalorder %s22, 0
      %p154 = por %p152, %p153
      %s156 = sadd.s32 %s155, 1
      %p159 = scmp.eq.s32.totalorder %s16, 1
      %p160 = scmp.ne.s32.totalorder %s155, %s157
      %p161 = scmp.eq.s32.totalorder %s16, 0
      %p162 = por %p160, %p161
      %p163 = scmp.ne.s32.totalorder %s155, %s157
      %p164 = scmp.eq.s32.totalorder %s21, 1
      %p165 = por %p163, %p164
      %p166 = scmp.ne.s32.totalorder %s157, %s158
      %p167 = scmp.eq.s32.totalorder %s21, 0
      %p168 = por %p166, %p167
      %p169 = scmp.ne.s32.totalorder %s157, %s158
      %p170 = scmp.eq.s32.totalorder %s22, 1
      %p171 = por %p169, %p170
      %p173 = scmp.ne.s32.totalorder %s158, %s172
      %p174 = scmp.eq.s32.totalorder %s22, 0
      %p175 = por %p173, %p174
      %s176 = ssub.s32 %s16, %s23
      %p177 = scmp.eq.s32.totalorder %s176, 0
      %s179 = sadd.s32 %s178, 1
      %s180 = scalar_select %p177, %s178, %s179
      %p183 = pneg %p177
      %p184 = scmp.eq.s32.totalorder %s16, 1
      %p185 = por %p183, %p184
      %p186 = scmp.ne.s32.totalorder %s178, %s181
      %p187 = scmp.eq.s32.totalorder %s16, 0
      %p188 = por %p186, %p187
      %p189 = scmp.ne.s32.totalorder %s178, %s181
      %p190 = scmp.eq.s32.totalorder %s21, 1
      %p191 = por %p189, %p190
      %p192 = scmp.ne.s32.totalorder %s181, %s182
      %p193 = scmp.eq.s32.totalorder %s21, 0
      %p194 = por %p192, %p193
      %p195 = scmp.ne.s32.totalorder %s181, %s182
      %p196 = scmp.eq.s32.totalorder %s22, 1
      %p197 = por %p195, %p196
      %p199 = scmp.ne.s32.totalorder %s182, %s198
      %p200 = scmp.eq.s32.totalorder %s22, 0
      %p201 = por %p199, %p200
      %p202 = scmp.le.s32.totalorder 1, %s16
      %p203 = scmp.lt.s32.totalorder %s16, 3
      %p204 = pnand %p202, %p203
      %p205 = pneg %p204
      // Predicated region
      $region9: #{tpu_custom_call.1} parent=5 // pred_check
        _
      $region10: #{tpu_custom_call.1} parent=5 // pred_check_branch
        %207 = sbr.rel (%p204) target = $region12
      $region11: #{tpu_custom_call.1} parent=5 // pred_region
        %s208 = ssub.s32 %s16, 1
        // Predicated region
        $region13: #{tpu_custom_call.1} parent=11 // pred_check
          %p209 = pneg %p63
        $region14: #{tpu_custom_call.1} parent=11 // pred_check_branch
          %211 = sbr.rel (%p209) target = $region16
        $region15: #{tpu_custom_call.1} parent=11 // pred_region
          _
        $region16: #{tpu_custom_call.1} parent=11 // pred_fallthru
          _
        // Predicated region
        $region17: #{tpu_custom_call.1} parent=11 // pred_check
          %p212 = pneg %p84
        $region18: #{tpu_custom_call.1} parent=11 // pred_check_branch
          %214 = sbr.rel (%p212) target = $region20
        $region19: #{tpu_custom_call.1} parent=11 // pred_region
          _
        $region20: #{tpu_custom_call.1} parent=11 // pred_fallthru
          _
        // Predicated region
        $region21: #{tpu_custom_call.1} parent=11 // pred_check
          %p215 = pneg %p105
        $region22: #{tpu_custom_call.1} parent=11 // pred_check_branch
          %217 = sbr.rel (%p215) target = $region24
        $region23: #{tpu_custom_call.1} parent=11 // pred_region
          _
        $region24: #{tpu_custom_call.1} parent=11 // pred_fallthru
          _
        // Predicated region
        $region25: #{tpu_custom_call.1} parent=11 // pred_check
          %p218 = pneg %p126
        $region26: #{tpu_custom_call.1} parent=11 // pred_check_branch
          %220 = sbr.rel (%p218) target = $region28
        $region27: #{tpu_custom_call.1} parent=11 // pred_region
          _
        $region28: #{tpu_custom_call.1} parent=11 // pred_fallthru
          _
        // Predicated region
        $region29: #{tpu_custom_call.1} parent=11 // pred_check
          %p221 = pneg %p147
        $region30: #{tpu_custom_call.1} parent=11 // pred_check_branch
          %223 = sbr.rel (%p221) target = $region32
        $region31: #{tpu_custom_call.1} parent=11 // pred_region
          _
        $region32: #{tpu_custom_call.1} parent=11 // pred_fallthru
          _
        // Predicated region
        $region33: #{tpu_custom_call.1} parent=11 // pred_check
          %p224 = pneg %p168
        $region34: #{tpu_custom_call.1} parent=11 // pred_check_branch
          %226 = sbr.rel (%p224) target = $region36
        $region35: #{tpu_custom_call.1} parent=11 // pred_region
          _
        $region36: #{tpu_custom_call.1} parent=11 // pred_fallthru
          _
      $region12: #{tpu_custom_call.1} parent=5 // pred_fallthru
        _
      %p227 = scmp.lt.s32.totalorder %s16, 2
      // Predicated region
      $region37: #{tpu_custom_call.1} parent=5 // pred_check
        %p228 = pneg %p227
      $region38: #{tpu_custom_call.1} parent=5 // pred_check_branch
        %230 = sbr.rel (%p228) target = $region40
      $region39: #{tpu_custom_call.1} parent=5 // pred_region
        // Predicated region
        $region41: #{tpu_custom_call.1} parent=39 // pred_check
          %p231 = pneg %p36
        $region42: #{tpu_custom_call.1} parent=39 // pred_check_branch
          %233 = sbr.rel (%p231) target = $region44
        $region43: #{tpu_custom_call.1} parent=39 // pred_region
          %p234 = scmp.lt.s32.totalorder %s16, 1
          %s235 = scalar_select %p234, %s16, 1
          %s236 = smul.addr %s235, 2
          %s237 = scalar_lea.vmem %s0, %s236
        $region44: #{tpu_custom_call.1} parent=39 // pred_fallthru
          _
      $region40: #{tpu_custom_call.1} parent=5 // pred_fallthru
        _
      %p238 = scmp.le.s32.totalorder 1, %s16
      %p239 = scmp.lt.s32.totalorder %s16, 3
      %p240 = pnand %p238, %p239
      %p241 = pneg %p240
      // Predicated region
      $region45: #{tpu_custom_call.1} parent=5 // pred_check
        _
      $region46: #{tpu_custom_call.1} parent=5 // pred_check_branch
        %243 = sbr.rel (%p240) target = $region48
      $region47: #{tpu_custom_call.1} parent=5 // pred_region
        %s244 = ssub.s32 %s16, 1
        %p245 = scmp.lt.s32.totalorder %s21, 1
        %s246 = scalar_select %p245, %s21, 1
        %s247 = smul.addr %s246, 2
        %s248 = scalar_lea.vmem %s0, %s247
        %p249 = pneg %p42
        %p250 = pneg %p39
        %p251 = pneg %p63
        %p252 = pneg %p60
        %p253 = pneg %p84
        %p254 = pneg %p81
        %p255 = pneg %p105
        %p256 = pneg %p102
        %p257 = pneg %p126
        %p258 = pneg %p123
        %p259 = pneg %p147
        %p260 = pneg %p144
        %p261 = pneg %p168
        %p262 = pneg %p165
        %p263 = pneg %p194
        %p264 = pneg %p191
        %s265 = sand.u32 %s181, 1
        %s266 = scalar_lea.sflag [#allocation3], %s265
        %s267 = sand.u32 %s181, 1
        %s268 = smul.addr %s267, 4
        %s269 = scalar_lea.vmem [#allocation2], %s268
        %p270 = scmp.lt.s32.totalorder %s21, 1
        %s271 = scalar_select %p270, %s21, 1
        %s272 = smul.addr %s271, 2
        %s273 = scalar_lea.vmem %s0, %s272
        %v274 = vld [vmem:[%s273] sm:$0x3]
        %v275 = vld [vmem:[%s1] sm:$0xff]
        %v276 = vld [vmem:[%s1 + $0x8] sm:$0xff]
        %v277 = vld [vmem:[%s1 + $0x10] sm:$0xff]
        %v278 = vld [vmem:[%s1 + $0x18] sm:$0xff]
        %280 = vset.pattern.permute.xlu0 0
        %281 = vperm.xlu0 %280, %v275
        %v282 = vpop.permute.xlu0 %281
        %285 = vset.pattern.permute.xlu0 0
        %286 = vperm.xlu0 %285, %v276
        %v287 = vpop.permute.xlu0 %286
        %290 = vset.pattern.permute.xlu0 0
        %291 = vperm.xlu0 %290, %v277
        %v292 = vpop.permute.xlu0 %291
        %295 = vset.pattern.permute.xlu0 0
        %296 = vperm.xlu0 %295, %v278
        %v297 = vpop.permute.xlu0 %296
        %v299 = vperm.slane %v274, 0
        %v300 = vmul.f32 %v282, %v299
        %v301 = vmul.f32 %v287, %v299
        %v302 = vmul.f32 %v292, %v299
        %v303 = vmul.f32 %v297, %v299
        %304 = vset.pattern.permute.xlu0 1
        %305 = vperm.xlu0 %304, %v275
        %v306 = vpop.permute.xlu0 %305
        %308 = vset.pattern.permute.xlu0 1
        %309 = vperm.xlu0 %308, %v276
        %v310 = vpop.permute.xlu0 %309
        %312 = vset.pattern.permute.xlu0 1
        %313 = vperm.xlu0 %312, %v277
        %v314 = vpop.permute.xlu0 %313
        %316 = vset.pattern.permute.xlu0 1
        %317 = vperm.xlu0 %316, %v278
        %v318 = vpop.permute.xlu0 %317
        %v320 = vperm.slane %v274, 1
        %v321 = vmul.f32 %v306, %v320
        %v322 = vmul.f32 %v310, %v320
        %v323 = vmul.f32 %v314, %v320
        %v324 = vmul.f32 %v318, %v320
        %v325 = vadd.f32 %v300, %v321
        %v326 = vadd.f32 %v301, %v322
        %v327 = vadd.f32 %v302, %v323
        %v328 = vadd.f32 %v303, %v324
        %v329 = vld [vmem:[%s2] sm:$0xff]
        %v330 = vld [vmem:[%s2 + $0x8] sm:$0xff]
        %v331 = vld [vmem:[%s2 + $0x10] sm:$0xff]
        %v332 = vld [vmem:[%s2 + $0x18] sm:$0xff]
        %334 = vset.pattern.permute.xlu0 0
        %335 = vperm.xlu0 %334, %v329
        %v336 = vpop.permute.xlu0 %335
        %339 = vset.pattern.permute.xlu0 0
        %340 = vperm.xlu0 %339, %v330
        %v341 = vpop.permute.xlu0 %340
        %344 = vset.pattern.permute.xlu0 0
        %345 = vperm.xlu0 %344, %v331
        %v346 = vpop.permute.xlu0 %345
        %349 = vset.pattern.permute.xlu0 0
        %350 = vperm.xlu0 %349, %v332
        %v351 = vpop.permute.xlu0 %350
        %v353 = vadd.f32 %v325, %v336
        %v354 = vadd.f32 %v326, %v341
        %v355 = vadd.f32 %v327, %v346
        %v356 = vadd.f32 %v328, %v351
        %v357 = vmul.f32 %v353, 50.0
        %v358 = vmul.f32 %v354, 50.0
        %v359 = vmul.f32 %v355, 50.0
        %v360 = vmul.f32 %v356, 50.0
        %v361 = vand.u32 2147483647, %v357
        %vm362 = vcmp.le.f32.partialorder %v361, 0.7853982
        %vm363 = vcmp.lt.s32.totalorder %v357, 0
        %v364 = vand.u32 %v357, 2139095040
        %v365 = vshrl.u32 %v364, 23
        %v366 = vsub.s32 %v365, 127
        %v367 = vand.u32 2147483647, %v357
        %v368 = vand.u32 %v367, 8388607
        %v369 = vor.u32 %v368, 8388608
        %v370 = vsub.s32 0, %v369
        %v371 = vadd.s32 %v366, 1
        %vm372 = vcmp.gt.s32.totalorder %v371, 0
        %v373 = vsel %vm372, %v371, 0
        %v374 = vshrl.u32 %v373, 5
        %v375 = vand.u32 %v373, 31
        %v376 = vsub.s32 32, %v375
        %v377 = vshrl.u32 683565275, %v376
        %v378 = vshll.u32 683565275, %v375
        %v379 = vshrl.u32 2475754826, %v376
        %v380 = vor.u32 %v378, %v379
        %v381 = vshll.u32 2475754826, %v375
        %v382 = vshrl.u32 2131351028, %v376
        %v383 = vor.u32 %v381, %v382
        %v384 = vshll.u32 2131351028, %v375
        %v385 = vshrl.u32 2102212464, %v376
        %v386 = vor.u32 %v384, %v385
        %v387 = vshll.u32 2102212464, %v375
        %v388 = vshrl.u32 920167782, %v376
        %v389 = vor.u32 %v387, %v388
        %v390 = vshll.u32 920167782, %v375
        %v391 = vshrl.u32 1326507024, %v376
        %v392 = vor.u32 %v390, %v391
        %vm393 = vcmp.lt.s32.totalorder %v374, 1
        %vm394 = vcmp.lt.s32.totalorder %v374, 2
        %vm395 = vcmp.lt.s32.totalorder %v374, 3
        %vm396 = vcmp.lt.s32.totalorder %v374, 4
        %v397 = vsel %vm393, %v377, %v380
        %v398 = vsel %vm396, %v386, 2102212464
        %v399 = vsel %vm395, %v383, %v398
        %v400 = vsel %vm394, %v397, %v399
        %v401 = vsel %vm393, %v380, %v383
        %v402 = vsel %vm396, %v389, 920167782
        %v403 = vsel %vm395, %v386, %v402
        %v404 = vsel %vm394, %v401, %v403
        %v405 = vsel %vm393, %v383, %v386
        %v406 = vsel %vm396, %v392, 1326507024
        %v407 = vsel %vm395, %v389, %v406
        %v408 = vsel %vm394, %v405, %v407
        %v409 = vshll.u32 %v369, 8
        %v410 = vand.u32 %v409, 65535
        %v411 = vshrl.u32 %v409, 16
        %v412 = vand.u32 %v408, 65535
        %v413 = vshrl.u32 %v408, 16
        %v414 = vmul.u32 %v410, %v412
        %v415 = vmul.u32 %v410, %v413
        %v416 = vmul.u32 %v411, %v412
        %v417 = vmul.u32 %v411, %v413
        %v418 = vshll.u32 %v415, 16
        %v419 = vshrl.u32 %v415, 16
        %v420 = vshll.u32 %v416, 16
        %v421 = vshrl.u32 %v416, 16
        %vm422 = vc.u32 %v414, %v418
        %v423 = vsel %vm422, 1, 0
        %v424 = vadd.s32 %v414, %v418
        %v425 = vadd.s32 %v417, %v423
        %vm426 = vc.u32 %v424, %v420
        %v427 = vsel %vm426, 1, 0
        %v428 = vadd.s32 %v424, %v420
        %v429 = vadd.s32 %v425, %v427
        %v430 = vadd.s32 %v429, %v419
        %v431 = vadd.s32 %v430, %v421
        %v432 = vand.u32 %v409, 65535
        %v433 = vshrl.u32 %v409, 16
        %v434 = vand.u32 %v404, 65535
        %v435 = vshrl.u32 %v404, 16
        %v436 = vmul.u32 %v432, %v434
        %v437 = vmul.u32 %v432, %v435
        %v438 = vmul.u32 %v433, %v434
        %v439 = vmul.u32 %v433, %v435
        %v440 = vshll.u32 %v437, 16
        %v441 = vshrl.u32 %v437, 16
        %v442 = vshll.u32 %v438, 16
        %v443 = vshrl.u32 %v438, 16
        %vm444 = vc.u32 %v436, %v440
        %v445 = vsel %vm444, 1, 0
        %v446 = vadd.s32 %v436, %v440
        %v447 = vadd.s32 %v439, %v445
        %vm448 = vc.u32 %v446, %v442
        %v449 = vsel %vm448, 1, 0
        %v450 = vadd.s32 %v446, %v442
        %v451 = vadd.s32 %v447, %v449
        %v452 = vadd.s32 %v451, %v441
        %v453 = vadd.s32 %v452, %v443
        %v454 = vmul.u32 %v409, %v400
        %v455 = vadd.s32 %v431, %v450
        %vm456 = vc.u32 %v431, %v450
        %v457 = vadd.s32 %v453, 1
        %v458 = vsel %vm456, %v457, %v453
        %v459 = vadd.s32 %v454, %v458
        %v460 = vadd.s32 %v459, 536870912
        %v461 = vshrl.u32 %v460, 30
        %v462 = vshll.u32 %v461, 30
        %v463 = vsub.s32 %v459, %v462
        %vm464 = vcmp.lt.s32.totalorder %v463, 0
        %v465 = vsub.s32 0, %v463
        %v466 = vsel %vm464, %v465, %v463
        %v467 = vclz %v466
        %v468 = vsub.s32 %v467, 2
        %vm469 = vcmp.gt.s32.totalorder 0, %v468
        %v470 = vsel %vm469, 0, %v468
        %v471 = vsub.s32 32, %v470
        %v472 = vshll.u32 %v463, %v470
        %v473 = vshrl.u32 %v455, %v471
        %v474 = vor.u32 %v472, %v473
        %v475 = vsub.s32 4294967266, %v470
        %v476 = vadd.s32 %v475, 127
        %v477 = vshll.u32 %v476, 23
        %v478 = vor.u32 4788187, %v477
        %v479 = vand.u32 2147483647, %v478
        %v481 = vcvt.s32.f32 %v474
        %v482 = vmul.f32 %v481, %v479
        %v483 = vxor.u32 %v482, 2147483648
        %v484 = vsel %vm363, %v483, %v482
        %v485 = vsub.s32 4, %v461
        %v486 = vsel %vm363, %v485, %v461
        %v487 = vsel %vm362, %v357, %v484
        %v488 = vsel %vm362, 0, %v486
        %v489 = vmul.f32 %v487, %v487
        %v490 = vmul.f32 %v489, -0.001358992
        %v491 = vadd.f32 %v490, 0.041655596
        %v492 = vmul.f32 %v489, %v491
        %v493 = vadd.f32 %v492, -0.4999988
        %v494 = vmul.f32 %v489, %v493
        %v495 = vadd.f32 1.0, %v494
        %v496 = vmul.f32 %v487, %v487
        %v497 = vmul.f32 %v496, -0.00019511016
        %v498 = vadd.f32 %v497, 0.008332121
        %v499 = vmul.f32 %v496, %v498
        %v500 = vadd.f32 %v499, -0.16666654
        %v501 = vmul.f32 %v496, %v500
        %v502 = vadd.f32 %v501, 1.0
        %v503 = vmul.f32 %v502, %v487
        %vm504 = vweird.f32 %v357
        %v505 = vadd.s32 %v488, 3
        %v506 = vand.u32 %v505, 3
        %vm507 = vcmp.lt.s32.totalorder %v506, 2
        %vm508 = vcmp.eq.s32.totalorder %v506, 0
        %v509 = vxor.u32 %v503, 2147483648
        %v510 = vsel %vm508, %v495, %v509
        %vm511 = vcmp.eq.s32.totalorder %v506, 2
        %v512 = vxor.u32 %v495, 2147483648
        %v513 = vsel %vm511, %v512, %v503
        %v514 = vsel %vm507, %v510, %v513
        %v515 = vsel %vm504, nan, %v514
        %v516 = vand.u32 2147483647, %v358
        %vm517 = vcmp.le.f32.partialorder %v516, 0.7853982
        %vm518 = vcmp.lt.s32.totalorder %v358, 0
        %v519 = vand.u32 %v358, 2139095040
        %v520 = vshrl.u32 %v519, 23
        %v521 = vsub.s32 %v520, 127
        %v522 = vand.u32 2147483647, %v358
        %v523 = vand.u32 %v522, 8388607
        %v524 = vor.u32 %v523, 8388608
        %v525 = vsub.s32 0, %v524
        %v526 = vadd.s32 %v521, 1
        %vm527 = vcmp.gt.s32.totalorder %v526, 0
        %v528 = vsel %vm527, %v526, 0
        %v529 = vshrl.u32 %v528, 5
        %v530 = vand.u32 %v528, 31
        %v531 = vsub.s32 32, %v530
        %v532 = vshrl.u32 683565275, %v531
        %v533 = vshll.u32 683565275, %v530
        %v534 = vshrl.u32 2475754826, %v531
        %v535 = vor.u32 %v533, %v534
        %v536 = vshll.u32 2475754826, %v530
        %v537 = vshrl.u32 2131351028, %v531
        %v538 = vor.u32 %v536, %v537
        %v539 = vshll.u32 2131351028, %v530
        %v540 = vshrl.u32 2102212464, %v531
        %v541 = vor.u32 %v539, %v540
        %v542 = vshll.u32 2102212464, %v530
        %v543 = vshrl.u32 920167782, %v531
        %v544 = vor.u32 %v542, %v543
        %v545 = vshll.u32 920167782, %v530
        %v546 = vshrl.u32 1326507024, %v531
        %v547 = vor.u32 %v545, %v546
        %vm548 = vcmp.lt.s32.totalorder %v529, 1
        %vm549 = vcmp.lt.s32.totalorder %v529, 2
        %vm550 = vcmp.lt.s32.totalorder %v529, 3
        %vm551 = vcmp.lt.s32.totalorder %v529, 4
        %v552 = vsel %vm548, %v532, %v535
        %v553 = vsel %vm551, %v541, 2102212464
        %v554 = vsel %vm550, %v538, %v553
        %v555 = vsel %vm549, %v552, %v554
        %v556 = vsel %vm548, %v535, %v538
        %v557 = vsel %vm551, %v544, 920167782
        %v558 = vsel %vm550, %v541, %v557
        %v559 = vsel %vm549, %v556, %v558
        %v560 = vsel %vm548, %v538, %v541
        %v561 = vsel %vm551, %v547, 1326507024
        %v562 = vsel %vm550, %v544, %v561
        %v563 = vsel %vm549, %v560, %v562
        %v564 = vshll.u32 %v524, 8
        %v565 = vand.u32 %v564, 65535
        %v566 = vshrl.u32 %v564, 16
        %v567 = vand.u32 %v563, 65535
        %v568 = vshrl.u32 %v563, 16
        %v569 = vmul.u32 %v565, %v567
        %v570 = vmul.u32 %v565, %v568
        %v571 = vmul.u32 %v566, %v567
        %v572 = vmul.u32 %v566, %v568
        %v573 = vshll.u32 %v570, 16
        %v574 = vshrl.u32 %v570, 16
        %v575 = vshll.u32 %v571, 16
        %v576 = vshrl.u32 %v571, 16
        %vm577 = vc.u32 %v569, %v573
        %v578 = vsel %vm577, 1, 0
        %v579 = vadd.s32 %v569, %v573
        %v580 = vadd.s32 %v572, %v578
        %vm581 = vc.u32 %v579, %v575
        %v582 = vsel %vm581, 1, 0
        %v583 = vadd.s32 %v579, %v575
        %v584 = vadd.s32 %v580, %v582
        %v585 = vadd.s32 %v584, %v574
        %v586 = vadd.s32 %v585, %v576
        %v587 = vand.u32 %v564, 65535
        %v588 = vshrl.u32 %v564, 16
        %v589 = vand.u32 %v559, 65535
        %v590 = vshrl.u32 %v559, 16
        %v591 = vmul.u32 %v587, %v589
        %v592 = vmul.u32 %v587, %v590
        %v593 = vmul.u32 %v588, %v589
        %v594 = vmul.u32 %v588, %v590
        %v595 = vshll.u32 %v592, 16
        %v596 = vshrl.u32 %v592, 16
        %v597 = vshll.u32 %v593, 16
        %v598 = vshrl.u32 %v593, 16
        %vm599 = vc.u32 %v591, %v595
        %v600 = vsel %vm599, 1, 0
        %v601 = vadd.s32 %v591, %v595
        %v602 = vadd.s32 %v594, %v600
        %vm603 = vc.u32 %v601, %v597
        %v604 = vsel %vm603, 1, 0
        %v605 = vadd.s32 %v601, %v597
        %v606 = vadd.s32 %v602, %v604
        %v607 = vadd.s32 %v606, %v596
        %v608 = vadd.s32 %v607, %v598
        %v609 = vmul.u32 %v564, %v555
        %v610 = vadd.s32 %v586, %v605
        %vm611 = vc.u32 %v586, %v605
        %v612 = vadd.s32 %v608, 1
        %v613 = vsel %vm611, %v612, %v608
        %v614 = vadd.s32 %v609, %v613
        %v615 = vadd.s32 %v614, 536870912
        %v616 = vshrl.u32 %v615, 30
        %v617 = vshll.u32 %v616, 30
        %v618 = vsub.s32 %v614, %v617
        %vm619 = vcmp.lt.s32.totalorder %v618, 0
        %v620 = vsub.s32 0, %v618
        %v621 = vsel %vm619, %v620, %v618
        %v622 = vclz %v621
        %v623 = vsub.s32 %v622, 2
        %vm624 = vcmp.gt.s32.totalorder 0, %v623
        %v625 = vsel %vm624, 0, %v623
        %v626 = vsub.s32 32, %v625
        %v627 = vshll.u32 %v618, %v625
        %v628 = vshrl.u32 %v610, %v626
        %v629 = vor.u32 %v627, %v628
        %v630 = vsub.s32 4294967266, %v625
        %v631 = vadd.s32 %v630, 127
        %v632 = vshll.u32 %v631, 23
        %v633 = vor.u32 4788187, %v632
        %v634 = vand.u32 2147483647, %v633
        %v636 = vcvt.s32.f32 %v629
        %v637 = vmul.f32 %v636, %v634
        %v638 = vxor.u32 %v637, 2147483648
        %v639 = vsel %vm518, %v638, %v637
        %v640 = vsub.s32 4, %v616
        %v641 = vsel %vm518, %v640, %v616
        %v642 = vsel %vm517, %v358, %v639
        %v643 = vsel %vm517, 0, %v641
        %v644 = vmul.f32 %v642, %v642
        %v645 = vmul.f32 %v644, -0.001358992
        %v646 = vadd.f32 %v645, 0.041655596
        %v647 = vmul.f32 %v644, %v646
        %v648 = vadd.f32 %v647, -0.4999988
        %v649 = vmul.f32 %v644, %v648
        %v650 = vadd.f32 1.0, %v649
        %v651 = vmul.f32 %v642, %v642
        %v652 = vmul.f32 %v651, -0.00019511016
        %v653 = vadd.f32 %v652, 0.008332121
        %v654 = vmul.f32 %v651, %v653
        %v655 = vadd.f32 %v654, -0.16666654
        %v656 = vmul.f32 %v651, %v655
        %v657 = vadd.f32 %v656, 1.0
        %v658 = vmul.f32 %v657, %v642
        %vm659 = vweird.f32 %v358
        %v660 = vadd.s32 %v643, 3
        %v661 = vand.u32 %v660, 3
        %vm662 = vcmp.lt.s32.totalorder %v661, 2
        %vm663 = vcmp.eq.s32.totalorder %v661, 0
        %v664 = vxor.u32 %v658, 2147483648
        %v665 = vsel %vm663, %v650, %v664
        %vm666 = vcmp.eq.s32.totalorder %v661, 2
        %v667 = vxor.u32 %v650, 2147483648
        %v668 = vsel %vm666, %v667, %v658
        %v669 = vsel %vm662, %v665, %v668
        %v670 = vsel %vm659, nan, %v669
        %v671 = vand.u32 2147483647, %v359
        %vm672 = vcmp.le.f32.partialorder %v671, 0.7853982
        %vm673 = vcmp.lt.s32.totalorder %v359, 0
        %v674 = vand.u32 %v359, 2139095040
        %v675 = vshrl.u32 %v674, 23
        %v676 = vsub.s32 %v675, 127
        %v677 = vand.u32 2147483647, %v359
        %v678 = vand.u32 %v677, 8388607
        %v679 = vor.u32 %v678, 8388608
        %v680 = vsub.s32 0, %v679
        %v681 = vadd.s32 %v676, 1
        %vm682 = vcmp.gt.s32.totalorder %v681, 0
        %v683 = vsel %vm682, %v681, 0
        %v684 = vshrl.u32 %v683, 5
        %v685 = vand.u32 %v683, 31
        %v686 = vsub.s32 32, %v685
        %v687 = vshrl.u32 683565275, %v686
        %v688 = vshll.u32 683565275, %v685
        %v689 = vshrl.u32 2475754826, %v686
        %v690 = vor.u32 %v688, %v689
        %v691 = vshll.u32 2475754826, %v685
        %v692 = vshrl.u32 2131351028, %v686
        %v693 = vor.u32 %v691, %v692
        %v694 = vshll.u32 2131351028, %v685
        %v695 = vshrl.u32 2102212464, %v686
        %v696 = vor.u32 %v694, %v695
        %v697 = vshll.u32 2102212464, %v685
        %v698 = vshrl.u32 920167782, %v686
        %v699 = vor.u32 %v697, %v698
        %v700 = vshll.u32 920167782, %v685
        %v701 = vshrl.u32 1326507024, %v686
        %v702 = vor.u32 %v700, %v701
        %vm703 = vcmp.lt.s32.totalorder %v684, 1
        %vm704 = vcmp.lt.s32.totalorder %v684, 2
        %vm705 = vcmp.lt.s32.totalorder %v684, 3
        %vm706 = vcmp.lt.s32.totalorder %v684, 4
        %v707 = vsel %vm703, %v687, %v690
        %v708 = vsel %vm706, %v696, 2102212464
        %v709 = vsel %vm705, %v693, %v708
        %v710 = vsel %vm704, %v707, %v709
        %v711 = vsel %vm703, %v690, %v693
        %v712 = vsel %vm706, %v699, 920167782
        %v713 = vsel %vm705, %v696, %v712
        %v714 = vsel %vm704, %v711, %v713
        %v715 = vsel %vm703, %v693, %v696
        %v716 = vsel %vm706, %v702, 1326507024
        %v717 = vsel %vm705, %v699, %v716
        %v718 = vsel %vm704, %v715, %v717
        %v719 = vshll.u32 %v679, 8
        %v720 = vand.u32 %v719, 65535
        %v721 = vshrl.u32 %v719, 16
        %v722 = vand.u32 %v718, 65535
        %v723 = vshrl.u32 %v718, 16
        %v724 = vmul.u32 %v720, %v722
        %v725 = vmul.u32 %v720, %v723
        %v726 = vmul.u32 %v721, %v722
        %v727 = vmul.u32 %v721, %v723
        %v728 = vshll.u32 %v725, 16
        %v729 = vshrl.u32 %v725, 16
        %v730 = vshll.u32 %v726, 16
        %v731 = vshrl.u32 %v726, 16
        %vm732 = vc.u32 %v724, %v728
        %v733 = vsel %vm732, 1, 0
        %v734 = vadd.s32 %v724, %v728
        %v735 = vadd.s32 %v727, %v733
        %vm736 = vc.u32 %v734, %v730
        %v737 = vsel %vm736, 1, 0
        %v738 = vadd.s32 %v734, %v730
        %v739 = vadd.s32 %v735, %v737
        %v740 = vadd.s32 %v739, %v729
        %v741 = vadd.s32 %v740, %v731
        %v742 = vand.u32 %v719, 65535
        %v743 = vshrl.u32 %v719, 16
        %v744 = vand.u32 %v714, 65535
        %v745 = vshrl.u32 %v714, 16
        %v746 = vmul.u32 %v742, %v744
        %v747 = vmul.u32 %v742, %v745
        %v748 = vmul.u32 %v743, %v744
        %v749 = vmul.u32 %v743, %v745
        %v750 = vshll.u32 %v747, 16
        %v751 = vshrl.u32 %v747, 16
        %v752 = vshll.u32 %v748, 16
        %v753 = vshrl.u32 %v748, 16
        %vm754 = vc.u32 %v746, %v750
        %v755 = vsel %vm754, 1, 0
        %v756 = vadd.s32 %v746, %v750
        %v757 = vadd.s32 %v749, %v755
        %vm758 = vc.u32 %v756, %v752
        %v759 = vsel %vm758, 1, 0
        %v760 = vadd.s32 %v756, %v752
        %v761 = vadd.s32 %v757, %v759
        %v762 = vadd.s32 %v761, %v751
        %v763 = vadd.s32 %v762, %v753
        %v764 = vmul.u32 %v719, %v710
        %v765 = vadd.s32 %v741, %v760
        %vm766 = vc.u32 %v741, %v760
        %v767 = vadd.s32 %v763, 1
        %v768 = vsel %vm766, %v767, %v763
        %v769 = vadd.s32 %v764, %v768
        %v770 = vadd.s32 %v769, 536870912
        %v771 = vshrl.u32 %v770, 30
        %v772 = vshll.u32 %v771, 30
        %v773 = vsub.s32 %v769, %v772
        %vm774 = vcmp.lt.s32.totalorder %v773, 0
        %v775 = vsub.s32 0, %v773
        %v776 = vsel %vm774, %v775, %v773
        %v777 = vclz %v776
        %v778 = vsub.s32 %v777, 2
        %vm779 = vcmp.gt.s32.totalorder 0, %v778
        %v780 = vsel %vm779, 0, %v778
        %v781 = vsub.s32 32, %v780
        %v782 = vshll.u32 %v773, %v780
        %v783 = vshrl.u32 %v765, %v781
        %v784 = vor.u32 %v782, %v783
        %v785 = vsub.s32 4294967266, %v780
        %v786 = vadd.s32 %v785, 127
        %v787 = vshll.u32 %v786, 23
        %v788 = vor.u32 4788187, %v787
        %v789 = vand.u32 2147483647, %v788
        %v791 = vcvt.s32.f32 %v784
        %v792 = vmul.f32 %v791, %v789
        %v793 = vxor.u32 %v792, 2147483648
        %v794 = vsel %vm673, %v793, %v792
        %v795 = vsub.s32 4, %v771
        %v796 = vsel %vm673, %v795, %v771
        %v797 = vsel %vm672, %v359, %v794
        %v798 = vsel %vm672, 0, %v796
        %v799 = vmul.f32 %v797, %v797
        %v800 = vmul.f32 %v799, -0.001358992
        %v801 = vadd.f32 %v800, 0.041655596
        %v802 = vmul.f32 %v799, %v801
        %v803 = vadd.f32 %v802, -0.4999988
        %v804 = vmul.f32 %v799, %v803
        %v805 = vadd.f32 1.0, %v804
        %v806 = vmul.f32 %v797, %v797
        %v807 = vmul.f32 %v806, -0.00019511016
        %v808 = vadd.f32 %v807, 0.008332121
        %v809 = vmul.f32 %v806, %v808
        %v810 = vadd.f32 %v809, -0.16666654
        %v811 = vmul.f32 %v806, %v810
        %v812 = vadd.f32 %v811, 1.0
        %v813 = vmul.f32 %v812, %v797
        %vm814 = vweird.f32 %v359
        %v815 = vadd.s32 %v798, 3
        %v816 = vand.u32 %v815, 3
        %vm817 = vcmp.lt.s32.totalorder %v816, 2
        %vm818 = vcmp.eq.s32.totalorder %v816, 0
        %v819 = vxor.u32 %v813, 2147483648
        %v820 = vsel %vm818, %v805, %v819
        %vm821 = vcmp.eq.s32.totalorder %v816, 2
        %v822 = vxor.u32 %v805, 2147483648
        %v823 = vsel %vm821, %v822, %v813
        %v824 = vsel %vm817, %v820, %v823
        %v825 = vsel %vm814, nan, %v824
        %v826 = vand.u32 2147483647, %v360
        %vm827 = vcmp.le.f32.partialorder %v826, 0.7853982
        %vm828 = vcmp.lt.s32.totalorder %v360, 0
        %v829 = vand.u32 %v360, 2139095040
        %v830 = vshrl.u32 %v829, 23
        %v831 = vsub.s32 %v830, 127
        %v832 = vand.u32 2147483647, %v360
        %v833 = vand.u32 %v832, 8388607
        %v834 = vor.u32 %v833, 8388608
        %v835 = vsub.s32 0, %v834
        %v836 = vadd.s32 %v831, 1
        %vm837 = vcmp.gt.s32.totalorder %v836, 0
        %v838 = vsel %vm837, %v836, 0
        %v839 = vshrl.u32 %v838, 5
        %v840 = vand.u32 %v838, 31
        %v841 = vsub.s32 32, %v840
        %v842 = vshrl.u32 683565275, %v841
        %v843 = vshll.u32 683565275, %v840
        %v844 = vshrl.u32 2475754826, %v841
        %v845 = vor.u32 %v843, %v844
        %v846 = vshll.u32 2475754826, %v840
        %v847 = vshrl.u32 2131351028, %v841
        %v848 = vor.u32 %v846, %v847
        %v849 = vshll.u32 2131351028, %v840
        %v850 = vshrl.u32 2102212464, %v841
        %v851 = vor.u32 %v849, %v850
        %v852 = vshll.u32 2102212464, %v840
        %v853 = vshrl.u32 920167782, %v841
        %v854 = vor.u32 %v852, %v853
        %v855 = vshll.u32 920167782, %v840
        %v856 = vshrl.u32 1326507024, %v841
        %v857 = vor.u32 %v855, %v856
        %vm858 = vcmp.lt.s32.totalorder %v839, 1
        %vm859 = vcmp.lt.s32.totalorder %v839, 2
        %vm860 = vcmp.lt.s32.totalorder %v839, 3
        %vm861 = vcmp.lt.s32.totalorder %v839, 4
        %v862 = vsel %vm858, %v842, %v845
        %v863 = vsel %vm861, %v851, 2102212464
        %v864 = vsel %vm860, %v848, %v863
        %v865 = vsel %vm859, %v862, %v864
        %v866 = vsel %vm858, %v845, %v848
        %v867 = vsel %vm861, %v854, 920167782
        %v868 = vsel %vm860, %v851, %v867
        %v869 = vsel %vm859, %v866, %v868
        %v870 = vsel %vm858, %v848, %v851
        %v871 = vsel %vm861, %v857, 1326507024
        %v872 = vsel %vm860, %v854, %v871
        %v873 = vsel %vm859, %v870, %v872
        %v874 = vshll.u32 %v834, 8
        %v875 = vand.u32 %v874, 65535
        %v876 = vshrl.u32 %v874, 16
        %v877 = vand.u32 %v873, 65535
        %v878 = vshrl.u32 %v873, 16
        %v879 = vmul.u32 %v875, %v877
        %v880 = vmul.u32 %v875, %v878
        %v881 = vmul.u32 %v876, %v877
        %v882 = vmul.u32 %v876, %v878
        %v883 = vshll.u32 %v880, 16
        %v884 = vshrl.u32 %v880, 16
        %v885 = vshll.u32 %v881, 16
        %v886 = vshrl.u32 %v881, 16
        %vm887 = vc.u32 %v879, %v883
        %v888 = vsel %vm887, 1, 0
        %v889 = vadd.s32 %v879, %v883
        %v890 = vadd.s32 %v882, %v888
        %vm891 = vc.u32 %v889, %v885
        %v892 = vsel %vm891, 1, 0
        %v893 = vadd.s32 %v889, %v885
        %v894 = vadd.s32 %v890, %v892
        %v895 = vadd.s32 %v894, %v884
        %v896 = vadd.s32 %v895, %v886
        %v897 = vand.u32 %v874, 65535
        %v898 = vshrl.u32 %v874, 16
        %v899 = vand.u32 %v869, 65535
        %v900 = vshrl.u32 %v869, 16
        %v901 = vmul.u32 %v897, %v899
        %v902 = vmul.u32 %v897, %v900
        %v903 = vmul.u32 %v898, %v899
        %v904 = vmul.u32 %v898, %v900
        %v905 = vshll.u32 %v902, 16
        %v906 = vshrl.u32 %v902, 16
        %v907 = vshll.u32 %v903, 16
        %v908 = vshrl.u32 %v903, 16
        %vm909 = vc.u32 %v901, %v905
        %v910 = vsel %vm909, 1, 0
        %v911 = vadd.s32 %v901, %v905
        %v912 = vadd.s32 %v904, %v910
        %vm913 = vc.u32 %v911, %v907
        %v914 = vsel %vm913, 1, 0
        %v915 = vadd.s32 %v911, %v907
        %v916 = vadd.s32 %v912, %v914
        %v917 = vadd.s32 %v916, %v906
        %v918 = vadd.s32 %v917, %v908
        %v919 = vmul.u32 %v874, %v865
        %v920 = vadd.s32 %v896, %v915
        %vm921 = vc.u32 %v896, %v915
        %v922 = vadd.s32 %v918, 1
        %v923 = vsel %vm921, %v922, %v918
        %v924 = vadd.s32 %v919, %v923
        %v925 = vadd.s32 %v924, 536870912
        %v926 = vshrl.u32 %v925, 30
        %v927 = vshll.u32 %v926, 30
        %v928 = vsub.s32 %v924, %v927
        %vm929 = vcmp.lt.s32.totalorder %v928, 0
        %v930 = vsub.s32 0, %v928
        %v931 = vsel %vm929, %v930, %v928
        %v932 = vclz %v931
        %v933 = vsub.s32 %v932, 2
        %vm934 = vcmp.gt.s32.totalorder 0, %v933
        %v935 = vsel %vm934, 0, %v933
        %v936 = vsub.s32 32, %v935
        %v937 = vshll.u32 %v928, %v935
        %v938 = vshrl.u32 %v920, %v936
        %v939 = vor.u32 %v937, %v938
        %v940 = vsub.s32 4294967266, %v935
        %v941 = vadd.s32 %v940, 127
        %v942 = vshll.u32 %v941, 23
        %v943 = vor.u32 4788187, %v942
        %v944 = vand.u32 2147483647, %v943
        %v946 = vcvt.s32.f32 %v939
        %v947 = vmul.f32 %v946, %v944
        %v948 = vxor.u32 %v947, 2147483648
        %v949 = vsel %vm828, %v948, %v947
        %v950 = vsub.s32 4, %v926
        %v951 = vsel %vm828, %v950, %v926
        %v952 = vsel %vm827, %v360, %v949
        %v953 = vsel %vm827, 0, %v951
        %v954 = vmul.f32 %v952, %v952
        %v955 = vmul.f32 %v954, -0.001358992
        %v956 = vadd.f32 %v955, 0.041655596
        %v957 = vmul.f32 %v954, %v956
        %v958 = vadd.f32 %v957, -0.4999988
        %v959 = vmul.f32 %v954, %v958
        %v960 = vadd.f32 1.0, %v959
        %v961 = vmul.f32 %v952, %v952
        %v962 = vmul.f32 %v961, -0.00019511016
        %v963 = vadd.f32 %v962, 0.008332121
        %v964 = vmul.f32 %v961, %v963
        %v965 = vadd.f32 %v964, -0.16666654
        %v966 = vmul.f32 %v961, %v965
        %v967 = vadd.f32 %v966, 1.0
        %v968 = vmul.f32 %v967, %v952
        %vm969 = vweird.f32 %v360
        %v970 = vadd.s32 %v953, 3
        %v971 = vand.u32 %v970, 3
        %vm972 = vcmp.lt.s32.totalorder %v971, 2
        %vm973 = vcmp.eq.s32.totalorder %v971, 0
        %v974 = vxor.u32 %v968, 2147483648
        %v975 = vsel %vm973, %v960, %v974
        %vm976 = vcmp.eq.s32.totalorder %v971, 2
        %v977 = vxor.u32 %v960, 2147483648
        %v978 = vsel %vm976, %v977, %v968
        %v979 = vsel %vm972, %v975, %v978
        %v980 = vsel %vm969, nan, %v979
        %v981 = vld [vmem:[%s3] sm:$0xff]
        %v982 = vld [vmem:[%s3 + $0x8] sm:$0xff]
        %v983 = vld [vmem:[%s3 + $0x10] sm:$0xff]
        %v984 = vld [vmem:[%s3 + $0x18] sm:$0xff]
        %v985 = vld [vmem:[%s4] sm:$0xff]
        %v986 = vld [vmem:[%s4 + $0x8] sm:$0xff]
        %v987 = vld [vmem:[%s4 + $0x10] sm:$0xff]
        %v988 = vld [vmem:[%s4 + $0x18] sm:$0xff]
        %990 = vset.pattern.permute.xlu0 0
        %991 = vperm.xlu0 %990, %v985
        %v992 = vpop.permute.xlu0 %991
        %995 = vset.pattern.permute.xlu0 0
        %996 = vperm.xlu0 %995, %v986
        %v997 = vpop.permute.xlu0 %996
        %1000 = vset.pattern.permute.xlu0 0
        %1001 = vperm.xlu0 %1000, %v987
        %v1002 = vpop.permute.xlu0 %1001
        %1005 = vset.pattern.permute.xlu0 0
        %1006 = vperm.xlu0 %1005, %v988
        %v1007 = vpop.permute.xlu0 %1006
        %vm1009 = vcmask 261120
        %v1011 = vsel %vm1009, %v981, 0
        %v1014 = vsel %vm1009, %v982, 0
        %v1017 = vsel %vm1009, %v983, 0
        %v1020 = vsel %vm1009, %v984, 0
        %1022 = vmatpush.msra.mxu0 0.0
        %1023 = vmatpush.msra.mxu0 0.0
        %1024 = vmatpush.msra.mxu0 0.0
        %1025 = vmatpush.msra.mxu0 0.0
        %1026 = vmatpush.msra.mxu0 0.0
        %1027 = vmatpush.msra.mxu0 0.0
        %1028 = vmatpush.msra.mxu0 0.0
        %1029 = vmatpush.msra.mxu0 0.0
        %1030 = vmatpush.msra.mxu0 0.0
        %1031 = vmatpush.msra.mxu0 0.0
        %1032 = vmatpush.msra.mxu0 0.0
        %1033 = vmatpush.msra.mxu0 0.0
        %1034 = vmatpush.msra.mxu0 %v980
        %1035 = vmatpush.msra.mxu0 %v825
        %1036 = vmatpush.msra.mxu0 %v670
        %1037 = vmatpush.msra.mxu0 %v515
        %1038 = vmatmul.f32.gmra.mxu0 %v1011
        %v1039 = vpop.f32.mrf.mxu0
        %v1040 = vadd.f32 %v992, %v1039
        %1041 = vmatmul.f32.gmra.mxu0 %v1014
        %v1042 = vpop.f32.mrf.mxu0
        %v1043 = vadd.f32 %v997, %v1042
        %1044 = vmatmul.f32.gmra.mxu0 %v1017
        %v1045 = vpop.f32.mrf.mxu0
        %v1046 = vadd.f32 %v1002, %v1045
        %1047 = vmatmul.f32.gmra.mxu0 %v1020
        %v1048 = vpop.f32.mrf.mxu0
        %v1049 = vadd.f32 %v1007, %v1048
        %1050 = vdwg.mxu0
        %v1051 = vmul.f32 %v1040, 50.0
        %v1052 = vmul.f32 %v1043, 50.0
        %v1053 = vmul.f32 %v1046, 50.0
        %v1054 = vmul.f32 %v1049, 50.0
        %v1055 = vand.u32 2147483647, %v1051
        %vm1056 = vcmp.le.f32.partialorder %v1055, 0.7853982
        %vm1057 = vcmp.lt.s32.totalorder %v1051, 0
        %v1058 = vand.u32 %v1051, 2139095040
        %v1059 = vshrl.u32 %v1058, 23
        %v1060 = vsub.s32 %v1059, 127
        %v1061 = vand.u32 2147483647, %v1051
        %v1062 = vand.u32 %v1061, 8388607
        %v1063 = vor.u32 %v1062, 8388608
        %v1064 = vsub.s32 0, %v1063
        %v1065 = vadd.s32 %v1060, 1
        %vm1066 = vcmp.gt.s32.totalorder %v1065, 0
        %v1067 = vsel %vm1066, %v1065, 0
        %v1068 = vshrl.u32 %v1067, 5
        %v1069 = vand.u32 %v1067, 31
        %v1070 = vsub.s32 32, %v1069
        %v1071 = vshrl.u32 683565275, %v1070
        %v1072 = vshll.u32 683565275, %v1069
        %v1073 = vshrl.u32 2475754826, %v1070
        %v1074 = vor.u32 %v1072, %v1073
        %v1075 = vshll.u32 2475754826, %v1069
        %v1076 = vshrl.u32 2131351028, %v1070
        %v1077 = vor.u32 %v1075, %v1076
        %v1078 = vshll.u32 2131351028, %v1069
        %v1079 = vshrl.u32 2102212464, %v1070
        %v1080 = vor.u32 %v1078, %v1079
        %v1081 = vshll.u32 2102212464, %v1069
        %v1082 = vshrl.u32 920167782, %v1070
        %v1083 = vor.u32 %v1081, %v1082
        %v1084 = vshll.u32 920167782, %v1069
        %v1085 = vshrl.u32 1326507024, %v1070
        %v1086 = vor.u32 %v1084, %v1085
        %vm1087 = vcmp.lt.s32.totalorder %v1068, 1
        %vm1088 = vcmp.lt.s32.totalorder %v1068, 2
        %vm1089 = vcmp.lt.s32.totalorder %v1068, 3
        %vm1090 = vcmp.lt.s32.totalorder %v1068, 4
        %v1091 = vsel %vm1087, %v1071, %v1074
        %v1092 = vsel %vm1090, %v1080, 2102212464
        %v1093 = vsel %vm1089, %v1077, %v1092
        %v1094 = vsel %vm1088, %v1091, %v1093
        %v1095 = vsel %vm1087, %v1074, %v1077
        %v1096 = vsel %vm1090, %v1083, 920167782
        %v1097 = vsel %vm1089, %v1080, %v1096
        %v1098 = vsel %vm1088, %v1095, %v1097
        %v1099 = vsel %vm1087, %v1077, %v1080
        %v1100 = vsel %vm1090, %v1086, 1326507024
        %v1101 = vsel %vm1089, %v1083, %v1100
        %v1102 = vsel %vm1088, %v1099, %v1101
        %v1103 = vshll.u32 %v1063, 8
        %v1104 = vand.u32 %v1103, 65535
        %v1105 = vshrl.u32 %v1103, 16
        %v1106 = vand.u32 %v1102, 65535
        %v1107 = vshrl.u32 %v1102, 16
        %v1108 = vmul.u32 %v1104, %v1106
        %v1109 = vmul.u32 %v1104, %v1107
        %v1110 = vmul.u32 %v1105, %v1106
        %v1111 = vmul.u32 %v1105, %v1107
        %v1112 = vshll.u32 %v1109, 16
        %v1113 = vshrl.u32 %v1109, 16
        %v1114 = vshll.u32 %v1110, 16
        %v1115 = vshrl.u32 %v1110, 16
        %vm1116 = vc.u32 %v1108, %v1112
        %v1117 = vsel %vm1116, 1, 0
        %v1118 = vadd.s32 %v1108, %v1112
        %v1119 = vadd.s32 %v1111, %v1117
        %vm1120 = vc.u32 %v1118, %v1114
        %v1121 = vsel %vm1120, 1, 0
        %v1122 = vadd.s32 %v1118, %v1114
        %v1123 = vadd.s32 %v1119, %v1121
        %v1124 = vadd.s32 %v1123, %v1113
        %v1125 = vadd.s32 %v1124, %v1115
        %v1126 = vand.u32 %v1103, 65535
        %v1127 = vshrl.u32 %v1103, 16
        %v1128 = vand.u32 %v1098, 65535
        %v1129 = vshrl.u32 %v1098, 16
        %v1130 = vmul.u32 %v1126, %v1128
        %v1131 = vmul.u32 %v1126, %v1129
        %v1132 = vmul.u32 %v1127, %v1128
        %v1133 = vmul.u32 %v1127, %v1129
        %v1134 = vshll.u32 %v1131, 16
        %v1135 = vshrl.u32 %v1131, 16
        %v1136 = vshll.u32 %v1132, 16
        %v1137 = vshrl.u32 %v1132, 16
        %vm1138 = vc.u32 %v1130, %v1134
        %v1139 = vsel %vm1138, 1, 0
        %v1140 = vadd.s32 %v1130, %v1134
        %v1141 = vadd.s32 %v1133, %v1139
        %vm1142 = vc.u32 %v1140, %v1136
        %v1143 = vsel %vm1142, 1, 0
        %v1144 = vadd.s32 %v1140, %v1136
        %v1145 = vadd.s32 %v1141, %v1143
        %v1146 = vadd.s32 %v1145, %v1135
        %v1147 = vadd.s32 %v1146, %v1137
        %v1148 = vmul.u32 %v1103, %v1094
        %v1149 = vadd.s32 %v1125, %v1144
        %vm1150 = vc.u32 %v1125, %v1144
        %v1151 = vadd.s32 %v1147, 1
        %v1152 = vsel %vm1150, %v1151, %v1147
        %v1153 = vadd.s32 %v1148, %v1152
        %v1154 = vadd.s32 %v1153, 536870912
        %v1155 = vshrl.u32 %v1154, 30
        %v1156 = vshll.u32 %v1155, 30
        %v1157 = vsub.s32 %v1153, %v1156
        %vm1158 = vcmp.lt.s32.totalorder %v1157, 0
        %v1159 = vsub.s32 0, %v1157
        %v1160 = vsel %vm1158, %v1159, %v1157
        %v1161 = vclz %v1160
        %v1162 = vsub.s32 %v1161, 2
        %vm1163 = vcmp.gt.s32.totalorder 0, %v1162
        %v1164 = vsel %vm1163, 0, %v1162
        %v1165 = vsub.s32 32, %v1164
        %v1166 = vshll.u32 %v1157, %v1164
        %v1167 = vshrl.u32 %v1149, %v1165
        %v1168 = vor.u32 %v1166, %v1167
        %v1169 = vsub.s32 4294967266, %v1164
        %v1170 = vadd.s32 %v1169, 127
        %v1171 = vshll.u32 %v1170, 23
        %v1172 = vor.u32 4788187, %v1171
        %v1173 = vand.u32 2147483647, %v1172
        %v1175 = vcvt.s32.f32 %v1168
        %v1176 = vmul.f32 %v1175, %v1173
        %v1177 = vxor.u32 %v1176, 2147483648
        %v1178 = vsel %vm1057, %v1177, %v1176
        %v1179 = vsub.s32 4, %v1155
        %v1180 = vsel %vm1057, %v1179, %v1155
        %v1181 = vsel %vm1056, %v1051, %v1178
        %v1182 = vsel %vm1056, 0, %v1180
        %v1183 = vmul.f32 %v1181, %v1181
        %v1184 = vmul.f32 %v1183, -0.001358992
        %v1185 = vadd.f32 %v1184, 0.041655596
        %v1186 = vmul.f32 %v1183, %v1185
        %v1187 = vadd.f32 %v1186, -0.4999988
        %v1188 = vmul.f32 %v1183, %v1187
        %v1189 = vadd.f32 1.0, %v1188
        %v1190 = vmul.f32 %v1181, %v1181
        %v1191 = vmul.f32 %v1190, -0.00019511016
        %v1192 = vadd.f32 %v1191, 0.008332121
        %v1193 = vmul.f32 %v1190, %v1192
        %v1194 = vadd.f32 %v1193, -0.16666654
        %v1195 = vmul.f32 %v1190, %v1194
        %v1196 = vadd.f32 %v1195, 1.0
        %v1197 = vmul.f32 %v1196, %v1181
        %vm1198 = vweird.f32 %v1051
        %v1199 = vadd.s32 %v1182, 3
        %v1200 = vand.u32 %v1199, 3
        %vm1201 = vcmp.lt.s32.totalorder %v1200, 2
        %vm1202 = vcmp.eq.s32.totalorder %v1200, 0
        %v1203 = vxor.u32 %v1197, 2147483648
        %v1204 = vsel %vm1202, %v1189, %v1203
        %vm1205 = vcmp.eq.s32.totalorder %v1200, 2
        %v1206 = vxor.u32 %v1189, 2147483648
        %v1207 = vsel %vm1205, %v1206, %v1197
        %v1208 = vsel %vm1201, %v1204, %v1207
        %v1209 = vsel %vm1198, nan, %v1208
        %v1210 = vand.u32 2147483647, %v1052
        %vm1211 = vcmp.le.f32.partialorder %v1210, 0.7853982
        %vm1212 = vcmp.lt.s32.totalorder %v1052, 0
        %v1213 = vand.u32 %v1052, 2139095040
        %v1214 = vshrl.u32 %v1213, 23
        %v1215 = vsub.s32 %v1214, 127
        %v1216 = vand.u32 2147483647, %v1052
        %v1217 = vand.u32 %v1216, 8388607
        %v1218 = vor.u32 %v1217, 8388608
        %v1219 = vsub.s32 0, %v1218
        %v1220 = vadd.s32 %v1215, 1
        %vm1221 = vcmp.gt.s32.totalorder %v1220, 0
        %v1222 = vsel %vm1221, %v1220, 0
        %v1223 = vshrl.u32 %v1222, 5
        %v1224 = vand.u32 %v1222, 31
        %v1225 = vsub.s32 32, %v1224
        %v1226 = vshrl.u32 683565275, %v1225
        %v1227 = vshll.u32 683565275, %v1224
        %v1228 = vshrl.u32 2475754826, %v1225
        %v1229 = vor.u32 %v1227, %v1228
        %v1230 = vshll.u32 2475754826, %v1224
        %v1231 = vshrl.u32 2131351028, %v1225
        %v1232 = vor.u32 %v1230, %v1231
        %v1233 = vshll.u32 2131351028, %v1224
        %v1234 = vshrl.u32 2102212464, %v1225
        %v1235 = vor.u32 %v1233, %v1234
        %v1236 = vshll.u32 2102212464, %v1224
        %v1237 = vshrl.u32 920167782, %v1225
        %v1238 = vor.u32 %v1236, %v1237
        %v1239 = vshll.u32 920167782, %v1224
        %v1240 = vshrl.u32 1326507024, %v1225
        %v1241 = vor.u32 %v1239, %v1240
        %vm1242 = vcmp.lt.s32.totalorder %v1223, 1
        %vm1243 = vcmp.lt.s32.totalorder %v1223, 2
        %vm1244 = vcmp.lt.s32.totalorder %v1223, 3
        %vm1245 = vcmp.lt.s32.totalorder %v1223, 4
        %v1246 = vsel %vm1242, %v1226, %v1229
        %v1247 = vsel %vm1245, %v1235, 2102212464
        %v1248 = vsel %vm1244, %v1232, %v1247
        %v1249 = vsel %vm1243, %v1246, %v1248
        %v1250 = vsel %vm1242, %v1229, %v1232
        %v1251 = vsel %vm1245, %v1238, 920167782
        %v1252 = vsel %vm1244, %v1235, %v1251
        %v1253 = vsel %vm1243, %v1250, %v1252
        %v1254 = vsel %vm1242, %v1232, %v1235
        %v1255 = vsel %vm1245, %v1241, 1326507024
        %v1256 = vsel %vm1244, %v1238, %v1255
        %v1257 = vsel %vm1243, %v1254, %v1256
        %v1258 = vshll.u32 %v1218, 8
        %v1259 = vand.u32 %v1258, 65535
        %v1260 = vshrl.u32 %v1258, 16
        %v1261 = vand.u32 %v1257, 65535
        %v1262 = vshrl.u32 %v1257, 16
        %v1263 = vmul.u32 %v1259, %v1261
        %v1264 = vmul.u32 %v1259, %v1262
        %v1265 = vmul.u32 %v1260, %v1261
        %v1266 = vmul.u32 %v1260, %v1262
        %v1267 = vshll.u32 %v1264, 16
        %v1268 = vshrl.u32 %v1264, 16
        %v1269 = vshll.u32 %v1265, 16
        %v1270 = vshrl.u32 %v1265, 16
        %vm1271 = vc.u32 %v1263, %v1267
        %v1272 = vsel %vm1271, 1, 0
        %v1273 = vadd.s32 %v1263, %v1267
        %v1274 = vadd.s32 %v1266, %v1272
        %vm1275 = vc.u32 %v1273, %v1269
        %v1276 = vsel %vm1275, 1, 0
        %v1277 = vadd.s32 %v1273, %v1269
        %v1278 = vadd.s32 %v1274, %v1276
        %v1279 = vadd.s32 %v1278, %v1268
        %v1280 = vadd.s32 %v1279, %v1270
        %v1281 = vand.u32 %v1258, 65535
        %v1282 = vshrl.u32 %v1258, 16
        %v1283 = vand.u32 %v1253, 65535
        %v1284 = vshrl.u32 %v1253, 16
        %v1285 = vmul.u32 %v1281, %v1283
        %v1286 = vmul.u32 %v1281, %v1284
        %v1287 = vmul.u32 %v1282, %v1283
        %v1288 = vmul.u32 %v1282, %v1284
        %v1289 = vshll.u32 %v1286, 16
        %v1290 = vshrl.u32 %v1286, 16
        %v1291 = vshll.u32 %v1287, 16
        %v1292 = vshrl.u32 %v1287, 16
        %vm1293 = vc.u32 %v1285, %v1289
        %v1294 = vsel %vm1293, 1, 0
        %v1295 = vadd.s32 %v1285, %v1289
        %v1296 = vadd.s32 %v1288, %v1294
        %vm1297 = vc.u32 %v1295, %v1291
        %v1298 = vsel %vm1297, 1, 0
        %v1299 = vadd.s32 %v1295, %v1291
        %v1300 = vadd.s32 %v1296, %v1298
        %v1301 = vadd.s32 %v1300, %v1290
        %v1302 = vadd.s32 %v1301, %v1292
        %v1303 = vmul.u32 %v1258, %v1249
        %v1304 = vadd.s32 %v1280, %v1299
        %vm1305 = vc.u32 %v1280, %v1299
        %v1306 = vadd.s32 %v1302, 1
        %v1307 = vsel %vm1305, %v1306, %v1302
        %v1308 = vadd.s32 %v1303, %v1307
        %v1309 = vadd.s32 %v1308, 536870912
        %v1310 = vshrl.u32 %v1309, 30
        %v1311 = vshll.u32 %v1310, 30
        %v1312 = vsub.s32 %v1308, %v1311
        %vm1313 = vcmp.lt.s32.totalorder %v1312, 0
        %v1314 = vsub.s32 0, %v1312
        %v1315 = vsel %vm1313, %v1314, %v1312
        %v1316 = vclz %v1315
        %v1317 = vsub.s32 %v1316, 2
        %vm1318 = vcmp.gt.s32.totalorder 0, %v1317
        %v1319 = vsel %vm1318, 0, %v1317
        %v1320 = vsub.s32 32, %v1319
        %v1321 = vshll.u32 %v1312, %v1319
        %v1322 = vshrl.u32 %v1304, %v1320
        %v1323 = vor.u32 %v1321, %v1322
        %v1324 = vsub.s32 4294967266, %v1319
        %v1325 = vadd.s32 %v1324, 127
        %v1326 = vshll.u32 %v1325, 23
        %v1327 = vor.u32 4788187, %v1326
        %v1328 = vand.u32 2147483647, %v1327
        %v1330 = vcvt.s32.f32 %v1323
        %v1331 = vmul.f32 %v1330, %v1328
        %v1332 = vxor.u32 %v1331, 2147483648
        %v1333 = vsel %vm1212, %v1332, %v1331
        %v1334 = vsub.s32 4, %v1310
        %v1335 = vsel %vm1212, %v1334, %v1310
        %v1336 = vsel %vm1211, %v1052, %v1333
        %v1337 = vsel %vm1211, 0, %v1335
        %v1338 = vmul.f32 %v1336, %v1336
        %v1339 = vmul.f32 %v1338, -0.001358992
        %v1340 = vadd.f32 %v1339, 0.041655596
        %v1341 = vmul.f32 %v1338, %v1340
        %v1342 = vadd.f32 %v1341, -0.4999988
        %v1343 = vmul.f32 %v1338, %v1342
        %v1344 = vadd.f32 1.0, %v1343
        %v1345 = vmul.f32 %v1336, %v1336
        %v1346 = vmul.f32 %v1345, -0.00019511016
        %v1347 = vadd.f32 %v1346, 0.008332121
        %v1348 = vmul.f32 %v1345, %v1347
        %v1349 = vadd.f32 %v1348, -0.16666654
        %v1350 = vmul.f32 %v1345, %v1349
        %v1351 = vadd.f32 %v1350, 1.0
        %v1352 = vmul.f32 %v1351, %v1336
        %vm1353 = vweird.f32 %v1052
        %v1354 = vadd.s32 %v1337, 3
        %v1355 = vand.u32 %v1354, 3
        %vm1356 = vcmp.lt.s32.totalorder %v1355, 2
        %vm1357 = vcmp.eq.s32.totalorder %v1355, 0
        %v1358 = vxor.u32 %v1352, 2147483648
        %v1359 = vsel %vm1357, %v1344, %v1358
        %vm1360 = vcmp.eq.s32.totalorder %v1355, 2
        %v1361 = vxor.u32 %v1344, 2147483648
        %v1362 = vsel %vm1360, %v1361, %v1352
        %v1363 = vsel %vm1356, %v1359, %v1362
        %v1364 = vsel %vm1353, nan, %v1363
        %v1365 = vand.u32 2147483647, %v1053
        %vm1366 = vcmp.le.f32.partialorder %v1365, 0.7853982
        %vm1367 = vcmp.lt.s32.totalorder %v1053, 0
        %v1368 = vand.u32 %v1053, 2139095040
        %v1369 = vshrl.u32 %v1368, 23
        %v1370 = vsub.s32 %v1369, 127
        %v1371 = vand.u32 2147483647, %v1053
        %v1372 = vand.u32 %v1371, 8388607
        %v1373 = vor.u32 %v1372, 8388608
        %v1374 = vsub.s32 0, %v1373
        %v1375 = vadd.s32 %v1370, 1
        %vm1376 = vcmp.gt.s32.totalorder %v1375, 0
        %v1377 = vsel %vm1376, %v1375, 0
        %v1378 = vshrl.u32 %v1377, 5
        %v1379 = vand.u32 %v1377, 31
        %v1380 = vsub.s32 32, %v1379
        %v1381 = vshrl.u32 683565275, %v1380
        %v1382 = vshll.u32 683565275, %v1379
        %v1383 = vshrl.u32 2475754826, %v1380
        %v1384 = vor.u32 %v1382, %v1383
        %v1385 = vshll.u32 2475754826, %v1379
        %v1386 = vshrl.u32 2131351028, %v1380
        %v1387 = vor.u32 %v1385, %v1386
        %v1388 = vshll.u32 2131351028, %v1379
        %v1389 = vshrl.u32 2102212464, %v1380
        %v1390 = vor.u32 %v1388, %v1389
        %v1391 = vshll.u32 2102212464, %v1379
        %v1392 = vshrl.u32 920167782, %v1380
        %v1393 = vor.u32 %v1391, %v1392
        %v1394 = vshll.u32 920167782, %v1379
        %v1395 = vshrl.u32 1326507024, %v1380
        %v1396 = vor.u32 %v1394, %v1395
        %vm1397 = vcmp.lt.s32.totalorder %v1378, 1
        %vm1398 = vcmp.lt.s32.totalorder %v1378, 2
        %vm1399 = vcmp.lt.s32.totalorder %v1378, 3
        %vm1400 = vcmp.lt.s32.totalorder %v1378, 4
        %v1401 = vsel %vm1397, %v1381, %v1384
        %v1402 = vsel %vm1400, %v1390, 2102212464
        %v1403 = vsel %vm1399, %v1387, %v1402
        %v1404 = vsel %vm1398, %v1401, %v1403
        %v1405 = vsel %vm1397, %v1384, %v1387
        %v1406 = vsel %vm1400, %v1393, 920167782
        %v1407 = vsel %vm1399, %v1390, %v1406
        %v1408 = vsel %vm1398, %v1405, %v1407
        %v1409 = vsel %vm1397, %v1387, %v1390
        %v1410 = vsel %vm1400, %v1396, 1326507024
        %v1411 = vsel %vm1399, %v1393, %v1410
        %v1412 = vsel %vm1398, %v1409, %v1411
        %v1413 = vshll.u32 %v1373, 8
        %v1414 = vand.u32 %v1413, 65535
        %v1415 = vshrl.u32 %v1413, 16
        %v1416 = vand.u32 %v1412, 65535
        %v1417 = vshrl.u32 %v1412, 16
        %v1418 = vmul.u32 %v1414, %v1416
        %v1419 = vmul.u32 %v1414, %v1417
        %v1420 = vmul.u32 %v1415, %v1416
        %v1421 = vmul.u32 %v1415, %v1417
        %v1422 = vshll.u32 %v1419, 16
        %v1423 = vshrl.u32 %v1419, 16
        %v1424 = vshll.u32 %v1420, 16
        %v1425 = vshrl.u32 %v1420, 16
        %vm1426 = vc.u32 %v1418, %v1422
        %v1427 = vsel %vm1426, 1, 0
        %v1428 = vadd.s32 %v1418, %v1422
        %v1429 = vadd.s32 %v1421, %v1427
        %vm1430 = vc.u32 %v1428, %v1424
        %v1431 = vsel %vm1430, 1, 0
        %v1432 = vadd.s32 %v1428, %v1424
        %v1433 = vadd.s32 %v1429, %v1431
        %v1434 = vadd.s32 %v1433, %v1423
        %v1435 = vadd.s32 %v1434, %v1425
        %v1436 = vand.u32 %v1413, 65535
        %v1437 = vshrl.u32 %v1413, 16
        %v1438 = vand.u32 %v1408, 65535
        %v1439 = vshrl.u32 %v1408, 16
        %v1440 = vmul.u32 %v1436, %v1438
        %v1441 = vmul.u32 %v1436, %v1439
        %v1442 = vmul.u32 %v1437, %v1438
        %v1443 = vmul.u32 %v1437, %v1439
        %v1444 = vshll.u32 %v1441, 16
        %v1445 = vshrl.u32 %v1441, 16
        %v1446 = vshll.u32 %v1442, 16
        %v1447 = vshrl.u32 %v1442, 16
        %vm1448 = vc.u32 %v1440, %v1444
        %v1449 = vsel %vm1448, 1, 0
        %v1450 = vadd.s32 %v1440, %v1444
        %v1451 = vadd.s32 %v1443, %v1449
        %vm1452 = vc.u32 %v1450, %v1446
        %v1453 = vsel %vm1452, 1, 0
        %v1454 = vadd.s32 %v1450, %v1446
        %v1455 = vadd.s32 %v1451, %v1453
        %v1456 = vadd.s32 %v1455, %v1445
        %v1457 = vadd.s32 %v1456, %v1447
        %v1458 = vmul.u32 %v1413, %v1404
        %v1459 = vadd.s32 %v1435, %v1454
        %vm1460 = vc.u32 %v1435, %v1454
        %v1461 = vadd.s32 %v1457, 1
        %v1462 = vsel %vm1460, %v1461, %v1457
        %v1463 = vadd.s32 %v1458, %v1462
        %v1464 = vadd.s32 %v1463, 536870912
        %v1465 = vshrl.u32 %v1464, 30
        %v1466 = vshll.u32 %v1465, 30
        %v1467 = vsub.s32 %v1463, %v1466
        %vm1468 = vcmp.lt.s32.totalorder %v1467, 0
        %v1469 = vsub.s32 0, %v1467
        %v1470 = vsel %vm1468, %v1469, %v1467
        %v1471 = vclz %v1470
        %v1472 = vsub.s32 %v1471, 2
        %vm1473 = vcmp.gt.s32.totalorder 0, %v1472
        %v1474 = vsel %vm1473, 0, %v1472
        %v1475 = vsub.s32 32, %v1474
        %v1476 = vshll.u32 %v1467, %v1474
        %v1477 = vshrl.u32 %v1459, %v1475
        %v1478 = vor.u32 %v1476, %v1477
        %v1479 = vsub.s32 4294967266, %v1474
        %v1480 = vadd.s32 %v1479, 127
        %v1481 = vshll.u32 %v1480, 23
        %v1482 = vor.u32 4788187, %v1481
        %v1483 = vand.u32 2147483647, %v1482
        %v1485 = vcvt.s32.f32 %v1478
        %v1486 = vmul.f32 %v1485, %v1483
        %v1487 = vxor.u32 %v1486, 2147483648
        %v1488 = vsel %vm1367, %v1487, %v1486
        %v1489 = vsub.s32 4, %v1465
        %v1490 = vsel %vm1367, %v1489, %v1465
        %v1491 = vsel %vm1366, %v1053, %v1488
        %v1492 = vsel %vm1366, 0, %v1490
        %v1493 = vmul.f32 %v1491, %v1491
        %v1494 = vmul.f32 %v1493, -0.001358992
        %v1495 = vadd.f32 %v1494, 0.041655596
        %v1496 = vmul.f32 %v1493, %v1495
        %v1497 = vadd.f32 %v1496, -0.4999988
        %v1498 = vmul.f32 %v1493, %v1497
        %v1499 = vadd.f32 1.0, %v1498
        %v1500 = vmul.f32 %v1491, %v1491
        %v1501 = vmul.f32 %v1500, -0.00019511016
        %v1502 = vadd.f32 %v1501, 0.008332121
        %v1503 = vmul.f32 %v1500, %v1502
        %v1504 = vadd.f32 %v1503, -0.16666654
        %v1505 = vmul.f32 %v1500, %v1504
        %v1506 = vadd.f32 %v1505, 1.0
        %v1507 = vmul.f32 %v1506, %v1491
        %vm1508 = vweird.f32 %v1053
        %v1509 = vadd.s32 %v1492, 3
        %v1510 = vand.u32 %v1509, 3
        %vm1511 = vcmp.lt.s32.totalorder %v1510, 2
        %vm1512 = vcmp.eq.s32.totalorder %v1510, 0
        %v1513 = vxor.u32 %v1507, 2147483648
        %v1514 = vsel %vm1512, %v1499, %v1513
        %vm1515 = vcmp.eq.s32.totalorder %v1510, 2
        %v1516 = vxor.u32 %v1499, 2147483648
        %v1517 = vsel %vm1515, %v1516, %v1507
        %v1518 = vsel %vm1511, %v1514, %v1517
        %v1519 = vsel %vm1508, nan, %v1518
        %v1520 = vand.u32 2147483647, %v1054
        %vm1521 = vcmp.le.f32.partialorder %v1520, 0.7853982
        %vm1522 = vcmp.lt.s32.totalorder %v1054, 0
        %v1523 = vand.u32 %v1054, 2139095040
        %v1524 = vshrl.u32 %v1523, 23
        %v1525 = vsub.s32 %v1524, 127
        %v1526 = vand.u32 2147483647, %v1054
        %v1527 = vand.u32 %v1526, 8388607
        %v1528 = vor.u32 %v1527, 8388608
        %v1529 = vsub.s32 0, %v1528
        %v1530 = vadd.s32 %v1525, 1
        %vm1531 = vcmp.gt.s32.totalorder %v1530, 0
        %v1532 = vsel %vm1531, %v1530, 0
        %v1533 = vshrl.u32 %v1532, 5
        %v1534 = vand.u32 %v1532, 31
        %v1535 = vsub.s32 32, %v1534
        %v1536 = vshrl.u32 683565275, %v1535
        %v1537 = vshll.u32 683565275, %v1534
        %v1538 = vshrl.u32 2475754826, %v1535
        %v1539 = vor.u32 %v1537, %v1538
        %v1540 = vshll.u32 2475754826, %v1534
        %v1541 = vshrl.u32 2131351028, %v1535
        %v1542 = vor.u32 %v1540, %v1541
        %v1543 = vshll.u32 2131351028, %v1534
        %v1544 = vshrl.u32 2102212464, %v1535
        %v1545 = vor.u32 %v1543, %v1544
        %v1546 = vshll.u32 2102212464, %v1534
        %v1547 = vshrl.u32 920167782, %v1535
        %v1548 = vor.u32 %v1546, %v1547
        %v1549 = vshll.u32 920167782, %v1534
        %v1550 = vshrl.u32 1326507024, %v1535
        %v1551 = vor.u32 %v1549, %v1550
        %vm1552 = vcmp.lt.s32.totalorder %v1533, 1
        %vm1553 = vcmp.lt.s32.totalorder %v1533, 2
        %vm1554 = vcmp.lt.s32.totalorder %v1533, 3
        %vm1555 = vcmp.lt.s32.totalorder %v1533, 4
        %v1556 = vsel %vm1552, %v1536, %v1539
        %v1557 = vsel %vm1555, %v1545, 2102212464
        %v1558 = vsel %vm1554, %v1542, %v1557
        %v1559 = vsel %vm1553, %v1556, %v1558
        %v1560 = vsel %vm1552, %v1539, %v1542
        %v1561 = vsel %vm1555, %v1548, 920167782
        %v1562 = vsel %vm1554, %v1545, %v1561
        %v1563 = vsel %vm1553, %v1560, %v1562
        %v1564 = vsel %vm1552, %v1542, %v1545
        %v1565 = vsel %vm1555, %v1551, 1326507024
        %v1566 = vsel %vm1554, %v1548, %v1565
        %v1567 = vsel %vm1553, %v1564, %v1566
        %v1568 = vshll.u32 %v1528, 8
        %v1569 = vand.u32 %v1568, 65535
        %v1570 = vshrl.u32 %v1568, 16
        %v1571 = vand.u32 %v1567, 65535
        %v1572 = vshrl.u32 %v1567, 16
        %v1573 = vmul.u32 %v1569, %v1571
        %v1574 = vmul.u32 %v1569, %v1572
        %v1575 = vmul.u32 %v1570, %v1571
        %v1576 = vmul.u32 %v1570, %v1572
        %v1577 = vshll.u32 %v1574, 16
        %v1578 = vshrl.u32 %v1574, 16
        %v1579 = vshll.u32 %v1575, 16
        %v1580 = vshrl.u32 %v1575, 16
        %vm1581 = vc.u32 %v1573, %v1577
        %v1582 = vsel %vm1581, 1, 0
        %v1583 = vadd.s32 %v1573, %v1577
        %v1584 = vadd.s32 %v1576, %v1582
        %vm1585 = vc.u32 %v1583, %v1579
        %v1586 = vsel %vm1585, 1, 0
        %v1587 = vadd.s32 %v1583, %v1579
        %v1588 = vadd.s32 %v1584, %v1586
        %v1589 = vadd.s32 %v1588, %v1578
        %v1590 = vadd.s32 %v1589, %v1580
        %v1591 = vand.u32 %v1568, 65535
        %v1592 = vshrl.u32 %v1568, 16
        %v1593 = vand.u32 %v1563, 65535
        %v1594 = vshrl.u32 %v1563, 16
        %v1595 = vmul.u32 %v1591, %v1593
        %v1596 = vmul.u32 %v1591, %v1594
        %v1597 = vmul.u32 %v1592, %v1593
        %v1598 = vmul.u32 %v1592, %v1594
        %v1599 = vshll.u32 %v1596, 16
        %v1600 = vshrl.u32 %v1596, 16
        %v1601 = vshll.u32 %v1597, 16
        %v1602 = vshrl.u32 %v1597, 16
        %vm1603 = vc.u32 %v1595, %v1599
        %v1604 = vsel %vm1603, 1, 0
        %v1605 = vadd.s32 %v1595, %v1599
        %v1606 = vadd.s32 %v1598, %v1604
        %vm1607 = vc.u32 %v1605, %v1601
        %v1608 = vsel %vm1607, 1, 0
        %v1609 = vadd.s32 %v1605, %v1601
        %v1610 = vadd.s32 %v1606, %v1608
        %v1611 = vadd.s32 %v1610, %v1600
        %v1612 = vadd.s32 %v1611, %v1602
        %v1613 = vmul.u32 %v1568, %v1559
        %v1614 = vadd.s32 %v1590, %v1609
        %vm1615 = vc.u32 %v1590, %v1609
        %v1616 = vadd.s32 %v1612, 1
        %v1617 = vsel %vm1615, %v1616, %v1612
        %v1618 = vadd.s32 %v1613, %v1617
        %v1619 = vadd.s32 %v1618, 536870912
        %v1620 = vshrl.u32 %v1619, 30
        %v1621 = vshll.u32 %v1620, 30
        %v1622 = vsub.s32 %v1618, %v1621
        %vm1623 = vcmp.lt.s32.totalorder %v1622, 0
        %v1624 = vsub.s32 0, %v1622
        %v1625 = vsel %vm1623, %v1624, %v1622
        %v1626 = vclz %v1625
        %v1627 = vsub.s32 %v1626, 2
        %vm1628 = vcmp.gt.s32.totalorder 0, %v1627
        %v1629 = vsel %vm1628, 0, %v1627
        %v1630 = vsub.s32 32, %v1629
        %v1631 = vshll.u32 %v1622, %v1629
        %v1632 = vshrl.u32 %v1614, %v1630
        %v1633 = vor.u32 %v1631, %v1632
        %v1634 = vsub.s32 4294967266, %v1629
        %v1635 = vadd.s32 %v1634, 127
        %v1636 = vshll.u32 %v1635, 23
        %v1637 = vor.u32 4788187, %v1636
        %v1638 = vand.u32 2147483647, %v1637
        %v1640 = vcvt.s32.f32 %v1633
        %v1641 = vmul.f32 %v1640, %v1638
        %v1642 = vxor.u32 %v1641, 2147483648
        %v1643 = vsel %vm1522, %v1642, %v1641
        %v1644 = vsub.s32 4, %v1620
        %v1645 = vsel %vm1522, %v1644, %v1620
        %v1646 = vsel %vm1521, %v1054, %v1643
        %v1647 = vsel %vm1521, 0, %v1645
        %v1648 = vmul.f32 %v1646, %v1646
        %v1649 = vmul.f32 %v1648, -0.001358992
        %v1650 = vadd.f32 %v1649, 0.041655596
        %v1651 = vmul.f32 %v1648, %v1650
        %v1652 = vadd.f32 %v1651, -0.4999988
        %v1653 = vmul.f32 %v1648, %v1652
        %v1654 = vadd.f32 1.0, %v1653
        %v1655 = vmul.f32 %v1646, %v1646
        %v1656 = vmul.f32 %v1655, -0.00019511016
        %v1657 = vadd.f32 %v1656, 0.008332121
        %v1658 = vmul.f32 %v1655, %v1657
        %v1659 = vadd.f32 %v1658, -0.16666654
        %v1660 = vmul.f32 %v1655, %v1659
        %v1661 = vadd.f32 %v1660, 1.0
        %v1662 = vmul.f32 %v1661, %v1646
        %vm1663 = vweird.f32 %v1054
        %v1664 = vadd.s32 %v1647, 3
        %v1665 = vand.u32 %v1664, 3
        %vm1666 = vcmp.lt.s32.totalorder %v1665, 2
        %vm1667 = vcmp.eq.s32.totalorder %v1665, 0
        %v1668 = vxor.u32 %v1662, 2147483648
        %v1669 = vsel %vm1667, %v1654, %v1668
        %vm1670 = vcmp.eq.s32.totalorder %v1665, 2
        %v1671 = vxor.u32 %v1654, 2147483648
        %v1672 = vsel %vm1670, %v1671, %v1662
        %v1673 = vsel %vm1666, %v1669, %v1672
        %v1674 = vsel %vm1663, nan, %v1673
        %s1675 = scalar_lea.vmem %s3, 32
        %v1676 = vld [vmem:[%s1675] sm:$0xff]
        %v1677 = vld [vmem:[%s1675 + $0x8] sm:$0xff]
        %v1678 = vld [vmem:[%s1675 + $0x10] sm:$0xff]
        %v1679 = vld [vmem:[%s1675 + $0x18] sm:$0xff]
        %s1680 = scalar_lea.vmem %s4, 32
        %v1681 = vld [vmem:[%s1680] sm:$0xff]
        %v1682 = vld [vmem:[%s1680 + $0x8] sm:$0xff]
        %v1683 = vld [vmem:[%s1680 + $0x10] sm:$0xff]
        %v1684 = vld [vmem:[%s1680 + $0x18] sm:$0xff]
        %1686 = vset.pattern.permute.xlu0 0
        %1687 = vperm.xlu0 %1686, %v1681
        %v1688 = vpop.permute.xlu0 %1687
        %1691 = vset.pattern.permute.xlu0 0
        %1692 = vperm.xlu0 %1691, %v1682
        %v1693 = vpop.permute.xlu0 %1692
        %1696 = vset.pattern.permute.xlu0 0
        %1697 = vperm.xlu0 %1696, %v1683
        %v1698 = vpop.permute.xlu0 %1697
        %1701 = vset.pattern.permute.xlu0 0
        %1702 = vperm.xlu0 %1701, %v1684
        %v1703 = vpop.permute.xlu0 %1702
        %v1706 = vsel %vm1009, %v1676, 0
        %v1709 = vsel %vm1009, %v1677, 0
        %v1712 = vsel %vm1009, %v1678, 0
        %v1715 = vsel %vm1009, %v1679, 0
        %1717 = vmatpush.msra.mxu0 0.0
        %1718 = vmatpush.msra.mxu0 0.0
        %1719 = vmatpush.msra.mxu0 0.0
        %1720 = vmatpush.msra.mxu0 0.0
        %1721 = vmatpush.msra.mxu0 0.0
        %1722 = vmatpush.msra.mxu0 0.0
        %1723 = vmatpush.msra.mxu0 0.0
        %1724 = vmatpush.msra.mxu0 0.0
        %1725 = vmatpush.msra.mxu0 0.0
        %1726 = vmatpush.msra.mxu0 0.0
        %1727 = vmatpush.msra.mxu0 0.0
        %1728 = vmatpush.msra.mxu0 0.0
        %1729 = vmatpush.msra.mxu0 %v1674
        %1730 = vmatpush.msra.mxu0 %v1519
        %1731 = vmatpush.msra.mxu0 %v1364
        %1732 = vmatpush.msra.mxu0 %v1209
        %1733 = vmatmul.f32.gmra.mxu0 %v1706
        %v1734 = vpop.f32.mrf.mxu0
        %v1735 = vadd.f32 %v1688, %v1734
        %1736 = vmatmul.f32.gmra.mxu0 %v1709
        %v1737 = vpop.f32.mrf.mxu0
        %v1738 = vadd.f32 %v1693, %v1737
        %1739 = vmatmul.f32.gmra.mxu0 %v1712
        %v1740 = vpop.f32.mrf.mxu0
        %v1741 = vadd.f32 %v1698, %v1740
        %1742 = vmatmul.f32.gmra.mxu0 %v1715
        %v1743 = vpop.f32.mrf.mxu0
        %v1744 = vadd.f32 %v1703, %v1743
        %1745 = vdwg.mxu0
        %v1746 = vmul.f32 %v1735, 50.0
        %v1747 = vmul.f32 %v1738, 50.0
        %v1748 = vmul.f32 %v1741, 50.0
        %v1749 = vmul.f32 %v1744, 50.0
        %v1750 = vand.u32 2147483647, %v1746
        %vm1751 = vcmp.le.f32.partialorder %v1750, 0.7853982
        %vm1752 = vcmp.lt.s32.totalorder %v1746, 0
        %v1753 = vand.u32 %v1746, 2139095040
        %v1754 = vshrl.u32 %v1753, 23
        %v1755 = vsub.s32 %v1754, 127
        %v1756 = vand.u32 2147483647, %v1746
        %v1757 = vand.u32 %v1756, 8388607
        %v1758 = vor.u32 %v1757, 8388608
        %v1759 = vsub.s32 0, %v1758
        %v1760 = vadd.s32 %v1755, 1
        %vm1761 = vcmp.gt.s32.totalorder %v1760, 0
        %v1762 = vsel %vm1761, %v1760, 0
        %v1763 = vshrl.u32 %v1762, 5
        %v1764 = vand.u32 %v1762, 31
        %v1765 = vsub.s32 32, %v1764
        %v1766 = vshrl.u32 683565275, %v1765
        %v1767 = vshll.u32 683565275, %v1764
        %v1768 = vshrl.u32 2475754826, %v1765
        %v1769 = vor.u32 %v1767, %v1768
        %v1770 = vshll.u32 2475754826, %v1764
        %v1771 = vshrl.u32 2131351028, %v1765
        %v1772 = vor.u32 %v1770, %v1771
        %v1773 = vshll.u32 2131351028, %v1764
        %v1774 = vshrl.u32 2102212464, %v1765
        %v1775 = vor.u32 %v1773, %v1774
        %v1776 = vshll.u32 2102212464, %v1764
        %v1777 = vshrl.u32 920167782, %v1765
        %v1778 = vor.u32 %v1776, %v1777
        %v1779 = vshll.u32 920167782, %v1764
        %v1780 = vshrl.u32 1326507024, %v1765
        %v1781 = vor.u32 %v1779, %v1780
        %vm1782 = vcmp.lt.s32.totalorder %v1763, 1
        %vm1783 = vcmp.lt.s32.totalorder %v1763, 2
        %vm1784 = vcmp.lt.s32.totalorder %v1763, 3
        %vm1785 = vcmp.lt.s32.totalorder %v1763, 4
        %v1786 = vsel %vm1782, %v1766, %v1769
        %v1787 = vsel %vm1785, %v1775, 2102212464
        %v1788 = vsel %vm1784, %v1772, %v1787
        %v1789 = vsel %vm1783, %v1786, %v1788
        %v1790 = vsel %vm1782, %v1769, %v1772
        %v1791 = vsel %vm1785, %v1778, 920167782
        %v1792 = vsel %vm1784, %v1775, %v1791
        %v1793 = vsel %vm1783, %v1790, %v1792
        %v1794 = vsel %vm1782, %v1772, %v1775
        %v1795 = vsel %vm1785, %v1781, 1326507024
        %v1796 = vsel %vm1784, %v1778, %v1795
        %v1797 = vsel %vm1783, %v1794, %v1796
        %v1798 = vshll.u32 %v1758, 8
        %v1799 = vand.u32 %v1798, 65535
        %v1800 = vshrl.u32 %v1798, 16
        %v1801 = vand.u32 %v1797, 65535
        %v1802 = vshrl.u32 %v1797, 16
        %v1803 = vmul.u32 %v1799, %v1801
        %v1804 = vmul.u32 %v1799, %v1802
        %v1805 = vmul.u32 %v1800, %v1801
        %v1806 = vmul.u32 %v1800, %v1802
        %v1807 = vshll.u32 %v1804, 16
        %v1808 = vshrl.u32 %v1804, 16
        %v1809 = vshll.u32 %v1805, 16
        %v1810 = vshrl.u32 %v1805, 16
        %vm1811 = vc.u32 %v1803, %v1807
        %v1812 = vsel %vm1811, 1, 0
        %v1813 = vadd.s32 %v1803, %v1807
        %v1814 = vadd.s32 %v1806, %v1812
        %vm1815 = vc.u32 %v1813, %v1809
        %v1816 = vsel %vm1815, 1, 0
        %v1817 = vadd.s32 %v1813, %v1809
        %v1818 = vadd.s32 %v1814, %v1816
        %v1819 = vadd.s32 %v1818, %v1808
        %v1820 = vadd.s32 %v1819, %v1810
        %v1821 = vand.u32 %v1798, 65535
        %v1822 = vshrl.u32 %v1798, 16
        %v1823 = vand.u32 %v1793, 65535
        %v1824 = vshrl.u32 %v1793, 16
        %v1825 = vmul.u32 %v1821, %v1823
        %v1826 = vmul.u32 %v1821, %v1824
        %v1827 = vmul.u32 %v1822, %v1823
        %v1828 = vmul.u32 %v1822, %v1824
        %v1829 = vshll.u32 %v1826, 16
        %v1830 = vshrl.u32 %v1826, 16
        %v1831 = vshll.u32 %v1827, 16
        %v1832 = vshrl.u32 %v1827, 16
        %vm1833 = vc.u32 %v1825, %v1829
        %v1834 = vsel %vm1833, 1, 0
        %v1835 = vadd.s32 %v1825, %v1829
        %v1836 = vadd.s32 %v1828, %v1834
        %vm1837 = vc.u32 %v1835, %v1831
        %v1838 = vsel %vm1837, 1, 0
        %v1839 = vadd.s32 %v1835, %v1831
        %v1840 = vadd.s32 %v1836, %v1838
        %v1841 = vadd.s32 %v1840, %v1830
        %v1842 = vadd.s32 %v1841, %v1832
        %v1843 = vmul.u32 %v1798, %v1789
        %v1844 = vadd.s32 %v1820, %v1839
        %vm1845 = vc.u32 %v1820, %v1839
        %v1846 = vadd.s32 %v1842, 1
        %v1847 = vsel %vm1845, %v1846, %v1842
        %v1848 = vadd.s32 %v1843, %v1847
        %v1849 = vadd.s32 %v1848, 536870912
        %v1850 = vshrl.u32 %v1849, 30
        %v1851 = vshll.u32 %v1850, 30
        %v1852 = vsub.s32 %v1848, %v1851
        %vm1853 = vcmp.lt.s32.totalorder %v1852, 0
        %v1854 = vsub.s32 0, %v1852
        %v1855 = vsel %vm1853, %v1854, %v1852
        %v1856 = vclz %v1855
        %v1857 = vsub.s32 %v1856, 2
        %vm1858 = vcmp.gt.s32.totalorder 0, %v1857
        %v1859 = vsel %vm1858, 0, %v1857
        %v1860 = vsub.s32 32, %v1859
        %v1861 = vshll.u32 %v1852, %v1859
        %v1862 = vshrl.u32 %v1844, %v1860
        %v1863 = vor.u32 %v1861, %v1862
        %v1864 = vsub.s32 4294967266, %v1859
        %v1865 = vadd.s32 %v1864, 127
        %v1866 = vshll.u32 %v1865, 23
        %v1867 = vor.u32 4788187, %v1866
        %v1868 = vand.u32 2147483647, %v1867
        %v1870 = vcvt.s32.f32 %v1863
        %v1871 = vmul.f32 %v1870, %v1868
        %v1872 = vxor.u32 %v1871, 2147483648
        %v1873 = vsel %vm1752, %v1872, %v1871
        %v1874 = vsub.s32 4, %v1850
        %v1875 = vsel %vm1752, %v1874, %v1850
        %v1876 = vsel %vm1751, %v1746, %v1873
        %v1877 = vsel %vm1751, 0, %v1875
        %v1878 = vmul.f32 %v1876, %v1876
        %v1879 = vmul.f32 %v1878, -0.001358992
        %v1880 = vadd.f32 %v1879, 0.041655596
        %v1881 = vmul.f32 %v1878, %v1880
        %v1882 = vadd.f32 %v1881, -0.4999988
        %v1883 = vmul.f32 %v1878, %v1882
        %v1884 = vadd.f32 1.0, %v1883
        %v1885 = vmul.f32 %v1876, %v1876
        %v1886 = vmul.f32 %v1885, -0.00019511016
        %v1887 = vadd.f32 %v1886, 0.008332121
        %v1888 = vmul.f32 %v1885, %v1887
        %v1889 = vadd.f32 %v1888, -0.16666654
        %v1890 = vmul.f32 %v1885, %v1889
        %v1891 = vadd.f32 %v1890, 1.0
        %v1892 = vmul.f32 %v1891, %v1876
        %vm1893 = vweird.f32 %v1746
        %v1894 = vadd.s32 %v1877, 3
        %v1895 = vand.u32 %v1894, 3
        %vm1896 = vcmp.lt.s32.totalorder %v1895, 2
        %vm1897 = vcmp.eq.s32.totalorder %v1895, 0
        %v1898 = vxor.u32 %v1892, 2147483648
        %v1899 = vsel %vm1897, %v1884, %v1898
        %vm1900 = vcmp.eq.s32.totalorder %v1895, 2
        %v1901 = vxor.u32 %v1884, 2147483648
        %v1902 = vsel %vm1900, %v1901, %v1892
        %v1903 = vsel %vm1896, %v1899, %v1902
        %v1904 = vsel %vm1893, nan, %v1903
        %v1905 = vand.u32 2147483647, %v1747
        %vm1906 = vcmp.le.f32.partialorder %v1905, 0.7853982
        %vm1907 = vcmp.lt.s32.totalorder %v1747, 0
        %v1908 = vand.u32 %v1747, 2139095040
        %v1909 = vshrl.u32 %v1908, 23
        %v1910 = vsub.s32 %v1909, 127
        %v1911 = vand.u32 2147483647, %v1747
        %v1912 = vand.u32 %v1911, 8388607
        %v1913 = vor.u32 %v1912, 8388608
        %v1914 = vsub.s32 0, %v1913
        %v1915 = vadd.s32 %v1910, 1
        %vm1916 = vcmp.gt.s32.totalorder %v1915, 0
        %v1917 = vsel %vm1916, %v1915, 0
        %v1918 = vshrl.u32 %v1917, 5
        %v1919 = vand.u32 %v1917, 31
        %v1920 = vsub.s32 32, %v1919
        %v1921 = vshrl.u32 683565275, %v1920
        %v1922 = vshll.u32 683565275, %v1919
        %v1923 = vshrl.u32 2475754826, %v1920
        %v1924 = vor.u32 %v1922, %v1923
        %v1925 = vshll.u32 2475754826, %v1919
        %v1926 = vshrl.u32 2131351028, %v1920
        %v1927 = vor.u32 %v1925, %v1926
        %v1928 = vshll.u32 2131351028, %v1919
        %v1929 = vshrl.u32 2102212464, %v1920
        %v1930 = vor.u32 %v1928, %v1929
        %v1931 = vshll.u32 2102212464, %v1919
        %v1932 = vshrl.u32 920167782, %v1920
        %v1933 = vor.u32 %v1931, %v1932
        %v1934 = vshll.u32 920167782, %v1919
        %v1935 = vshrl.u32 1326507024, %v1920
        %v1936 = vor.u32 %v1934, %v1935
        %vm1937 = vcmp.lt.s32.totalorder %v1918, 1
        %vm1938 = vcmp.lt.s32.totalorder %v1918, 2
        %vm1939 = vcmp.lt.s32.totalorder %v1918, 3
        %vm1940 = vcmp.lt.s32.totalorder %v1918, 4
        %v1941 = vsel %vm1937, %v1921, %v1924
        %v1942 = vsel %vm1940, %v1930, 2102212464
        %v1943 = vsel %vm1939, %v1927, %v1942
        %v1944 = vsel %vm1938, %v1941, %v1943
        %v1945 = vsel %vm1937, %v1924, %v1927
        %v1946 = vsel %vm1940, %v1933, 920167782
        %v1947 = vsel %vm1939, %v1930, %v1946
        %v1948 = vsel %vm1938, %v1945, %v1947
        %v1949 = vsel %vm1937, %v1927, %v1930
        %v1950 = vsel %vm1940, %v1936, 1326507024
        %v1951 = vsel %vm1939, %v1933, %v1950
        %v1952 = vsel %vm1938, %v1949, %v1951
        %v1953 = vshll.u32 %v1913, 8
        %v1954 = vand.u32 %v1953, 65535
        %v1955 = vshrl.u32 %v1953, 16
        %v1956 = vand.u32 %v1952, 65535
        %v1957 = vshrl.u32 %v1952, 16
        %v1958 = vmul.u32 %v1954, %v1956
        %v1959 = vmul.u32 %v1954, %v1957
        %v1960 = vmul.u32 %v1955, %v1956
        %v1961 = vmul.u32 %v1955, %v1957
        %v1962 = vshll.u32 %v1959, 16
        %v1963 = vshrl.u32 %v1959, 16
        %v1964 = vshll.u32 %v1960, 16
        %v1965 = vshrl.u32 %v1960, 16
        %vm1966 = vc.u32 %v1958, %v1962
        %v1967 = vsel %vm1966, 1, 0
        %v1968 = vadd.s32 %v1958, %v1962
        %v1969 = vadd.s32 %v1961, %v1967
        %vm1970 = vc.u32 %v1968, %v1964
        %v1971 = vsel %vm1970, 1, 0
        %v1972 = vadd.s32 %v1968, %v1964
        %v1973 = vadd.s32 %v1969, %v1971
        %v1974 = vadd.s32 %v1973, %v1963
        %v1975 = vadd.s32 %v1974, %v1965
        %v1976 = vand.u32 %v1953, 65535
        %v1977 = vshrl.u32 %v1953, 16
        %v1978 = vand.u32 %v1948, 65535
        %v1979 = vshrl.u32 %v1948, 16
        %v1980 = vmul.u32 %v1976, %v1978
        %v1981 = vmul.u32 %v1976, %v1979
        %v1982 = vmul.u32 %v1977, %v1978
        %v1983 = vmul.u32 %v1977, %v1979
        %v1984 = vshll.u32 %v1981, 16
        %v1985 = vshrl.u32 %v1981, 16
        %v1986 = vshll.u32 %v1982, 16
        %v1987 = vshrl.u32 %v1982, 16
        %vm1988 = vc.u32 %v1980, %v1984
        %v1989 = vsel %vm1988, 1, 0
        %v1990 = vadd.s32 %v1980, %v1984
        %v1991 = vadd.s32 %v1983, %v1989
        %vm1992 = vc.u32 %v1990, %v1986
        %v1993 = vsel %vm1992, 1, 0
        %v1994 = vadd.s32 %v1990, %v1986
        %v1995 = vadd.s32 %v1991, %v1993
        %v1996 = vadd.s32 %v1995, %v1985
        %v1997 = vadd.s32 %v1996, %v1987
        %v1998 = vmul.u32 %v1953, %v1944
        %v1999 = vadd.s32 %v1975, %v1994
        %vm2000 = vc.u32 %v1975, %v1994
        %v2001 = vadd.s32 %v1997, 1
        %v2002 = vsel %vm2000, %v2001, %v1997
        %v2003 = vadd.s32 %v1998, %v2002
        %v2004 = vadd.s32 %v2003, 536870912
        %v2005 = vshrl.u32 %v2004, 30
        %v2006 = vshll.u32 %v2005, 30
        %v2007 = vsub.s32 %v2003, %v2006
        %vm2008 = vcmp.lt.s32.totalorder %v2007, 0
        %v2009 = vsub.s32 0, %v2007
        %v2010 = vsel %vm2008, %v2009, %v2007
        %v2011 = vclz %v2010
        %v2012 = vsub.s32 %v2011, 2
        %vm2013 = vcmp.gt.s32.totalorder 0, %v2012
        %v2014 = vsel %vm2013, 0, %v2012
        %v2015 = vsub.s32 32, %v2014
        %v2016 = vshll.u32 %v2007, %v2014
        %v2017 = vshrl.u32 %v1999, %v2015
        %v2018 = vor.u32 %v2016, %v2017
        %v2019 = vsub.s32 4294967266, %v2014
        %v2020 = vadd.s32 %v2019, 127
        %v2021 = vshll.u32 %v2020, 23
        %v2022 = vor.u32 4788187, %v2021
        %v2023 = vand.u32 2147483647, %v2022
        %v2025 = vcvt.s32.f32 %v2018
        %v2026 = vmul.f32 %v2025, %v2023
        %v2027 = vxor.u32 %v2026, 2147483648
        %v2028 = vsel %vm1907, %v2027, %v2026
        %v2029 = vsub.s32 4, %v2005
        %v2030 = vsel %vm1907, %v2029, %v2005
        %v2031 = vsel %vm1906, %v1747, %v2028
        %v2032 = vsel %vm1906, 0, %v2030
        %v2033 = vmul.f32 %v2031, %v2031
        %v2034 = vmul.f32 %v2033, -0.001358992
        %v2035 = vadd.f32 %v2034, 0.041655596
        %v2036 = vmul.f32 %v2033, %v2035
        %v2037 = vadd.f32 %v2036, -0.4999988
        %v2038 = vmul.f32 %v2033, %v2037
        %v2039 = vadd.f32 1.0, %v2038
        %v2040 = vmul.f32 %v2031, %v2031
        %v2041 = vmul.f32 %v2040, -0.00019511016
        %v2042 = vadd.f32 %v2041, 0.008332121
        %v2043 = vmul.f32 %v2040, %v2042
        %v2044 = vadd.f32 %v2043, -0.16666654
        %v2045 = vmul.f32 %v2040, %v2044
        %v2046 = vadd.f32 %v2045, 1.0
        %v2047 = vmul.f32 %v2046, %v2031
        %vm2048 = vweird.f32 %v1747
        %v2049 = vadd.s32 %v2032, 3
        %v2050 = vand.u32 %v2049, 3
        %vm2051 = vcmp.lt.s32.totalorder %v2050, 2
        %vm2052 = vcmp.eq.s32.totalorder %v2050, 0
        %v2053 = vxor.u32 %v2047, 2147483648
        %v2054 = vsel %vm2052, %v2039, %v2053
        %vm2055 = vcmp.eq.s32.totalorder %v2050, 2
        %v2056 = vxor.u32 %v2039, 2147483648
        %v2057 = vsel %vm2055, %v2056, %v2047
        %v2058 = vsel %vm2051, %v2054, %v2057
        %v2059 = vsel %vm2048, nan, %v2058
        %v2060 = vand.u32 2147483647, %v1748
        %vm2061 = vcmp.le.f32.partialorder %v2060, 0.7853982
        %vm2062 = vcmp.lt.s32.totalorder %v1748, 0
        %v2063 = vand.u32 %v1748, 2139095040
        %v2064 = vshrl.u32 %v2063, 23
        %v2065 = vsub.s32 %v2064, 127
        %v2066 = vand.u32 2147483647, %v1748
        %v2067 = vand.u32 %v2066, 8388607
        %v2068 = vor.u32 %v2067, 8388608
        %v2069 = vsub.s32 0, %v2068
        %v2070 = vadd.s32 %v2065, 1
        %vm2071 = vcmp.gt.s32.totalorder %v2070, 0
        %v2072 = vsel %vm2071, %v2070, 0
        %v2073 = vshrl.u32 %v2072, 5
        %v2074 = vand.u32 %v2072, 31
        %v2075 = vsub.s32 32, %v2074
        %v2076 = vshrl.u32 683565275, %v2075
        %v2077 = vshll.u32 683565275, %v2074
        %v2078 = vshrl.u32 2475754826, %v2075
        %v2079 = vor.u32 %v2077, %v2078
        %v2080 = vshll.u32 2475754826, %v2074
        %v2081 = vshrl.u32 2131351028, %v2075
        %v2082 = vor.u32 %v2080, %v2081
        %v2083 = vshll.u32 2131351028, %v2074
        %v2084 = vshrl.u32 2102212464, %v2075
        %v2085 = vor.u32 %v2083, %v2084
        %v2086 = vshll.u32 2102212464, %v2074
        %v2087 = vshrl.u32 920167782, %v2075
        %v2088 = vor.u32 %v2086, %v2087
        %v2089 = vshll.u32 920167782, %v2074
        %v2090 = vshrl.u32 1326507024, %v2075
        %v2091 = vor.u32 %v2089, %v2090
        %vm2092 = vcmp.lt.s32.totalorder %v2073, 1
        %vm2093 = vcmp.lt.s32.totalorder %v2073, 2
        %vm2094 = vcmp.lt.s32.totalorder %v2073, 3
        %vm2095 = vcmp.lt.s32.totalorder %v2073, 4
        %v2096 = vsel %vm2092, %v2076, %v2079
        %v2097 = vsel %vm2095, %v2085, 2102212464
        %v2098 = vsel %vm2094, %v2082, %v2097
        %v2099 = vsel %vm2093, %v2096, %v2098
        %v2100 = vsel %vm2092, %v2079, %v2082
        %v2101 = vsel %vm2095, %v2088, 920167782
        %v2102 = vsel %vm2094, %v2085, %v2101
        %v2103 = vsel %vm2093, %v2100, %v2102
        %v2104 = vsel %vm2092, %v2082, %v2085
        %v2105 = vsel %vm2095, %v2091, 1326507024
        %v2106 = vsel %vm2094, %v2088, %v2105
        %v2107 = vsel %vm2093, %v2104, %v2106
        %v2108 = vshll.u32 %v2068, 8
        %v2109 = vand.u32 %v2108, 65535
        %v2110 = vshrl.u32 %v2108, 16
        %v2111 = vand.u32 %v2107, 65535
        %v2112 = vshrl.u32 %v2107, 16
        %v2113 = vmul.u32 %v2109, %v2111
        %v2114 = vmul.u32 %v2109, %v2112
        %v2115 = vmul.u32 %v2110, %v2111
        %v2116 = vmul.u32 %v2110, %v2112
        %v2117 = vshll.u32 %v2114, 16
        %v2118 = vshrl.u32 %v2114, 16
        %v2119 = vshll.u32 %v2115, 16
        %v2120 = vshrl.u32 %v2115, 16
        %vm2121 = vc.u32 %v2113, %v2117
        %v2122 = vsel %vm2121, 1, 0
        %v2123 = vadd.s32 %v2113, %v2117
        %v2124 = vadd.s32 %v2116, %v2122
        %vm2125 = vc.u32 %v2123, %v2119
        %v2126 = vsel %vm2125, 1, 0
        %v2127 = vadd.s32 %v2123, %v2119
        %v2128 = vadd.s32 %v2124, %v2126
        %v2129 = vadd.s32 %v2128, %v2118
        %v2130 = vadd.s32 %v2129, %v2120
        %v2131 = vand.u32 %v2108, 65535
        %v2132 = vshrl.u32 %v2108, 16
        %v2133 = vand.u32 %v2103, 65535
        %v2134 = vshrl.u32 %v2103, 16
        %v2135 = vmul.u32 %v2131, %v2133
        %v2136 = vmul.u32 %v2131, %v2134
        %v2137 = vmul.u32 %v2132, %v2133
        %v2138 = vmul.u32 %v2132, %v2134
        %v2139 = vshll.u32 %v2136, 16
        %v2140 = vshrl.u32 %v2136, 16
        %v2141 = vshll.u32 %v2137, 16
        %v2142 = vshrl.u32 %v2137, 16
        %vm2143 = vc.u32 %v2135, %v2139
        %v2144 = vsel %vm2143, 1, 0
        %v2145 = vadd.s32 %v2135, %v2139
        %v2146 = vadd.s32 %v2138, %v2144
        %vm2147 = vc.u32 %v2145, %v2141
        %v2148 = vsel %vm2147, 1, 0
        %v2149 = vadd.s32 %v2145, %v2141
        %v2150 = vadd.s32 %v2146, %v2148
        %v2151 = vadd.s32 %v2150, %v2140
        %v2152 = vadd.s32 %v2151, %v2142
        %v2153 = vmul.u32 %v2108, %v2099
        %v2154 = vadd.s32 %v2130, %v2149
        %vm2155 = vc.u32 %v2130, %v2149
        %v2156 = vadd.s32 %v2152, 1
        %v2157 = vsel %vm2155, %v2156, %v2152
        %v2158 = vadd.s32 %v2153, %v2157
        %v2159 = vadd.s32 %v2158, 536870912
        %v2160 = vshrl.u32 %v2159, 30
        %v2161 = vshll.u32 %v2160, 30
        %v2162 = vsub.s32 %v2158, %v2161
        %vm2163 = vcmp.lt.s32.totalorder %v2162, 0
        %v2164 = vsub.s32 0, %v2162
        %v2165 = vsel %vm2163, %v2164, %v2162
        %v2166 = vclz %v2165
        %v2167 = vsub.s32 %v2166, 2
        %vm2168 = vcmp.gt.s32.totalorder 0, %v2167
        %v2169 = vsel %vm2168, 0, %v2167
        %v2170 = vsub.s32 32, %v2169
        %v2171 = vshll.u32 %v2162, %v2169
        %v2172 = vshrl.u32 %v2154, %v2170
        %v2173 = vor.u32 %v2171, %v2172
        %v2174 = vsub.s32 4294967266, %v2169
        %v2175 = vadd.s32 %v2174, 127
        %v2176 = vshll.u32 %v2175, 23
        %v2177 = vor.u32 4788187, %v2176
        %v2178 = vand.u32 2147483647, %v2177
        %v2180 = vcvt.s32.f32 %v2173
        %v2181 = vmul.f32 %v2180, %v2178
        %v2182 = vxor.u32 %v2181, 2147483648
        %v2183 = vsel %vm2062, %v2182, %v2181
        %v2184 = vsub.s32 4, %v2160
        %v2185 = vsel %vm2062, %v2184, %v2160
        %v2186 = vsel %vm2061, %v1748, %v2183
        %v2187 = vsel %vm2061, 0, %v2185
        %v2188 = vmul.f32 %v2186, %v2186
        %v2189 = vmul.f32 %v2188, -0.001358992
        %v2190 = vadd.f32 %v2189, 0.041655596
        %v2191 = vmul.f32 %v2188, %v2190
        %v2192 = vadd.f32 %v2191, -0.4999988
        %v2193 = vmul.f32 %v2188, %v2192
        %v2194 = vadd.f32 1.0, %v2193
        %v2195 = vmul.f32 %v2186, %v2186
        %v2196 = vmul.f32 %v2195, -0.00019511016
        %v2197 = vadd.f32 %v2196, 0.008332121
        %v2198 = vmul.f32 %v2195, %v2197
        %v2199 = vadd.f32 %v2198, -0.16666654
        %v2200 = vmul.f32 %v2195, %v2199
        %v2201 = vadd.f32 %v2200, 1.0
        %v2202 = vmul.f32 %v2201, %v2186
        %vm2203 = vweird.f32 %v1748
        %v2204 = vadd.s32 %v2187, 3
        %v2205 = vand.u32 %v2204, 3
        %vm2206 = vcmp.lt.s32.totalorder %v2205, 2
        %vm2207 = vcmp.eq.s32.totalorder %v2205, 0
        %v2208 = vxor.u32 %v2202, 2147483648
        %v2209 = vsel %vm2207, %v2194, %v2208
        %vm2210 = vcmp.eq.s32.totalorder %v2205, 2
        %v2211 = vxor.u32 %v2194, 2147483648
        %v2212 = vsel %vm2210, %v2211, %v2202
        %v2213 = vsel %vm2206, %v2209, %v2212
        %v2214 = vsel %vm2203, nan, %v2213
        %v2215 = vand.u32 2147483647, %v1749
        %vm2216 = vcmp.le.f32.partialorder %v2215, 0.7853982
        %vm2217 = vcmp.lt.s32.totalorder %v1749, 0
        %v2218 = vand.u32 %v1749, 2139095040
        %v2219 = vshrl.u32 %v2218, 23
        %v2220 = vsub.s32 %v2219, 127
        %v2221 = vand.u32 2147483647, %v1749
        %v2222 = vand.u32 %v2221, 8388607
        %v2223 = vor.u32 %v2222, 8388608
        %v2224 = vsub.s32 0, %v2223
        %v2225 = vadd.s32 %v2220, 1
        %vm2226 = vcmp.gt.s32.totalorder %v2225, 0
        %v2227 = vsel %vm2226, %v2225, 0
        %v2228 = vshrl.u32 %v2227, 5
        %v2229 = vand.u32 %v2227, 31
        %v2230 = vsub.s32 32, %v2229
        %v2231 = vshrl.u32 683565275, %v2230
        %v2232 = vshll.u32 683565275, %v2229
        %v2233 = vshrl.u32 2475754826, %v2230
        %v2234 = vor.u32 %v2232, %v2233
        %v2235 = vshll.u32 2475754826, %v2229
        %v2236 = vshrl.u32 2131351028, %v2230
        %v2237 = vor.u32 %v2235, %v2236
        %v2238 = vshll.u32 2131351028, %v2229
        %v2239 = vshrl.u32 2102212464, %v2230
        %v2240 = vor.u32 %v2238, %v2239
        %v2241 = vshll.u32 2102212464, %v2229
        %v2242 = vshrl.u32 920167782, %v2230
        %v2243 = vor.u32 %v2241, %v2242
        %v2244 = vshll.u32 920167782, %v2229
        %v2245 = vshrl.u32 1326507024, %v2230
        %v2246 = vor.u32 %v2244, %v2245
        %vm2247 = vcmp.lt.s32.totalorder %v2228, 1
        %vm2248 = vcmp.lt.s32.totalorder %v2228, 2
        %vm2249 = vcmp.lt.s32.totalorder %v2228, 3
        %vm2250 = vcmp.lt.s32.totalorder %v2228, 4
        %v2251 = vsel %vm2247, %v2231, %v2234
        %v2252 = vsel %vm2250, %v2240, 2102212464
        %v2253 = vsel %vm2249, %v2237, %v2252
        %v2254 = vsel %vm2248, %v2251, %v2253
        %v2255 = vsel %vm2247, %v2234, %v2237
        %v2256 = vsel %vm2250, %v2243, 920167782
        %v2257 = vsel %vm2249, %v2240, %v2256
        %v2258 = vsel %vm2248, %v2255, %v2257
        %v2259 = vsel %vm2247, %v2237, %v2240
        %v2260 = vsel %vm2250, %v2246, 1326507024
        %v2261 = vsel %vm2249, %v2243, %v2260
        %v2262 = vsel %vm2248, %v2259, %v2261
        %v2263 = vshll.u32 %v2223, 8
        %v2264 = vand.u32 %v2263, 65535
        %v2265 = vshrl.u32 %v2263, 16
        %v2266 = vand.u32 %v2262, 65535
        %v2267 = vshrl.u32 %v2262, 16
        %v2268 = vmul.u32 %v2264, %v2266
        %v2269 = vmul.u32 %v2264, %v2267
        %v2270 = vmul.u32 %v2265, %v2266
        %v2271 = vmul.u32 %v2265, %v2267
        %v2272 = vshll.u32 %v2269, 16
        %v2273 = vshrl.u32 %v2269, 16
        %v2274 = vshll.u32 %v2270, 16
        %v2275 = vshrl.u32 %v2270, 16
        %vm2276 = vc.u32 %v2268, %v2272
        %v2277 = vsel %vm2276, 1, 0
        %v2278 = vadd.s32 %v2268, %v2272
        %v2279 = vadd.s32 %v2271, %v2277
        %vm2280 = vc.u32 %v2278, %v2274
        %v2281 = vsel %vm2280, 1, 0
        %v2282 = vadd.s32 %v2278, %v2274
        %v2283 = vadd.s32 %v2279, %v2281
        %v2284 = vadd.s32 %v2283, %v2273
        %v2285 = vadd.s32 %v2284, %v2275
        %v2286 = vand.u32 %v2263, 65535
        %v2287 = vshrl.u32 %v2263, 16
        %v2288 = vand.u32 %v2258, 65535
        %v2289 = vshrl.u32 %v2258, 16
        %v2290 = vmul.u32 %v2286, %v2288
        %v2291 = vmul.u32 %v2286, %v2289
        %v2292 = vmul.u32 %v2287, %v2288
        %v2293 = vmul.u32 %v2287, %v2289
        %v2294 = vshll.u32 %v2291, 16
        %v2295 = vshrl.u32 %v2291, 16
        %v2296 = vshll.u32 %v2292, 16
        %v2297 = vshrl.u32 %v2292, 16
        %vm2298 = vc.u32 %v2290, %v2294
        %v2299 = vsel %vm2298, 1, 0
        %v2300 = vadd.s32 %v2290, %v2294
        %v2301 = vadd.s32 %v2293, %v2299
        %vm2302 = vc.u32 %v2300, %v2296
        %v2303 = vsel %vm2302, 1, 0
        %v2304 = vadd.s32 %v2300, %v2296
        %v2305 = vadd.s32 %v2301, %v2303
        %v2306 = vadd.s32 %v2305, %v2295
        %v2307 = vadd.s32 %v2306, %v2297
        %v2308 = vmul.u32 %v2263, %v2254
        %v2309 = vadd.s32 %v2285, %v2304
        %vm2310 = vc.u32 %v2285, %v2304
        %v2311 = vadd.s32 %v2307, 1
        %v2312 = vsel %vm2310, %v2311, %v2307
        %v2313 = vadd.s32 %v2308, %v2312
        %v2314 = vadd.s32 %v2313, 536870912
        %v2315 = vshrl.u32 %v2314, 30
        %v2316 = vshll.u32 %v2315, 30
        %v2317 = vsub.s32 %v2313, %v2316
        %vm2318 = vcmp.lt.s32.totalorder %v2317, 0
        %v2319 = vsub.s32 0, %v2317
        %v2320 = vsel %vm2318, %v2319, %v2317
        %v2321 = vclz %v2320
        %v2322 = vsub.s32 %v2321, 2
        %vm2323 = vcmp.gt.s32.totalorder 0, %v2322
        %v2324 = vsel %vm2323, 0, %v2322
        %v2325 = vsub.s32 32, %v2324
        %v2326 = vshll.u32 %v2317, %v2324
        %v2327 = vshrl.u32 %v2309, %v2325
        %v2328 = vor.u32 %v2326, %v2327
        %v2329 = vsub.s32 4294967266, %v2324
        %v2330 = vadd.s32 %v2329, 127
        %v2331 = vshll.u32 %v2330, 23
        %v2332 = vor.u32 4788187, %v2331
        %v2333 = vand.u32 2147483647, %v2332
        %v2335 = vcvt.s32.f32 %v2328
        %v2336 = vmul.f32 %v2335, %v2333
        %v2337 = vxor.u32 %v2336, 2147483648
        %v2338 = vsel %vm2217, %v2337, %v2336
        %v2339 = vsub.s32 4, %v2315
        %v2340 = vsel %vm2217, %v2339, %v2315
        %v2341 = vsel %vm2216, %v1749, %v2338
        %v2342 = vsel %vm2216, 0, %v2340
        %v2343 = vmul.f32 %v2341, %v2341
        %v2344 = vmul.f32 %v2343, -0.001358992
        %v2345 = vadd.f32 %v2344, 0.041655596
        %v2346 = vmul.f32 %v2343, %v2345
        %v2347 = vadd.f32 %v2346, -0.4999988
        %v2348 = vmul.f32 %v2343, %v2347
        %v2349 = vadd.f32 1.0, %v2348
        %v2350 = vmul.f32 %v2341, %v2341
        %v2351 = vmul.f32 %v2350, -0.00019511016
        %v2352 = vadd.f32 %v2351, 0.008332121
        %v2353 = vmul.f32 %v2350, %v2352
        %v2354 = vadd.f32 %v2353, -0.16666654
        %v2355 = vmul.f32 %v2350, %v2354
        %v2356 = vadd.f32 %v2355, 1.0
        %v2357 = vmul.f32 %v2356, %v2341
        %vm2358 = vweird.f32 %v1749
        %v2359 = vadd.s32 %v2342, 3
        %v2360 = vand.u32 %v2359, 3
        %vm2361 = vcmp.lt.s32.totalorder %v2360, 2
        %vm2362 = vcmp.eq.s32.totalorder %v2360, 0
        %v2363 = vxor.u32 %v2357, 2147483648
        %v2364 = vsel %vm2362, %v2349, %v2363
        %vm2365 = vcmp.eq.s32.totalorder %v2360, 2
        %v2366 = vxor.u32 %v2349, 2147483648
        %v2367 = vsel %vm2365, %v2366, %v2357
        %v2368 = vsel %vm2361, %v2364, %v2367
        %v2369 = vsel %vm2358, nan, %v2368
        %s2370 = scalar_lea.vmem %s3, 64
        %v2371 = vld [vmem:[%s2370] sm:$0xff]
        %v2372 = vld [vmem:[%s2370 + $0x8] sm:$0xff]
        %v2373 = vld [vmem:[%s2370 + $0x10] sm:$0xff]
        %v2374 = vld [vmem:[%s2370 + $0x18] sm:$0xff]
        %s2375 = scalar_lea.vmem %s4, 64
        %v2376 = vld [vmem:[%s2375] sm:$0xff]
        %v2377 = vld [vmem:[%s2375 + $0x8] sm:$0xff]
        %v2378 = vld [vmem:[%s2375 + $0x10] sm:$0xff]
        %v2379 = vld [vmem:[%s2375 + $0x18] sm:$0xff]
        %2381 = vset.pattern.permute.xlu0 0
        %2382 = vperm.xlu0 %2381, %v2376
        %v2383 = vpop.permute.xlu0 %2382
        %2386 = vset.pattern.permute.xlu0 0
        %2387 = vperm.xlu0 %2386, %v2377
        %v2388 = vpop.permute.xlu0 %2387
        %2391 = vset.pattern.permute.xlu0 0
        %2392 = vperm.xlu0 %2391, %v2378
        %v2393 = vpop.permute.xlu0 %2392
        %2396 = vset.pattern.permute.xlu0 0
        %2397 = vperm.xlu0 %2396, %v2379
        %v2398 = vpop.permute.xlu0 %2397
        %v2401 = vsel %vm1009, %v2371, 0
        %v2404 = vsel %vm1009, %v2372, 0
        %v2407 = vsel %vm1009, %v2373, 0
        %v2410 = vsel %vm1009, %v2374, 0
        %2412 = vmatpush.msra.mxu0 0.0
        %2413 = vmatpush.msra.mxu0 0.0
        %2414 = vmatpush.msra.mxu0 0.0
        %2415 = vmatpush.msra.mxu0 0.0
        %2416 = vmatpush.msra.mxu0 0.0
        %2417 = vmatpush.msra.mxu0 0.0
        %2418 = vmatpush.msra.mxu0 0.0
        %2419 = vmatpush.msra.mxu0 0.0
        %2420 = vmatpush.msra.mxu0 0.0
        %2421 = vmatpush.msra.mxu0 0.0
        %2422 = vmatpush.msra.mxu0 0.0
        %2423 = vmatpush.msra.mxu0 0.0
        %2424 = vmatpush.msra.mxu0 %v2369
        %2425 = vmatpush.msra.mxu0 %v2214
        %2426 = vmatpush.msra.mxu0 %v2059
        %2427 = vmatpush.msra.mxu0 %v1904
        %2428 = vmatmul.f32.gmra.mxu0 %v2401
        %v2429 = vpop.f32.mrf.mxu0
        %v2430 = vadd.f32 %v2383, %v2429
        %2431 = vmatmul.f32.gmra.mxu0 %v2404
        %v2432 = vpop.f32.mrf.mxu0
        %v2433 = vadd.f32 %v2388, %v2432
        %2434 = vmatmul.f32.gmra.mxu0 %v2407
        %v2435 = vpop.f32.mrf.mxu0
        %v2436 = vadd.f32 %v2393, %v2435
        %2437 = vmatmul.f32.gmra.mxu0 %v2410
        %v2438 = vpop.f32.mrf.mxu0
        %v2439 = vadd.f32 %v2398, %v2438
        %2440 = vdwg.mxu0
        %v2441 = vmul.f32 %v2430, 50.0
        %v2442 = vmul.f32 %v2433, 50.0
        %v2443 = vmul.f32 %v2436, 50.0
        %v2444 = vmul.f32 %v2439, 50.0
        %v2445 = vand.u32 2147483647, %v2441
        %vm2446 = vcmp.le.f32.partialorder %v2445, 0.7853982
        %vm2447 = vcmp.lt.s32.totalorder %v2441, 0
        %v2448 = vand.u32 %v2441, 2139095040
        %v2449 = vshrl.u32 %v2448, 23
        %v2450 = vsub.s32 %v2449, 127
        %v2451 = vand.u32 2147483647, %v2441
        %v2452 = vand.u32 %v2451, 8388607
        %v2453 = vor.u32 %v2452, 8388608
        %v2454 = vsub.s32 0, %v2453
        %v2455 = vadd.s32 %v2450, 1
        %vm2456 = vcmp.gt.s32.totalorder %v2455, 0
        %v2457 = vsel %vm2456, %v2455, 0
        %v2458 = vshrl.u32 %v2457, 5
        %v2459 = vand.u32 %v2457, 31
        %v2460 = vsub.s32 32, %v2459
        %v2461 = vshrl.u32 683565275, %v2460
        %v2462 = vshll.u32 683565275, %v2459
        %v2463 = vshrl.u32 2475754826, %v2460
        %v2464 = vor.u32 %v2462, %v2463
        %v2465 = vshll.u32 2475754826, %v2459
        %v2466 = vshrl.u32 2131351028, %v2460
        %v2467 = vor.u32 %v2465, %v2466
        %v2468 = vshll.u32 2131351028, %v2459
        %v2469 = vshrl.u32 2102212464, %v2460
        %v2470 = vor.u32 %v2468, %v2469
        %v2471 = vshll.u32 2102212464, %v2459
        %v2472 = vshrl.u32 920167782, %v2460
        %v2473 = vor.u32 %v2471, %v2472
        %v2474 = vshll.u32 920167782, %v2459
        %v2475 = vshrl.u32 1326507024, %v2460
        %v2476 = vor.u32 %v2474, %v2475
        %vm2477 = vcmp.lt.s32.totalorder %v2458, 1
        %vm2478 = vcmp.lt.s32.totalorder %v2458, 2
        %vm2479 = vcmp.lt.s32.totalorder %v2458, 3
        %vm2480 = vcmp.lt.s32.totalorder %v2458, 4
        %v2481 = vsel %vm2477, %v2461, %v2464
        %v2482 = vsel %vm2480, %v2470, 2102212464
        %v2483 = vsel %vm2479, %v2467, %v2482
        %v2484 = vsel %vm2478, %v2481, %v2483
        %v2485 = vsel %vm2477, %v2464, %v2467
        %v2486 = vsel %vm2480, %v2473, 920167782
        %v2487 = vsel %vm2479, %v2470, %v2486
        %v2488 = vsel %vm2478, %v2485, %v2487
        %v2489 = vsel %vm2477, %v2467, %v2470
        %v2490 = vsel %vm2480, %v2476, 1326507024
        %v2491 = vsel %vm2479, %v2473, %v2490
        %v2492 = vsel %vm2478, %v2489, %v2491
        %v2493 = vshll.u32 %v2453, 8
        %v2494 = vand.u32 %v2493, 65535
        %v2495 = vshrl.u32 %v2493, 16
        %v2496 = vand.u32 %v2492, 65535
        %v2497 = vshrl.u32 %v2492, 16
        %v2498 = vmul.u32 %v2494, %v2496
        %v2499 = vmul.u32 %v2494, %v2497
        %v2500 = vmul.u32 %v2495, %v2496
        %v2501 = vmul.u32 %v2495, %v2497
        %v2502 = vshll.u32 %v2499, 16
        %v2503 = vshrl.u32 %v2499, 16
        %v2504 = vshll.u32 %v2500, 16
        %v2505 = vshrl.u32 %v2500, 16
        %vm2506 = vc.u32 %v2498, %v2502
        %v2507 = vsel %vm2506, 1, 0
        %v2508 = vadd.s32 %v2498, %v2502
        %v2509 = vadd.s32 %v2501, %v2507
        %vm2510 = vc.u32 %v2508, %v2504
        %v2511 = vsel %vm2510, 1, 0
        %v2512 = vadd.s32 %v2508, %v2504
        %v2513 = vadd.s32 %v2509, %v2511
        %v2514 = vadd.s32 %v2513, %v2503
        %v2515 = vadd.s32 %v2514, %v2505
        %v2516 = vand.u32 %v2493, 65535
        %v2517 = vshrl.u32 %v2493, 16
        %v2518 = vand.u32 %v2488, 65535
        %v2519 = vshrl.u32 %v2488, 16
        %v2520 = vmul.u32 %v2516, %v2518
        %v2521 = vmul.u32 %v2516, %v2519
        %v2522 = vmul.u32 %v2517, %v2518
        %v2523 = vmul.u32 %v2517, %v2519
        %v2524 = vshll.u32 %v2521, 16
        %v2525 = vshrl.u32 %v2521, 16
        %v2526 = vshll.u32 %v2522, 16
        %v2527 = vshrl.u32 %v2522, 16
        %vm2528 = vc.u32 %v2520, %v2524
        %v2529 = vsel %vm2528, 1, 0
        %v2530 = vadd.s32 %v2520, %v2524
        %v2531 = vadd.s32 %v2523, %v2529
        %vm2532 = vc.u32 %v2530, %v2526
        %v2533 = vsel %vm2532, 1, 0
        %v2534 = vadd.s32 %v2530, %v2526
        %v2535 = vadd.s32 %v2531, %v2533
        %v2536 = vadd.s32 %v2535, %v2525
        %v2537 = vadd.s32 %v2536, %v2527
        %v2538 = vmul.u32 %v2493, %v2484
        %v2539 = vadd.s32 %v2515, %v2534
        %vm2540 = vc.u32 %v2515, %v2534
        %v2541 = vadd.s32 %v2537, 1
        %v2542 = vsel %vm2540, %v2541, %v2537
        %v2543 = vadd.s32 %v2538, %v2542
        %v2544 = vadd.s32 %v2543, 536870912
        %v2545 = vshrl.u32 %v2544, 30
        %v2546 = vshll.u32 %v2545, 30
        %v2547 = vsub.s32 %v2543, %v2546
        %vm2548 = vcmp.lt.s32.totalorder %v2547, 0
        %v2549 = vsub.s32 0, %v2547
        %v2550 = vsel %vm2548, %v2549, %v2547
        %v2551 = vclz %v2550
        %v2552 = vsub.s32 %v2551, 2
        %vm2553 = vcmp.gt.s32.totalorder 0, %v2552
        %v2554 = vsel %vm2553, 0, %v2552
        %v2555 = vsub.s32 32, %v2554
        %v2556 = vshll.u32 %v2547, %v2554
        %v2557 = vshrl.u32 %v2539, %v2555
        %v2558 = vor.u32 %v2556, %v2557
        %v2559 = vsub.s32 4294967266, %v2554
        %v2560 = vadd.s32 %v2559, 127
        %v2561 = vshll.u32 %v2560, 23
        %v2562 = vor.u32 4788187, %v2561
        %v2563 = vand.u32 2147483647, %v2562
        %v2565 = vcvt.s32.f32 %v2558
        %v2566 = vmul.f32 %v2565, %v2563
        %v2567 = vxor.u32 %v2566, 2147483648
        %v2568 = vsel %vm2447, %v2567, %v2566
        %v2569 = vsub.s32 4, %v2545
        %v2570 = vsel %vm2447, %v2569, %v2545
        %v2571 = vsel %vm2446, %v2441, %v2568
        %v2572 = vsel %vm2446, 0, %v2570
        %v2573 = vmul.f32 %v2571, %v2571
        %v2574 = vmul.f32 %v2573, -0.001358992
        %v2575 = vadd.f32 %v2574, 0.041655596
        %v2576 = vmul.f32 %v2573, %v2575
        %v2577 = vadd.f32 %v2576, -0.4999988
        %v2578 = vmul.f32 %v2573, %v2577
        %v2579 = vadd.f32 1.0, %v2578
        %v2580 = vmul.f32 %v2571, %v2571
        %v2581 = vmul.f32 %v2580, -0.00019511016
        %v2582 = vadd.f32 %v2581, 0.008332121
        %v2583 = vmul.f32 %v2580, %v2582
        %v2584 = vadd.f32 %v2583, -0.16666654
        %v2585 = vmul.f32 %v2580, %v2584
        %v2586 = vadd.f32 %v2585, 1.0
        %v2587 = vmul.f32 %v2586, %v2571
        %vm2588 = vweird.f32 %v2441
        %v2589 = vadd.s32 %v2572, 3
        %v2590 = vand.u32 %v2589, 3
        %vm2591 = vcmp.lt.s32.totalorder %v2590, 2
        %vm2592 = vcmp.eq.s32.totalorder %v2590, 0
        %v2593 = vxor.u32 %v2587, 2147483648
        %v2594 = vsel %vm2592, %v2579, %v2593
        %vm2595 = vcmp.eq.s32.totalorder %v2590, 2
        %v2596 = vxor.u32 %v2579, 2147483648
        %v2597 = vsel %vm2595, %v2596, %v2587
        %v2598 = vsel %vm2591, %v2594, %v2597
        %v2599 = vsel %vm2588, nan, %v2598
        %v2600 = vand.u32 2147483647, %v2442
        %vm2601 = vcmp.le.f32.partialorder %v2600, 0.7853982
        %vm2602 = vcmp.lt.s32.totalorder %v2442, 0
        %v2603 = vand.u32 %v2442, 2139095040
        %v2604 = vshrl.u32 %v2603, 23
        %v2605 = vsub.s32 %v2604, 127
        %v2606 = vand.u32 2147483647, %v2442
        %v2607 = vand.u32 %v2606, 8388607
        %v2608 = vor.u32 %v2607, 8388608
        %v2609 = vsub.s32 0, %v2608
        %v2610 = vadd.s32 %v2605, 1
        %vm2611 = vcmp.gt.s32.totalorder %v2610, 0
        %v2612 = vsel %vm2611, %v2610, 0
        %v2613 = vshrl.u32 %v2612, 5
        %v2614 = vand.u32 %v2612, 31
        %v2615 = vsub.s32 32, %v2614
        %v2616 = vshrl.u32 683565275, %v2615
        %v2617 = vshll.u32 683565275, %v2614
        %v2618 = vshrl.u32 2475754826, %v2615
        %v2619 = vor.u32 %v2617, %v2618
        %v2620 = vshll.u32 2475754826, %v2614
        %v2621 = vshrl.u32 2131351028, %v2615
        %v2622 = vor.u32 %v2620, %v2621
        %v2623 = vshll.u32 2131351028, %v2614
        %v2624 = vshrl.u32 2102212464, %v2615
        %v2625 = vor.u32 %v2623, %v2624
        %v2626 = vshll.u32 2102212464, %v2614
        %v2627 = vshrl.u32 920167782, %v2615
        %v2628 = vor.u32 %v2626, %v2627
        %v2629 = vshll.u32 920167782, %v2614
        %v2630 = vshrl.u32 1326507024, %v2615
        %v2631 = vor.u32 %v2629, %v2630
        %vm2632 = vcmp.lt.s32.totalorder %v2613, 1
        %vm2633 = vcmp.lt.s32.totalorder %v2613, 2
        %vm2634 = vcmp.lt.s32.totalorder %v2613, 3
        %vm2635 = vcmp.lt.s32.totalorder %v2613, 4
        %v2636 = vsel %vm2632, %v2616, %v2619
        %v2637 = vsel %vm2635, %v2625, 2102212464
        %v2638 = vsel %vm2634, %v2622, %v2637
        %v2639 = vsel %vm2633, %v2636, %v2638
        %v2640 = vsel %vm2632, %v2619, %v2622
        %v2641 = vsel %vm2635, %v2628, 920167782
        %v2642 = vsel %vm2634, %v2625, %v2641
        %v2643 = vsel %vm2633, %v2640, %v2642
        %v2644 = vsel %vm2632, %v2622, %v2625
        %v2645 = vsel %vm2635, %v2631, 1326507024
        %v2646 = vsel %vm2634, %v2628, %v2645
        %v2647 = vsel %vm2633, %v2644, %v2646
        %v2648 = vshll.u32 %v2608, 8
        %v2649 = vand.u32 %v2648, 65535
        %v2650 = vshrl.u32 %v2648, 16
        %v2651 = vand.u32 %v2647, 65535
        %v2652 = vshrl.u32 %v2647, 16
        %v2653 = vmul.u32 %v2649, %v2651
        %v2654 = vmul.u32 %v2649, %v2652
        %v2655 = vmul.u32 %v2650, %v2651
        %v2656 = vmul.u32 %v2650, %v2652
        %v2657 = vshll.u32 %v2654, 16
        %v2658 = vshrl.u32 %v2654, 16
        %v2659 = vshll.u32 %v2655, 16
        %v2660 = vshrl.u32 %v2655, 16
        %vm2661 = vc.u32 %v2653, %v2657
        %v2662 = vsel %vm2661, 1, 0
        %v2663 = vadd.s32 %v2653, %v2657
        %v2664 = vadd.s32 %v2656, %v2662
        %vm2665 = vc.u32 %v2663, %v2659
        %v2666 = vsel %vm2665, 1, 0
        %v2667 = vadd.s32 %v2663, %v2659
        %v2668 = vadd.s32 %v2664, %v2666
        %v2669 = vadd.s32 %v2668, %v2658
        %v2670 = vadd.s32 %v2669, %v2660
        %v2671 = vand.u32 %v2648, 65535
        %v2672 = vshrl.u32 %v2648, 16
        %v2673 = vand.u32 %v2643, 65535
        %v2674 = vshrl.u32 %v2643, 16
        %v2675 = vmul.u32 %v2671, %v2673
        %v2676 = vmul.u32 %v2671, %v2674
        %v2677 = vmul.u32 %v2672, %v2673
        %v2678 = vmul.u32 %v2672, %v2674
        %v2679 = vshll.u32 %v2676, 16
        %v2680 = vshrl.u32 %v2676, 16
        %v2681 = vshll.u32 %v2677, 16
        %v2682 = vshrl.u32 %v2677, 16
        %vm2683 = vc.u32 %v2675, %v2679
        %v2684 = vsel %vm2683, 1, 0
        %v2685 = vadd.s32 %v2675, %v2679
        %v2686 = vadd.s32 %v2678, %v2684
        %vm2687 = vc.u32 %v2685, %v2681
        %v2688 = vsel %vm2687, 1, 0
        %v2689 = vadd.s32 %v2685, %v2681
        %v2690 = vadd.s32 %v2686, %v2688
        %v2691 = vadd.s32 %v2690, %v2680
        %v2692 = vadd.s32 %v2691, %v2682
        %v2693 = vmul.u32 %v2648, %v2639
        %v2694 = vadd.s32 %v2670, %v2689
        %vm2695 = vc.u32 %v2670, %v2689
        %v2696 = vadd.s32 %v2692, 1
        %v2697 = vsel %vm2695, %v2696, %v2692
        %v2698 = vadd.s32 %v2693, %v2697
        %v2699 = vadd.s32 %v2698, 536870912
        %v2700 = vshrl.u32 %v2699, 30
        %v2701 = vshll.u32 %v2700, 30
        %v2702 = vsub.s32 %v2698, %v2701
        %vm2703 = vcmp.lt.s32.totalorder %v2702, 0
        %v2704 = vsub.s32 0, %v2702
        %v2705 = vsel %vm2703, %v2704, %v2702
        %v2706 = vclz %v2705
        %v2707 = vsub.s32 %v2706, 2
        %vm2708 = vcmp.gt.s32.totalorder 0, %v2707
        %v2709 = vsel %vm2708, 0, %v2707
        %v2710 = vsub.s32 32, %v2709
        %v2711 = vshll.u32 %v2702, %v2709
        %v2712 = vshrl.u32 %v2694, %v2710
        %v2713 = vor.u32 %v2711, %v2712
        %v2714 = vsub.s32 4294967266, %v2709
        %v2715 = vadd.s32 %v2714, 127
        %v2716 = vshll.u32 %v2715, 23
        %v2717 = vor.u32 4788187, %v2716
        %v2718 = vand.u32 2147483647, %v2717
        %v2720 = vcvt.s32.f32 %v2713
        %v2721 = vmul.f32 %v2720, %v2718
        %v2722 = vxor.u32 %v2721, 2147483648
        %v2723 = vsel %vm2602, %v2722, %v2721
        %v2724 = vsub.s32 4, %v2700
        %v2725 = vsel %vm2602, %v2724, %v2700
        %v2726 = vsel %vm2601, %v2442, %v2723
        %v2727 = vsel %vm2601, 0, %v2725
        %v2728 = vmul.f32 %v2726, %v2726
        %v2729 = vmul.f32 %v2728, -0.001358992
        %v2730 = vadd.f32 %v2729, 0.041655596
        %v2731 = vmul.f32 %v2728, %v2730
        %v2732 = vadd.f32 %v2731, -0.4999988
        %v2733 = vmul.f32 %v2728, %v2732
        %v2734 = vadd.f32 1.0, %v2733
        %v2735 = vmul.f32 %v2726, %v2726
        %v2736 = vmul.f32 %v2735, -0.00019511016
        %v2737 = vadd.f32 %v2736, 0.008332121
        %v2738 = vmul.f32 %v2735, %v2737
        %v2739 = vadd.f32 %v2738, -0.16666654
        %v2740 = vmul.f32 %v2735, %v2739
        %v2741 = vadd.f32 %v2740, 1.0
        %v2742 = vmul.f32 %v2741, %v2726
        %vm2743 = vweird.f32 %v2442
        %v2744 = vadd.s32 %v2727, 3
        %v2745 = vand.u32 %v2744, 3
        %vm2746 = vcmp.lt.s32.totalorder %v2745, 2
        %vm2747 = vcmp.eq.s32.totalorder %v2745, 0
        %v2748 = vxor.u32 %v2742, 2147483648
        %v2749 = vsel %vm2747, %v2734, %v2748
        %vm2750 = vcmp.eq.s32.totalorder %v2745, 2
        %v2751 = vxor.u32 %v2734, 2147483648
        %v2752 = vsel %vm2750, %v2751, %v2742
        %v2753 = vsel %vm2746, %v2749, %v2752
        %v2754 = vsel %vm2743, nan, %v2753
        %v2755 = vand.u32 2147483647, %v2443
        %vm2756 = vcmp.le.f32.partialorder %v2755, 0.7853982
        %vm2757 = vcmp.lt.s32.totalorder %v2443, 0
        %v2758 = vand.u32 %v2443, 2139095040
        %v2759 = vshrl.u32 %v2758, 23
        %v2760 = vsub.s32 %v2759, 127
        %v2761 = vand.u32 2147483647, %v2443
        %v2762 = vand.u32 %v2761, 8388607
        %v2763 = vor.u32 %v2762, 8388608
        %v2764 = vsub.s32 0, %v2763
        %v2765 = vadd.s32 %v2760, 1
        %vm2766 = vcmp.gt.s32.totalorder %v2765, 0
        %v2767 = vsel %vm2766, %v2765, 0
        %v2768 = vshrl.u32 %v2767, 5
        %v2769 = vand.u32 %v2767, 31
        %v2770 = vsub.s32 32, %v2769
        %v2771 = vshrl.u32 683565275, %v2770
        %v2772 = vshll.u32 683565275, %v2769
        %v2773 = vshrl.u32 2475754826, %v2770
        %v2774 = vor.u32 %v2772, %v2773
        %v2775 = vshll.u32 2475754826, %v2769
        %v2776 = vshrl.u32 2131351028, %v2770
        %v2777 = vor.u32 %v2775, %v2776
        %v2778 = vshll.u32 2131351028, %v2769
        %v2779 = vshrl.u32 2102212464, %v2770
        %v2780 = vor.u32 %v2778, %v2779
        %v2781 = vshll.u32 2102212464, %v2769
        %v2782 = vshrl.u32 920167782, %v2770
        %v2783 = vor.u32 %v2781, %v2782
        %v2784 = vshll.u32 920167782, %v2769
        %v2785 = vshrl.u32 1326507024, %v2770
        %v2786 = vor.u32 %v2784, %v2785
        %vm2787 = vcmp.lt.s32.totalorder %v2768, 1
        %vm2788 = vcmp.lt.s32.totalorder %v2768, 2
        %vm2789 = vcmp.lt.s32.totalorder %v2768, 3
        %vm2790 = vcmp.lt.s32.totalorder %v2768, 4
        %v2791 = vsel %vm2787, %v2771, %v2774
        %v2792 = vsel %vm2790, %v2780, 2102212464
        %v2793 = vsel %vm2789, %v2777, %v2792
        %v2794 = vsel %vm2788, %v2791, %v2793
        %v2795 = vsel %vm2787, %v2774, %v2777
        %v2796 = vsel %vm2790, %v2783, 920167782
        %v2797 = vsel %vm2789, %v2780, %v2796
        %v2798 = vsel %vm2788, %v2795, %v2797
        %v2799 = vsel %vm2787, %v2777, %v2780
        %v2800 = vsel %vm2790, %v2786, 1326507024
        %v2801 = vsel %vm2789, %v2783, %v2800
        %v2802 = vsel %vm2788, %v2799, %v2801
        %v2803 = vshll.u32 %v2763, 8
        %v2804 = vand.u32 %v2803, 65535
        %v2805 = vshrl.u32 %v2803, 16
        %v2806 = vand.u32 %v2802, 65535
        %v2807 = vshrl.u32 %v2802, 16
        %v2808 = vmul.u32 %v2804, %v2806
        %v2809 = vmul.u32 %v2804, %v2807
        %v2810 = vmul.u32 %v2805, %v2806
        %v2811 = vmul.u32 %v2805, %v2807
        %v2812 = vshll.u32 %v2809, 16
        %v2813 = vshrl.u32 %v2809, 16
        %v2814 = vshll.u32 %v2810, 16
        %v2815 = vshrl.u32 %v2810, 16
        %vm2816 = vc.u32 %v2808, %v2812
        %v2817 = vsel %vm2816, 1, 0
        %v2818 = vadd.s32 %v2808, %v2812
        %v2819 = vadd.s32 %v2811, %v2817
        %vm2820 = vc.u32 %v2818, %v2814
        %v2821 = vsel %vm2820, 1, 0
        %v2822 = vadd.s32 %v2818, %v2814
        %v2823 = vadd.s32 %v2819, %v2821
        %v2824 = vadd.s32 %v2823, %v2813
        %v2825 = vadd.s32 %v2824, %v2815
        %v2826 = vand.u32 %v2803, 65535
        %v2827 = vshrl.u32 %v2803, 16
        %v2828 = vand.u32 %v2798, 65535
        %v2829 = vshrl.u32 %v2798, 16
        %v2830 = vmul.u32 %v2826, %v2828
        %v2831 = vmul.u32 %v2826, %v2829
        %v2832 = vmul.u32 %v2827, %v2828
        %v2833 = vmul.u32 %v2827, %v2829
        %v2834 = vshll.u32 %v2831, 16
        %v2835 = vshrl.u32 %v2831, 16
        %v2836 = vshll.u32 %v2832, 16
        %v2837 = vshrl.u32 %v2832, 16
        %vm2838 = vc.u32 %v2830, %v2834
        %v2839 = vsel %vm2838, 1, 0
        %v2840 = vadd.s32 %v2830, %v2834
        %v2841 = vadd.s32 %v2833, %v2839
        %vm2842 = vc.u32 %v2840, %v2836
        %v2843 = vsel %vm2842, 1, 0
        %v2844 = vadd.s32 %v2840, %v2836
        %v2845 = vadd.s32 %v2841, %v2843
        %v2846 = vadd.s32 %v2845, %v2835
        %v2847 = vadd.s32 %v2846, %v2837
        %v2848 = vmul.u32 %v2803, %v2794
        %v2849 = vadd.s32 %v2825, %v2844
        %vm2850 = vc.u32 %v2825, %v2844
        %v2851 = vadd.s32 %v2847, 1
        %v2852 = vsel %vm2850, %v2851, %v2847
        %v2853 = vadd.s32 %v2848, %v2852
        %v2854 = vadd.s32 %v2853, 536870912
        %v2855 = vshrl.u32 %v2854, 30
        %v2856 = vshll.u32 %v2855, 30
        %v2857 = vsub.s32 %v2853, %v2856
        %vm2858 = vcmp.lt.s32.totalorder %v2857, 0
        %v2859 = vsub.s32 0, %v2857
        %v2860 = vsel %vm2858, %v2859, %v2857
        %v2861 = vclz %v2860
        %v2862 = vsub.s32 %v2861, 2
        %vm2863 = vcmp.gt.s32.totalorder 0, %v2862
        %v2864 = vsel %vm2863, 0, %v2862
        %v2865 = vsub.s32 32, %v2864
        %v2866 = vshll.u32 %v2857, %v2864
        %v2867 = vshrl.u32 %v2849, %v2865
        %v2868 = vor.u32 %v2866, %v2867
        %v2869 = vsub.s32 4294967266, %v2864
        %v2870 = vadd.s32 %v2869, 127
        %v2871 = vshll.u32 %v2870, 23
        %v2872 = vor.u32 4788187, %v2871
        %v2873 = vand.u32 2147483647, %v2872
        %v2875 = vcvt.s32.f32 %v2868
        %v2876 = vmul.f32 %v2875, %v2873
        %v2877 = vxor.u32 %v2876, 2147483648
        %v2878 = vsel %vm2757, %v2877, %v2876
        %v2879 = vsub.s32 4, %v2855
        %v2880 = vsel %vm2757, %v2879, %v2855
        %v2881 = vsel %vm2756, %v2443, %v2878
        %v2882 = vsel %vm2756, 0, %v2880
        %v2883 = vmul.f32 %v2881, %v2881
        %v2884 = vmul.f32 %v2883, -0.001358992
        %v2885 = vadd.f32 %v2884, 0.041655596
        %v2886 = vmul.f32 %v2883, %v2885
        %v2887 = vadd.f32 %v2886, -0.4999988
        %v2888 = vmul.f32 %v2883, %v2887
        %v2889 = vadd.f32 1.0, %v2888
        %v2890 = vmul.f32 %v2881, %v2881
        %v2891 = vmul.f32 %v2890, -0.00019511016
        %v2892 = vadd.f32 %v2891, 0.008332121
        %v2893 = vmul.f32 %v2890, %v2892
        %v2894 = vadd.f32 %v2893, -0.16666654
        %v2895 = vmul.f32 %v2890, %v2894
        %v2896 = vadd.f32 %v2895, 1.0
        %v2897 = vmul.f32 %v2896, %v2881
        %vm2898 = vweird.f32 %v2443
        %v2899 = vadd.s32 %v2882, 3
        %v2900 = vand.u32 %v2899, 3
        %vm2901 = vcmp.lt.s32.totalorder %v2900, 2
        %vm2902 = vcmp.eq.s32.totalorder %v2900, 0
        %v2903 = vxor.u32 %v2897, 2147483648
        %v2904 = vsel %vm2902, %v2889, %v2903
        %vm2905 = vcmp.eq.s32.totalorder %v2900, 2
        %v2906 = vxor.u32 %v2889, 2147483648
        %v2907 = vsel %vm2905, %v2906, %v2897
        %v2908 = vsel %vm2901, %v2904, %v2907
        %v2909 = vsel %vm2898, nan, %v2908
        %v2910 = vand.u32 2147483647, %v2444
        %vm2911 = vcmp.le.f32.partialorder %v2910, 0.7853982
        %vm2912 = vcmp.lt.s32.totalorder %v2444, 0
        %v2913 = vand.u32 %v2444, 2139095040
        %v2914 = vshrl.u32 %v2913, 23
        %v2915 = vsub.s32 %v2914, 127
        %v2916 = vand.u32 2147483647, %v2444
        %v2917 = vand.u32 %v2916, 8388607
        %v2918 = vor.u32 %v2917, 8388608
        %v2919 = vsub.s32 0, %v2918
        %v2920 = vadd.s32 %v2915, 1
        %vm2921 = vcmp.gt.s32.totalorder %v2920, 0
        %v2922 = vsel %vm2921, %v2920, 0
        %v2923 = vshrl.u32 %v2922, 5
        %v2924 = vand.u32 %v2922, 31
        %v2925 = vsub.s32 32, %v2924
        %v2926 = vshrl.u32 683565275, %v2925
        %v2927 = vshll.u32 683565275, %v2924
        %v2928 = vshrl.u32 2475754826, %v2925
        %v2929 = vor.u32 %v2927, %v2928
        %v2930 = vshll.u32 2475754826, %v2924
        %v2931 = vshrl.u32 2131351028, %v2925
        %v2932 = vor.u32 %v2930, %v2931
        %v2933 = vshll.u32 2131351028, %v2924
        %v2934 = vshrl.u32 2102212464, %v2925
        %v2935 = vor.u32 %v2933, %v2934
        %v2936 = vshll.u32 2102212464, %v2924
        %v2937 = vshrl.u32 920167782, %v2925
        %v2938 = vor.u32 %v2936, %v2937
        %v2939 = vshll.u32 920167782, %v2924
        %v2940 = vshrl.u32 1326507024, %v2925
        %v2941 = vor.u32 %v2939, %v2940
        %vm2942 = vcmp.lt.s32.totalorder %v2923, 1
        %vm2943 = vcmp.lt.s32.totalorder %v2923, 2
        %vm2944 = vcmp.lt.s32.totalorder %v2923, 3
        %vm2945 = vcmp.lt.s32.totalorder %v2923, 4
        %v2946 = vsel %vm2942, %v2926, %v2929
        %v2947 = vsel %vm2945, %v2935, 2102212464
        %v2948 = vsel %vm2944, %v2932, %v2947
        %v2949 = vsel %vm2943, %v2946, %v2948
        %v2950 = vsel %vm2942, %v2929, %v2932
        %v2951 = vsel %vm2945, %v2938, 920167782
        %v2952 = vsel %vm2944, %v2935, %v2951
        %v2953 = vsel %vm2943, %v2950, %v2952
        %v2954 = vsel %vm2942, %v2932, %v2935
        %v2955 = vsel %vm2945, %v2941, 1326507024
        %v2956 = vsel %vm2944, %v2938, %v2955
        %v2957 = vsel %vm2943, %v2954, %v2956
        %v2958 = vshll.u32 %v2918, 8
        %v2959 = vand.u32 %v2958, 65535
        %v2960 = vshrl.u32 %v2958, 16
        %v2961 = vand.u32 %v2957, 65535
        %v2962 = vshrl.u32 %v2957, 16
        %v2963 = vmul.u32 %v2959, %v2961
        %v2964 = vmul.u32 %v2959, %v2962
        %v2965 = vmul.u32 %v2960, %v2961
        %v2966 = vmul.u32 %v2960, %v2962
        %v2967 = vshll.u32 %v2964, 16
        %v2968 = vshrl.u32 %v2964, 16
        %v2969 = vshll.u32 %v2965, 16
        %v2970 = vshrl.u32 %v2965, 16
        %vm2971 = vc.u32 %v2963, %v2967
        %v2972 = vsel %vm2971, 1, 0
        %v2973 = vadd.s32 %v2963, %v2967
        %v2974 = vadd.s32 %v2966, %v2972
        %vm2975 = vc.u32 %v2973, %v2969
        %v2976 = vsel %vm2975, 1, 0
        %v2977 = vadd.s32 %v2973, %v2969
        %v2978 = vadd.s32 %v2974, %v2976
        %v2979 = vadd.s32 %v2978, %v2968
        %v2980 = vadd.s32 %v2979, %v2970
        %v2981 = vand.u32 %v2958, 65535
        %v2982 = vshrl.u32 %v2958, 16
        %v2983 = vand.u32 %v2953, 65535
        %v2984 = vshrl.u32 %v2953, 16
        %v2985 = vmul.u32 %v2981, %v2983
        %v2986 = vmul.u32 %v2981, %v2984
        %v2987 = vmul.u32 %v2982, %v2983
        %v2988 = vmul.u32 %v2982, %v2984
        %v2989 = vshll.u32 %v2986, 16
        %v2990 = vshrl.u32 %v2986, 16
        %v2991 = vshll.u32 %v2987, 16
        %v2992 = vshrl.u32 %v2987, 16
        %vm2993 = vc.u32 %v2985, %v2989
        %v2994 = vsel %vm2993, 1, 0
        %v2995 = vadd.s32 %v2985, %v2989
        %v2996 = vadd.s32 %v2988, %v2994
        %vm2997 = vc.u32 %v2995, %v2991
        %v2998 = vsel %vm2997, 1, 0
        %v2999 = vadd.s32 %v2995, %v2991
        %v3000 = vadd.s32 %v2996, %v2998
        %v3001 = vadd.s32 %v3000, %v2990
        %v3002 = vadd.s32 %v3001, %v2992
        %v3003 = vmul.u32 %v2958, %v2949
        %v3004 = vadd.s32 %v2980, %v2999
        %vm3005 = vc.u32 %v2980, %v2999
        %v3006 = vadd.s32 %v3002, 1
        %v3007 = vsel %vm3005, %v3006, %v3002
        %v3008 = vadd.s32 %v3003, %v3007
        %v3009 = vadd.s32 %v3008, 536870912
        %v3010 = vshrl.u32 %v3009, 30
        %v3011 = vshll.u32 %v3010, 30
        %v3012 = vsub.s32 %v3008, %v3011
        %vm3013 = vcmp.lt.s32.totalorder %v3012, 0
        %v3014 = vsub.s32 0, %v3012
        %v3015 = vsel %vm3013, %v3014, %v3012
        %v3016 = vclz %v3015
        %v3017 = vsub.s32 %v3016, 2
        %vm3018 = vcmp.gt.s32.totalorder 0, %v3017
        %v3019 = vsel %vm3018, 0, %v3017
        %v3020 = vsub.s32 32, %v3019
        %v3021 = vshll.u32 %v3012, %v3019
        %v3022 = vshrl.u32 %v3004, %v3020
        %v3023 = vor.u32 %v3021, %v3022
        %v3024 = vsub.s32 4294967266, %v3019
        %v3025 = vadd.s32 %v3024, 127
        %v3026 = vshll.u32 %v3025, 23
        %v3027 = vor.u32 4788187, %v3026
        %v3028 = vand.u32 2147483647, %v3027
        %v3030 = vcvt.s32.f32 %v3023
        %v3031 = vmul.f32 %v3030, %v3028
        %v3032 = vxor.u32 %v3031, 2147483648
        %v3033 = vsel %vm2912, %v3032, %v3031
        %v3034 = vsub.s32 4, %v3010
        %v3035 = vsel %vm2912, %v3034, %v3010
        %v3036 = vsel %vm2911, %v2444, %v3033
        %v3037 = vsel %vm2911, 0, %v3035
        %v3038 = vmul.f32 %v3036, %v3036
        %v3039 = vmul.f32 %v3038, -0.001358992
        %v3040 = vadd.f32 %v3039, 0.041655596
        %v3041 = vmul.f32 %v3038, %v3040
        %v3042 = vadd.f32 %v3041, -0.4999988
        %v3043 = vmul.f32 %v3038, %v3042
        %v3044 = vadd.f32 1.0, %v3043
        %v3045 = vmul.f32 %v3036, %v3036
        %v3046 = vmul.f32 %v3045, -0.00019511016
        %v3047 = vadd.f32 %v3046, 0.008332121
        %v3048 = vmul.f32 %v3045, %v3047
        %v3049 = vadd.f32 %v3048, -0.16666654
        %v3050 = vmul.f32 %v3045, %v3049
        %v3051 = vadd.f32 %v3050, 1.0
        %v3052 = vmul.f32 %v3051, %v3036
        %vm3053 = vweird.f32 %v2444
        %v3054 = vadd.s32 %v3037, 3
        %v3055 = vand.u32 %v3054, 3
        %vm3056 = vcmp.lt.s32.totalorder %v3055, 2
        %vm3057 = vcmp.eq.s32.totalorder %v3055, 0
        %v3058 = vxor.u32 %v3052, 2147483648
        %v3059 = vsel %vm3057, %v3044, %v3058
        %vm3060 = vcmp.eq.s32.totalorder %v3055, 2
        %v3061 = vxor.u32 %v3044, 2147483648
        %v3062 = vsel %vm3060, %v3061, %v3052
        %v3063 = vsel %vm3056, %v3059, %v3062
        %v3064 = vsel %vm3053, nan, %v3063
        %s3065 = scalar_lea.vmem %s3, 96
        %v3066 = vld [vmem:[%s3065] sm:$0xff]
        %v3067 = vld [vmem:[%s3065 + $0x8] sm:$0xff]
        %v3068 = vld [vmem:[%s3065 + $0x10] sm:$0xff]
        %v3069 = vld [vmem:[%s3065 + $0x18] sm:$0xff]
        %s3070 = scalar_lea.vmem %s4, 96
        %v3071 = vld [vmem:[%s3070] sm:$0xff]
        %v3072 = vld [vmem:[%s3070 + $0x8] sm:$0xff]
        %v3073 = vld [vmem:[%s3070 + $0x10] sm:$0xff]
        %v3074 = vld [vmem:[%s3070 + $0x18] sm:$0xff]
        %3076 = vset.pattern.permute.xlu0 0
        %3077 = vperm.xlu0 %3076, %v3071
        %v3078 = vpop.permute.xlu0 %3077
        %3081 = vset.pattern.permute.xlu0 0
        %3082 = vperm.xlu0 %3081, %v3072
        %v3083 = vpop.permute.xlu0 %3082
        %3086 = vset.pattern.permute.xlu0 0
        %3087 = vperm.xlu0 %3086, %v3073
        %v3088 = vpop.permute.xlu0 %3087
        %3091 = vset.pattern.permute.xlu0 0
        %3092 = vperm.xlu0 %3091, %v3074
        %v3093 = vpop.permute.xlu0 %3092
        %v3096 = vsel %vm1009, %v3066, 0
        %v3099 = vsel %vm1009, %v3067, 0
        %v3102 = vsel %vm1009, %v3068, 0
        %v3105 = vsel %vm1009, %v3069, 0
        %3107 = vmatpush.msra.mxu0 0.0
        %3108 = vmatpush.msra.mxu0 0.0
        %3109 = vmatpush.msra.mxu0 0.0
        %3110 = vmatpush.msra.mxu0 0.0
        %3111 = vmatpush.msra.mxu0 0.0
        %3112 = vmatpush.msra.mxu0 0.0
        %3113 = vmatpush.msra.mxu0 0.0
        %3114 = vmatpush.msra.mxu0 0.0
        %3115 = vmatpush.msra.mxu0 0.0
        %3116 = vmatpush.msra.mxu0 0.0
        %3117 = vmatpush.msra.mxu0 0.0
        %3118 = vmatpush.msra.mxu0 0.0
        %3119 = vmatpush.msra.mxu0 %v3064
        %3120 = vmatpush.msra.mxu0 %v2909
        %3121 = vmatpush.msra.mxu0 %v2754
        %3122 = vmatpush.msra.mxu0 %v2599
        %3123 = vmatmul.f32.gmra.mxu0 %v3096
        %v3124 = vpop.f32.mrf.mxu0
        %v3125 = vadd.f32 %v3078, %v3124
        %3126 = vmatmul.f32.gmra.mxu0 %v3099
        %v3127 = vpop.f32.mrf.mxu0
        %v3128 = vadd.f32 %v3083, %v3127
        %3129 = vmatmul.f32.gmra.mxu0 %v3102
        %v3130 = vpop.f32.mrf.mxu0
        %v3131 = vadd.f32 %v3088, %v3130
        %3132 = vmatmul.f32.gmra.mxu0 %v3105
        %v3133 = vpop.f32.mrf.mxu0
        %v3134 = vadd.f32 %v3093, %v3133
        %3135 = vdwg.mxu0
        %v3136 = vmul.f32 %v3125, 50.0
        %v3137 = vmul.f32 %v3128, 50.0
        %v3138 = vmul.f32 %v3131, 50.0
        %v3139 = vmul.f32 %v3134, 50.0
        %v3140 = vand.u32 2147483647, %v3136
        %vm3141 = vcmp.le.f32.partialorder %v3140, 0.7853982
        %vm3142 = vcmp.lt.s32.totalorder %v3136, 0
        %v3143 = vand.u32 %v3136, 2139095040
        %v3144 = vshrl.u32 %v3143, 23
        %v3145 = vsub.s32 %v3144, 127
        %v3146 = vand.u32 2147483647, %v3136
        %v3147 = vand.u32 %v3146, 8388607
        %v3148 = vor.u32 %v3147, 8388608
        %v3149 = vsub.s32 0, %v3148
        %v3150 = vadd.s32 %v3145, 1
        %vm3151 = vcmp.gt.s32.totalorder %v3150, 0
        %v3152 = vsel %vm3151, %v3150, 0
        %v3153 = vshrl.u32 %v3152, 5
        %v3154 = vand.u32 %v3152, 31
        %v3155 = vsub.s32 32, %v3154
        %v3156 = vshrl.u32 683565275, %v3155
        %v3157 = vshll.u32 683565275, %v3154
        %v3158 = vshrl.u32 2475754826, %v3155
        %v3159 = vor.u32 %v3157, %v3158
        %v3160 = vshll.u32 2475754826, %v3154
        %v3161 = vshrl.u32 2131351028, %v3155
        %v3162 = vor.u32 %v3160, %v3161
        %v3163 = vshll.u32 2131351028, %v3154
        %v3164 = vshrl.u32 2102212464, %v3155
        %v3165 = vor.u32 %v3163, %v3164
        %v3166 = vshll.u32 2102212464, %v3154
        %v3167 = vshrl.u32 920167782, %v3155
        %v3168 = vor.u32 %v3166, %v3167
        %v3169 = vshll.u32 920167782, %v3154
        %v3170 = vshrl.u32 1326507024, %v3155
        %v3171 = vor.u32 %v3169, %v3170
        %vm3172 = vcmp.lt.s32.totalorder %v3153, 1
        %vm3173 = vcmp.lt.s32.totalorder %v3153, 2
        %vm3174 = vcmp.lt.s32.totalorder %v3153, 3
        %vm3175 = vcmp.lt.s32.totalorder %v3153, 4
        %v3176 = vsel %vm3172, %v3156, %v3159
        %v3177 = vsel %vm3175, %v3165, 2102212464
        %v3178 = vsel %vm3174, %v3162, %v3177
        %v3179 = vsel %vm3173, %v3176, %v3178
        %v3180 = vsel %vm3172, %v3159, %v3162
        %v3181 = vsel %vm3175, %v3168, 920167782
        %v3182 = vsel %vm3174, %v3165, %v3181
        %v3183 = vsel %vm3173, %v3180, %v3182
        %v3184 = vsel %vm3172, %v3162, %v3165
        %v3185 = vsel %vm3175, %v3171, 1326507024
        %v3186 = vsel %vm3174, %v3168, %v3185
        %v3187 = vsel %vm3173, %v3184, %v3186
        %v3188 = vshll.u32 %v3148, 8
        %v3189 = vand.u32 %v3188, 65535
        %v3190 = vshrl.u32 %v3188, 16
        %v3191 = vand.u32 %v3187, 65535
        %v3192 = vshrl.u32 %v3187, 16
        %v3193 = vmul.u32 %v3189, %v3191
        %v3194 = vmul.u32 %v3189, %v3192
        %v3195 = vmul.u32 %v3190, %v3191
        %v3196 = vmul.u32 %v3190, %v3192
        %v3197 = vshll.u32 %v3194, 16
        %v3198 = vshrl.u32 %v3194, 16
        %v3199 = vshll.u32 %v3195, 16
        %v3200 = vshrl.u32 %v3195, 16
        %vm3201 = vc.u32 %v3193, %v3197
        %v3202 = vsel %vm3201, 1, 0
        %v3203 = vadd.s32 %v3193, %v3197
        %v3204 = vadd.s32 %v3196, %v3202
        %vm3205 = vc.u32 %v3203, %v3199
        %v3206 = vsel %vm3205, 1, 0
        %v3207 = vadd.s32 %v3203, %v3199
        %v3208 = vadd.s32 %v3204, %v3206
        %v3209 = vadd.s32 %v3208, %v3198
        %v3210 = vadd.s32 %v3209, %v3200
        %v3211 = vand.u32 %v3188, 65535
        %v3212 = vshrl.u32 %v3188, 16
        %v3213 = vand.u32 %v3183, 65535
        %v3214 = vshrl.u32 %v3183, 16
        %v3215 = vmul.u32 %v3211, %v3213
        %v3216 = vmul.u32 %v3211, %v3214
        %v3217 = vmul.u32 %v3212, %v3213
        %v3218 = vmul.u32 %v3212, %v3214
        %v3219 = vshll.u32 %v3216, 16
        %v3220 = vshrl.u32 %v3216, 16
        %v3221 = vshll.u32 %v3217, 16
        %v3222 = vshrl.u32 %v3217, 16
        %vm3223 = vc.u32 %v3215, %v3219
        %v3224 = vsel %vm3223, 1, 0
        %v3225 = vadd.s32 %v3215, %v3219
        %v3226 = vadd.s32 %v3218, %v3224
        %vm3227 = vc.u32 %v3225, %v3221
        %v3228 = vsel %vm3227, 1, 0
        %v3229 = vadd.s32 %v3225, %v3221
        %v3230 = vadd.s32 %v3226, %v3228
        %v3231 = vadd.s32 %v3230, %v3220
        %v3232 = vadd.s32 %v3231, %v3222
        %v3233 = vmul.u32 %v3188, %v3179
        %v3234 = vadd.s32 %v3210, %v3229
        %vm3235 = vc.u32 %v3210, %v3229
        %v3236 = vadd.s32 %v3232, 1
        %v3237 = vsel %vm3235, %v3236, %v3232
        %v3238 = vadd.s32 %v3233, %v3237
        %v3239 = vadd.s32 %v3238, 536870912
        %v3240 = vshrl.u32 %v3239, 30
        %v3241 = vshll.u32 %v3240, 30
        %v3242 = vsub.s32 %v3238, %v3241
        %vm3243 = vcmp.lt.s32.totalorder %v3242, 0
        %v3244 = vsub.s32 0, %v3242
        %v3245 = vsel %vm3243, %v3244, %v3242
        %v3246 = vclz %v3245
        %v3247 = vsub.s32 %v3246, 2
        %vm3248 = vcmp.gt.s32.totalorder 0, %v3247
        %v3249 = vsel %vm3248, 0, %v3247
        %v3250 = vsub.s32 32, %v3249
        %v3251 = vshll.u32 %v3242, %v3249
        %v3252 = vshrl.u32 %v3234, %v3250
        %v3253 = vor.u32 %v3251, %v3252
        %v3254 = vsub.s32 4294967266, %v3249
        %v3255 = vadd.s32 %v3254, 127
        %v3256 = vshll.u32 %v3255, 23
        %v3257 = vor.u32 4788187, %v3256
        %v3258 = vand.u32 2147483647, %v3257
        %v3260 = vcvt.s32.f32 %v3253
        %v3261 = vmul.f32 %v3260, %v3258
        %v3262 = vxor.u32 %v3261, 2147483648
        %v3263 = vsel %vm3142, %v3262, %v3261
        %v3264 = vsub.s32 4, %v3240
        %v3265 = vsel %vm3142, %v3264, %v3240
        %v3266 = vsel %vm3141, %v3136, %v3263
        %v3267 = vsel %vm3141, 0, %v3265
        %v3268 = vmul.f32 %v3266, %v3266
        %v3269 = vmul.f32 %v3268, -0.001358992
        %v3270 = vadd.f32 %v3269, 0.041655596
        %v3271 = vmul.f32 %v3268, %v3270
        %v3272 = vadd.f32 %v3271, -0.4999988
        %v3273 = vmul.f32 %v3268, %v3272
        %v3274 = vadd.f32 1.0, %v3273
        %v3275 = vmul.f32 %v3266, %v3266
        %v3276 = vmul.f32 %v3275, -0.00019511016
        %v3277 = vadd.f32 %v3276, 0.008332121
        %v3278 = vmul.f32 %v3275, %v3277
        %v3279 = vadd.f32 %v3278, -0.16666654
        %v3280 = vmul.f32 %v3275, %v3279
        %v3281 = vadd.f32 %v3280, 1.0
        %v3282 = vmul.f32 %v3281, %v3266
        %vm3283 = vweird.f32 %v3136
        %v3284 = vadd.s32 %v3267, 3
        %v3285 = vand.u32 %v3284, 3
        %vm3286 = vcmp.lt.s32.totalorder %v3285, 2
        %vm3287 = vcmp.eq.s32.totalorder %v3285, 0
        %v3288 = vxor.u32 %v3282, 2147483648
        %v3289 = vsel %vm3287, %v3274, %v3288
        %vm3290 = vcmp.eq.s32.totalorder %v3285, 2
        %v3291 = vxor.u32 %v3274, 2147483648
        %v3292 = vsel %vm3290, %v3291, %v3282
        %v3293 = vsel %vm3286, %v3289, %v3292
        %v3294 = vsel %vm3283, nan, %v3293
        %v3295 = vand.u32 2147483647, %v3137
        %vm3296 = vcmp.le.f32.partialorder %v3295, 0.7853982
        %vm3297 = vcmp.lt.s32.totalorder %v3137, 0
        %v3298 = vand.u32 %v3137, 2139095040
        %v3299 = vshrl.u32 %v3298, 23
        %v3300 = vsub.s32 %v3299, 127
        %v3301 = vand.u32 2147483647, %v3137
        %v3302 = vand.u32 %v3301, 8388607
        %v3303 = vor.u32 %v3302, 8388608
        %v3304 = vsub.s32 0, %v3303
        %v3305 = vadd.s32 %v3300, 1
        %vm3306 = vcmp.gt.s32.totalorder %v3305, 0
        %v3307 = vsel %vm3306, %v3305, 0
        %v3308 = vshrl.u32 %v3307, 5
        %v3309 = vand.u32 %v3307, 31
        %v3310 = vsub.s32 32, %v3309
        %v3311 = vshrl.u32 683565275, %v3310
        %v3312 = vshll.u32 683565275, %v3309
        %v3313 = vshrl.u32 2475754826, %v3310
        %v3314 = vor.u32 %v3312, %v3313
        %v3315 = vshll.u32 2475754826, %v3309
        %v3316 = vshrl.u32 2131351028, %v3310
        %v3317 = vor.u32 %v3315, %v3316
        %v3318 = vshll.u32 2131351028, %v3309
        %v3319 = vshrl.u32 2102212464, %v3310
        %v3320 = vor.u32 %v3318, %v3319
        %v3321 = vshll.u32 2102212464, %v3309
        %v3322 = vshrl.u32 920167782, %v3310
        %v3323 = vor.u32 %v3321, %v3322
        %v3324 = vshll.u32 920167782, %v3309
        %v3325 = vshrl.u32 1326507024, %v3310
        %v3326 = vor.u32 %v3324, %v3325
        %vm3327 = vcmp.lt.s32.totalorder %v3308, 1
        %vm3328 = vcmp.lt.s32.totalorder %v3308, 2
        %vm3329 = vcmp.lt.s32.totalorder %v3308, 3
        %vm3330 = vcmp.lt.s32.totalorder %v3308, 4
        %v3331 = vsel %vm3327, %v3311, %v3314
        %v3332 = vsel %vm3330, %v3320, 2102212464
        %v3333 = vsel %vm3329, %v3317, %v3332
        %v3334 = vsel %vm3328, %v3331, %v3333
        %v3335 = vsel %vm3327, %v3314, %v3317
        %v3336 = vsel %vm3330, %v3323, 920167782
        %v3337 = vsel %vm3329, %v3320, %v3336
        %v3338 = vsel %vm3328, %v3335, %v3337
        %v3339 = vsel %vm3327, %v3317, %v3320
        %v3340 = vsel %vm3330, %v3326, 1326507024
        %v3341 = vsel %vm3329, %v3323, %v3340
        %v3342 = vsel %vm3328, %v3339, %v3341
        %v3343 = vshll.u32 %v3303, 8
        %v3344 = vand.u32 %v3343, 65535
        %v3345 = vshrl.u32 %v3343, 16
        %v3346 = vand.u32 %v3342, 65535
        %v3347 = vshrl.u32 %v3342, 16
        %v3348 = vmul.u32 %v3344, %v3346
        %v3349 = vmul.u32 %v3344, %v3347
        %v3350 = vmul.u32 %v3345, %v3346
        %v3351 = vmul.u32 %v3345, %v3347
        %v3352 = vshll.u32 %v3349, 16
        %v3353 = vshrl.u32 %v3349, 16
        %v3354 = vshll.u32 %v3350, 16
        %v3355 = vshrl.u32 %v3350, 16
        %vm3356 = vc.u32 %v3348, %v3352
        %v3357 = vsel %vm3356, 1, 0
        %v3358 = vadd.s32 %v3348, %v3352
        %v3359 = vadd.s32 %v3351, %v3357
        %vm3360 = vc.u32 %v3358, %v3354
        %v3361 = vsel %vm3360, 1, 0
        %v3362 = vadd.s32 %v3358, %v3354
        %v3363 = vadd.s32 %v3359, %v3361
        %v3364 = vadd.s32 %v3363, %v3353
        %v3365 = vadd.s32 %v3364, %v3355
        %v3366 = vand.u32 %v3343, 65535
        %v3367 = vshrl.u32 %v3343, 16
        %v3368 = vand.u32 %v3338, 65535
        %v3369 = vshrl.u32 %v3338, 16
        %v3370 = vmul.u32 %v3366, %v3368
        %v3371 = vmul.u32 %v3366, %v3369
        %v3372 = vmul.u32 %v3367, %v3368
        %v3373 = vmul.u32 %v3367, %v3369
        %v3374 = vshll.u32 %v3371, 16
        %v3375 = vshrl.u32 %v3371, 16
        %v3376 = vshll.u32 %v3372, 16
        %v3377 = vshrl.u32 %v3372, 16
        %vm3378 = vc.u32 %v3370, %v3374
        %v3379 = vsel %vm3378, 1, 0
        %v3380 = vadd.s32 %v3370, %v3374
        %v3381 = vadd.s32 %v3373, %v3379
        %vm3382 = vc.u32 %v3380, %v3376
        %v3383 = vsel %vm3382, 1, 0
        %v3384 = vadd.s32 %v3380, %v3376
        %v3385 = vadd.s32 %v3381, %v3383
        %v3386 = vadd.s32 %v3385, %v3375
        %v3387 = vadd.s32 %v3386, %v3377
        %v3388 = vmul.u32 %v3343, %v3334
        %v3389 = vadd.s32 %v3365, %v3384
        %vm3390 = vc.u32 %v3365, %v3384
        %v3391 = vadd.s32 %v3387, 1
        %v3392 = vsel %vm3390, %v3391, %v3387
        %v3393 = vadd.s32 %v3388, %v3392
        %v3394 = vadd.s32 %v3393, 536870912
        %v3395 = vshrl.u32 %v3394, 30
        %v3396 = vshll.u32 %v3395, 30
        %v3397 = vsub.s32 %v3393, %v3396
        %vm3398 = vcmp.lt.s32.totalorder %v3397, 0
        %v3399 = vsub.s32 0, %v3397
        %v3400 = vsel %vm3398, %v3399, %v3397
        %v3401 = vclz %v3400
        %v3402 = vsub.s32 %v3401, 2
        %vm3403 = vcmp.gt.s32.totalorder 0, %v3402
        %v3404 = vsel %vm3403, 0, %v3402
        %v3405 = vsub.s32 32, %v3404
        %v3406 = vshll.u32 %v3397, %v3404
        %v3407 = vshrl.u32 %v3389, %v3405
        %v3408 = vor.u32 %v3406, %v3407
        %v3409 = vsub.s32 4294967266, %v3404
        %v3410 = vadd.s32 %v3409, 127
        %v3411 = vshll.u32 %v3410, 23
        %v3412 = vor.u32 4788187, %v3411
        %v3413 = vand.u32 2147483647, %v3412
        %v3415 = vcvt.s32.f32 %v3408
        %v3416 = vmul.f32 %v3415, %v3413
        %v3417 = vxor.u32 %v3416, 2147483648
        %v3418 = vsel %vm3297, %v3417, %v3416
        %v3419 = vsub.s32 4, %v3395
        %v3420 = vsel %vm3297, %v3419, %v3395
        %v3421 = vsel %vm3296, %v3137, %v3418
        %v3422 = vsel %vm3296, 0, %v3420
        %v3423 = vmul.f32 %v3421, %v3421
        %v3424 = vmul.f32 %v3423, -0.001358992
        %v3425 = vadd.f32 %v3424, 0.041655596
        %v3426 = vmul.f32 %v3423, %v3425
        %v3427 = vadd.f32 %v3426, -0.4999988
        %v3428 = vmul.f32 %v3423, %v3427
        %v3429 = vadd.f32 1.0, %v3428
        %v3430 = vmul.f32 %v3421, %v3421
        %v3431 = vmul.f32 %v3430, -0.00019511016
        %v3432 = vadd.f32 %v3431, 0.008332121
        %v3433 = vmul.f32 %v3430, %v3432
        %v3434 = vadd.f32 %v3433, -0.16666654
        %v3435 = vmul.f32 %v3430, %v3434
        %v3436 = vadd.f32 %v3435, 1.0
        %v3437 = vmul.f32 %v3436, %v3421
        %vm3438 = vweird.f32 %v3137
        %v3439 = vadd.s32 %v3422, 3
        %v3440 = vand.u32 %v3439, 3
        %vm3441 = vcmp.lt.s32.totalorder %v3440, 2
        %vm3442 = vcmp.eq.s32.totalorder %v3440, 0
        %v3443 = vxor.u32 %v3437, 2147483648
        %v3444 = vsel %vm3442, %v3429, %v3443
        %vm3445 = vcmp.eq.s32.totalorder %v3440, 2
        %v3446 = vxor.u32 %v3429, 2147483648
        %v3447 = vsel %vm3445, %v3446, %v3437
        %v3448 = vsel %vm3441, %v3444, %v3447
        %v3449 = vsel %vm3438, nan, %v3448
        %v3450 = vand.u32 2147483647, %v3138
        %vm3451 = vcmp.le.f32.partialorder %v3450, 0.7853982
        %vm3452 = vcmp.lt.s32.totalorder %v3138, 0
        %v3453 = vand.u32 %v3138, 2139095040
        %v3454 = vshrl.u32 %v3453, 23
        %v3455 = vsub.s32 %v3454, 127
        %v3456 = vand.u32 2147483647, %v3138
        %v3457 = vand.u32 %v3456, 8388607
        %v3458 = vor.u32 %v3457, 8388608
        %v3459 = vsub.s32 0, %v3458
        %v3460 = vadd.s32 %v3455, 1
        %vm3461 = vcmp.gt.s32.totalorder %v3460, 0
        %v3462 = vsel %vm3461, %v3460, 0
        %v3463 = vshrl.u32 %v3462, 5
        %v3464 = vand.u32 %v3462, 31
        %v3465 = vsub.s32 32, %v3464
        %v3466 = vshrl.u32 683565275, %v3465
        %v3467 = vshll.u32 683565275, %v3464
        %v3468 = vshrl.u32 2475754826, %v3465
        %v3469 = vor.u32 %v3467, %v3468
        %v3470 = vshll.u32 2475754826, %v3464
        %v3471 = vshrl.u32 2131351028, %v3465
        %v3472 = vor.u32 %v3470, %v3471
        %v3473 = vshll.u32 2131351028, %v3464
        %v3474 = vshrl.u32 2102212464, %v3465
        %v3475 = vor.u32 %v3473, %v3474
        %v3476 = vshll.u32 2102212464, %v3464
        %v3477 = vshrl.u32 920167782, %v3465
        %v3478 = vor.u32 %v3476, %v3477
        %v3479 = vshll.u32 920167782, %v3464
        %v3480 = vshrl.u32 1326507024, %v3465
        %v3481 = vor.u32 %v3479, %v3480
        %vm3482 = vcmp.lt.s32.totalorder %v3463, 1
        %vm3483 = vcmp.lt.s32.totalorder %v3463, 2
        %vm3484 = vcmp.lt.s32.totalorder %v3463, 3
        %vm3485 = vcmp.lt.s32.totalorder %v3463, 4
        %v3486 = vsel %vm3482, %v3466, %v3469
        %v3487 = vsel %vm3485, %v3475, 2102212464
        %v3488 = vsel %vm3484, %v3472, %v3487
        %v3489 = vsel %vm3483, %v3486, %v3488
        %v3490 = vsel %vm3482, %v3469, %v3472
        %v3491 = vsel %vm3485, %v3478, 920167782
        %v3492 = vsel %vm3484, %v3475, %v3491
        %v3493 = vsel %vm3483, %v3490, %v3492
        %v3494 = vsel %vm3482, %v3472, %v3475
        %v3495 = vsel %vm3485, %v3481, 1326507024
        %v3496 = vsel %vm3484, %v3478, %v3495
        %v3497 = vsel %vm3483, %v3494, %v3496
        %v3498 = vshll.u32 %v3458, 8
        %v3499 = vand.u32 %v3498, 65535
        %v3500 = vshrl.u32 %v3498, 16
        %v3501 = vand.u32 %v3497, 65535
        %v3502 = vshrl.u32 %v3497, 16
        %v3503 = vmul.u32 %v3499, %v3501
        %v3504 = vmul.u32 %v3499, %v3502
        %v3505 = vmul.u32 %v3500, %v3501
        %v3506 = vmul.u32 %v3500, %v3502
        %v3507 = vshll.u32 %v3504, 16
        %v3508 = vshrl.u32 %v3504, 16
        %v3509 = vshll.u32 %v3505, 16
        %v3510 = vshrl.u32 %v3505, 16
        %vm3511 = vc.u32 %v3503, %v3507
        %v3512 = vsel %vm3511, 1, 0
        %v3513 = vadd.s32 %v3503, %v3507
        %v3514 = vadd.s32 %v3506, %v3512
        %vm3515 = vc.u32 %v3513, %v3509
        %v3516 = vsel %vm3515, 1, 0
        %v3517 = vadd.s32 %v3513, %v3509
        %v3518 = vadd.s32 %v3514, %v3516
        %v3519 = vadd.s32 %v3518, %v3508
        %v3520 = vadd.s32 %v3519, %v3510
        %v3521 = vand.u32 %v3498, 65535
        %v3522 = vshrl.u32 %v3498, 16
        %v3523 = vand.u32 %v3493, 65535
        %v3524 = vshrl.u32 %v3493, 16
        %v3525 = vmul.u32 %v3521, %v3523
        %v3526 = vmul.u32 %v3521, %v3524
        %v3527 = vmul.u32 %v3522, %v3523
        %v3528 = vmul.u32 %v3522, %v3524
        %v3529 = vshll.u32 %v3526, 16
        %v3530 = vshrl.u32 %v3526, 16
        %v3531 = vshll.u32 %v3527, 16
        %v3532 = vshrl.u32 %v3527, 16
        %vm3533 = vc.u32 %v3525, %v3529
        %v3534 = vsel %vm3533, 1, 0
        %v3535 = vadd.s32 %v3525, %v3529
        %v3536 = vadd.s32 %v3528, %v3534
        %vm3537 = vc.u32 %v3535, %v3531
        %v3538 = vsel %vm3537, 1, 0
        %v3539 = vadd.s32 %v3535, %v3531
        %v3540 = vadd.s32 %v3536, %v3538
        %v3541 = vadd.s32 %v3540, %v3530
        %v3542 = vadd.s32 %v3541, %v3532
        %v3543 = vmul.u32 %v3498, %v3489
        %v3544 = vadd.s32 %v3520, %v3539
        %vm3545 = vc.u32 %v3520, %v3539
        %v3546 = vadd.s32 %v3542, 1
        %v3547 = vsel %vm3545, %v3546, %v3542
        %v3548 = vadd.s32 %v3543, %v3547
        %v3549 = vadd.s32 %v3548, 536870912
        %v3550 = vshrl.u32 %v3549, 30
        %v3551 = vshll.u32 %v3550, 30
        %v3552 = vsub.s32 %v3548, %v3551
        %vm3553 = vcmp.lt.s32.totalorder %v3552, 0
        %v3554 = vsub.s32 0, %v3552
        %v3555 = vsel %vm3553, %v3554, %v3552
        %v3556 = vclz %v3555
        %v3557 = vsub.s32 %v3556, 2
        %vm3558 = vcmp.gt.s32.totalorder 0, %v3557
        %v3559 = vsel %vm3558, 0, %v3557
        %v3560 = vsub.s32 32, %v3559
        %v3561 = vshll.u32 %v3552, %v3559
        %v3562 = vshrl.u32 %v3544, %v3560
        %v3563 = vor.u32 %v3561, %v3562
        %v3564 = vsub.s32 4294967266, %v3559
        %v3565 = vadd.s32 %v3564, 127
        %v3566 = vshll.u32 %v3565, 23
        %v3567 = vor.u32 4788187, %v3566
        %v3568 = vand.u32 2147483647, %v3567
        %v3570 = vcvt.s32.f32 %v3563
        %v3571 = vmul.f32 %v3570, %v3568
        %v3572 = vxor.u32 %v3571, 2147483648
        %v3573 = vsel %vm3452, %v3572, %v3571
        %v3574 = vsub.s32 4, %v3550
        %v3575 = vsel %vm3452, %v3574, %v3550
        %v3576 = vsel %vm3451, %v3138, %v3573
        %v3577 = vsel %vm3451, 0, %v3575
        %v3578 = vmul.f32 %v3576, %v3576
        %v3579 = vmul.f32 %v3578, -0.001358992
        %v3580 = vadd.f32 %v3579, 0.041655596
        %v3581 = vmul.f32 %v3578, %v3580
        %v3582 = vadd.f32 %v3581, -0.4999988
        %v3583 = vmul.f32 %v3578, %v3582
        %v3584 = vadd.f32 1.0, %v3583
        %v3585 = vmul.f32 %v3576, %v3576
        %v3586 = vmul.f32 %v3585, -0.00019511016
        %v3587 = vadd.f32 %v3586, 0.008332121
        %v3588 = vmul.f32 %v3585, %v3587
        %v3589 = vadd.f32 %v3588, -0.16666654
        %v3590 = vmul.f32 %v3585, %v3589
        %v3591 = vadd.f32 %v3590, 1.0
        %v3592 = vmul.f32 %v3591, %v3576
        %vm3593 = vweird.f32 %v3138
        %v3594 = vadd.s32 %v3577, 3
        %v3595 = vand.u32 %v3594, 3
        %vm3596 = vcmp.lt.s32.totalorder %v3595, 2
        %vm3597 = vcmp.eq.s32.totalorder %v3595, 0
        %v3598 = vxor.u32 %v3592, 2147483648
        %v3599 = vsel %vm3597, %v3584, %v3598
        %vm3600 = vcmp.eq.s32.totalorder %v3595, 2
        %v3601 = vxor.u32 %v3584, 2147483648
        %v3602 = vsel %vm3600, %v3601, %v3592
        %v3603 = vsel %vm3596, %v3599, %v3602
        %v3604 = vsel %vm3593, nan, %v3603
        %v3605 = vand.u32 2147483647, %v3139
        %vm3606 = vcmp.le.f32.partialorder %v3605, 0.7853982
        %vm3607 = vcmp.lt.s32.totalorder %v3139, 0
        %v3608 = vand.u32 %v3139, 2139095040
        %v3609 = vshrl.u32 %v3608, 23
        %v3610 = vsub.s32 %v3609, 127
        %v3611 = vand.u32 2147483647, %v3139
        %v3612 = vand.u32 %v3611, 8388607
        %v3613 = vor.u32 %v3612, 8388608
        %v3614 = vsub.s32 0, %v3613
        %v3615 = vadd.s32 %v3610, 1
        %vm3616 = vcmp.gt.s32.totalorder %v3615, 0
        %v3617 = vsel %vm3616, %v3615, 0
        %v3618 = vshrl.u32 %v3617, 5
        %v3619 = vand.u32 %v3617, 31
        %v3620 = vsub.s32 32, %v3619
        %v3621 = vshrl.u32 683565275, %v3620
        %v3622 = vshll.u32 683565275, %v3619
        %v3623 = vshrl.u32 2475754826, %v3620
        %v3624 = vor.u32 %v3622, %v3623
        %v3625 = vshll.u32 2475754826, %v3619
        %v3626 = vshrl.u32 2131351028, %v3620
        %v3627 = vor.u32 %v3625, %v3626
        %v3628 = vshll.u32 2131351028, %v3619
        %v3629 = vshrl.u32 2102212464, %v3620
        %v3630 = vor.u32 %v3628, %v3629
        %v3631 = vshll.u32 2102212464, %v3619
        %v3632 = vshrl.u32 920167782, %v3620
        %v3633 = vor.u32 %v3631, %v3632
        %v3634 = vshll.u32 920167782, %v3619
        %v3635 = vshrl.u32 1326507024, %v3620
        %v3636 = vor.u32 %v3634, %v3635
        %vm3637 = vcmp.lt.s32.totalorder %v3618, 1
        %vm3638 = vcmp.lt.s32.totalorder %v3618, 2
        %vm3639 = vcmp.lt.s32.totalorder %v3618, 3
        %vm3640 = vcmp.lt.s32.totalorder %v3618, 4
        %v3641 = vsel %vm3637, %v3621, %v3624
        %v3642 = vsel %vm3640, %v3630, 2102212464
        %v3643 = vsel %vm3639, %v3627, %v3642
        %v3644 = vsel %vm3638, %v3641, %v3643
        %v3645 = vsel %vm3637, %v3624, %v3627
        %v3646 = vsel %vm3640, %v3633, 920167782
        %v3647 = vsel %vm3639, %v3630, %v3646
        %v3648 = vsel %vm3638, %v3645, %v3647
        %v3649 = vsel %vm3637, %v3627, %v3630
        %v3650 = vsel %vm3640, %v3636, 1326507024
        %v3651 = vsel %vm3639, %v3633, %v3650
        %v3652 = vsel %vm3638, %v3649, %v3651
        %v3653 = vshll.u32 %v3613, 8
        %v3654 = vand.u32 %v3653, 65535
        %v3655 = vshrl.u32 %v3653, 16
        %v3656 = vand.u32 %v3652, 65535
        %v3657 = vshrl.u32 %v3652, 16
        %v3658 = vmul.u32 %v3654, %v3656
        %v3659 = vmul.u32 %v3654, %v3657
        %v3660 = vmul.u32 %v3655, %v3656
        %v3661 = vmul.u32 %v3655, %v3657
        %v3662 = vshll.u32 %v3659, 16
        %v3663 = vshrl.u32 %v3659, 16
        %v3664 = vshll.u32 %v3660, 16
        %v3665 = vshrl.u32 %v3660, 16
        %vm3666 = vc.u32 %v3658, %v3662
        %v3667 = vsel %vm3666, 1, 0
        %v3668 = vadd.s32 %v3658, %v3662
        %v3669 = vadd.s32 %v3661, %v3667
        %vm3670 = vc.u32 %v3668, %v3664
        %v3671 = vsel %vm3670, 1, 0
        %v3672 = vadd.s32 %v3668, %v3664
        %v3673 = vadd.s32 %v3669, %v3671
        %v3674 = vadd.s32 %v3673, %v3663
        %v3675 = vadd.s32 %v3674, %v3665
        %v3676 = vand.u32 %v3653, 65535
        %v3677 = vshrl.u32 %v3653, 16
        %v3678 = vand.u32 %v3648, 65535
        %v3679 = vshrl.u32 %v3648, 16
        %v3680 = vmul.u32 %v3676, %v3678
        %v3681 = vmul.u32 %v3676, %v3679
        %v3682 = vmul.u32 %v3677, %v3678
        %v3683 = vmul.u32 %v3677, %v3679
        %v3684 = vshll.u32 %v3681, 16
        %v3685 = vshrl.u32 %v3681, 16
        %v3686 = vshll.u32 %v3682, 16
        %v3687 = vshrl.u32 %v3682, 16
        %vm3688 = vc.u32 %v3680, %v3684
        %v3689 = vsel %vm3688, 1, 0
        %v3690 = vadd.s32 %v3680, %v3684
        %v3691 = vadd.s32 %v3683, %v3689
        %vm3692 = vc.u32 %v3690, %v3686
        %v3693 = vsel %vm3692, 1, 0
        %v3694 = vadd.s32 %v3690, %v3686
        %v3695 = vadd.s32 %v3691, %v3693
        %v3696 = vadd.s32 %v3695, %v3685
        %v3697 = vadd.s32 %v3696, %v3687
        %v3698 = vmul.u32 %v3653, %v3644
        %v3699 = vadd.s32 %v3675, %v3694
        %vm3700 = vc.u32 %v3675, %v3694
        %v3701 = vadd.s32 %v3697, 1
        %v3702 = vsel %vm3700, %v3701, %v3697
        %v3703 = vadd.s32 %v3698, %v3702
        %v3704 = vadd.s32 %v3703, 536870912
        %v3705 = vshrl.u32 %v3704, 30
        %v3706 = vshll.u32 %v3705, 30
        %v3707 = vsub.s32 %v3703, %v3706
        %vm3708 = vcmp.lt.s32.totalorder %v3707, 0
        %v3709 = vsub.s32 0, %v3707
        %v3710 = vsel %vm3708, %v3709, %v3707
        %v3711 = vclz %v3710
        %v3712 = vsub.s32 %v3711, 2
        %vm3713 = vcmp.gt.s32.totalorder 0, %v3712
        %v3714 = vsel %vm3713, 0, %v3712
        %v3715 = vsub.s32 32, %v3714
        %v3716 = vshll.u32 %v3707, %v3714
        %v3717 = vshrl.u32 %v3699, %v3715
        %v3718 = vor.u32 %v3716, %v3717
        %v3719 = vsub.s32 4294967266, %v3714
        %v3720 = vadd.s32 %v3719, 127
        %v3721 = vshll.u32 %v3720, 23
        %v3722 = vor.u32 4788187, %v3721
        %v3723 = vand.u32 2147483647, %v3722
        %v3725 = vcvt.s32.f32 %v3718
        %v3726 = vmul.f32 %v3725, %v3723
        %v3727 = vxor.u32 %v3726, 2147483648
        %v3728 = vsel %vm3607, %v3727, %v3726
        %v3729 = vsub.s32 4, %v3705
        %v3730 = vsel %vm3607, %v3729, %v3705
        %v3731 = vsel %vm3606, %v3139, %v3728
        %v3732 = vsel %vm3606, 0, %v3730
        %v3733 = vmul.f32 %v3731, %v3731
        %v3734 = vmul.f32 %v3733, -0.001358992
        %v3735 = vadd.f32 %v3734, 0.041655596
        %v3736 = vmul.f32 %v3733, %v3735
        %v3737 = vadd.f32 %v3736, -0.4999988
        %v3738 = vmul.f32 %v3733, %v3737
        %v3739 = vadd.f32 1.0, %v3738
        %v3740 = vmul.f32 %v3731, %v3731
        %v3741 = vmul.f32 %v3740, -0.00019511016
        %v3742 = vadd.f32 %v3741, 0.008332121
        %v3743 = vmul.f32 %v3740, %v3742
        %v3744 = vadd.f32 %v3743, -0.16666654
        %v3745 = vmul.f32 %v3740, %v3744
        %v3746 = vadd.f32 %v3745, 1.0
        %v3747 = vmul.f32 %v3746, %v3731
        %vm3748 = vweird.f32 %v3139
        %v3749 = vadd.s32 %v3732, 3
        %v3750 = vand.u32 %v3749, 3
        %vm3751 = vcmp.lt.s32.totalorder %v3750, 2
        %vm3752 = vcmp.eq.s32.totalorder %v3750, 0
        %v3753 = vxor.u32 %v3747, 2147483648
        %v3754 = vsel %vm3752, %v3739, %v3753
        %vm3755 = vcmp.eq.s32.totalorder %v3750, 2
        %v3756 = vxor.u32 %v3739, 2147483648
        %v3757 = vsel %vm3755, %v3756, %v3747
        %v3758 = vsel %vm3751, %v3754, %v3757
        %v3759 = vsel %vm3748, nan, %v3758
        %s3760 = scalar_lea.vmem %s3, 128
        %v3761 = vld [vmem:[%s3760] sm:$0xff]
        %v3762 = vld [vmem:[%s3760 + $0x8] sm:$0xff]
        %v3763 = vld [vmem:[%s3760 + $0x10] sm:$0xff]
        %v3764 = vld [vmem:[%s3760 + $0x18] sm:$0xff]
        %s3765 = scalar_lea.vmem %s4, 128
        %v3766 = vld [vmem:[%s3765] sm:$0xff]
        %v3767 = vld [vmem:[%s3765 + $0x8] sm:$0xff]
        %v3768 = vld [vmem:[%s3765 + $0x10] sm:$0xff]
        %v3769 = vld [vmem:[%s3765 + $0x18] sm:$0xff]
        %3771 = vset.pattern.permute.xlu0 0
        %3772 = vperm.xlu0 %3771, %v3766
        %v3773 = vpop.permute.xlu0 %3772
        %3776 = vset.pattern.permute.xlu0 0
        %3777 = vperm.xlu0 %3776, %v3767
        %v3778 = vpop.permute.xlu0 %3777
        %3781 = vset.pattern.permute.xlu0 0
        %3782 = vperm.xlu0 %3781, %v3768
        %v3783 = vpop.permute.xlu0 %3782
        %3786 = vset.pattern.permute.xlu0 0
        %3787 = vperm.xlu0 %3786, %v3769
        %v3788 = vpop.permute.xlu0 %3787
        %v3791 = vsel %vm1009, %v3761, 0
        %v3794 = vsel %vm1009, %v3762, 0
        %v3797 = vsel %vm1009, %v3763, 0
        %v3800 = vsel %vm1009, %v3764, 0
        %3802 = vmatpush.msra.mxu0 0.0
        %3803 = vmatpush.msra.mxu0 0.0
        %3804 = vmatpush.msra.mxu0 0.0
        %3805 = vmatpush.msra.mxu0 0.0
        %3806 = vmatpush.msra.mxu0 0.0
        %3807 = vmatpush.msra.mxu0 0.0
        %3808 = vmatpush.msra.mxu0 0.0
        %3809 = vmatpush.msra.mxu0 0.0
        %3810 = vmatpush.msra.mxu0 0.0
        %3811 = vmatpush.msra.mxu0 0.0
        %3812 = vmatpush.msra.mxu0 0.0
        %3813 = vmatpush.msra.mxu0 0.0
        %3814 = vmatpush.msra.mxu0 %v3759
        %3815 = vmatpush.msra.mxu0 %v3604
        %3816 = vmatpush.msra.mxu0 %v3449
        %3817 = vmatpush.msra.mxu0 %v3294
        %3818 = vmatmul.f32.gmra.mxu0 %v3791
        %v3819 = vpop.f32.mrf.mxu0
        %v3820 = vadd.f32 %v3773, %v3819
        %3821 = vmatmul.f32.gmra.mxu0 %v3794
        %v3822 = vpop.f32.mrf.mxu0
        %v3823 = vadd.f32 %v3778, %v3822
        %3824 = vmatmul.f32.gmra.mxu0 %v3797
        %v3825 = vpop.f32.mrf.mxu0
        %v3826 = vadd.f32 %v3783, %v3825
        %3827 = vmatmul.f32.gmra.mxu0 %v3800
        %v3828 = vpop.f32.mrf.mxu0
        %v3829 = vadd.f32 %v3788, %v3828
        %3830 = vdwg.mxu0
        %v3831 = vmul.f32 %v3820, 50.0
        %v3832 = vmul.f32 %v3823, 50.0
        %v3833 = vmul.f32 %v3826, 50.0
        %v3834 = vmul.f32 %v3829, 50.0
        %v3835 = vand.u32 2147483647, %v3831
        %vm3836 = vcmp.le.f32.partialorder %v3835, 0.7853982
        %vm3837 = vcmp.lt.s32.totalorder %v3831, 0
        %v3838 = vand.u32 %v3831, 2139095040
        %v3839 = vshrl.u32 %v3838, 23
        %v3840 = vsub.s32 %v3839, 127
        %v3841 = vand.u32 2147483647, %v3831
        %v3842 = vand.u32 %v3841, 8388607
        %v3843 = vor.u32 %v3842, 8388608
        %v3844 = vsub.s32 0, %v3843
        %v3845 = vadd.s32 %v3840, 1
        %vm3846 = vcmp.gt.s32.totalorder %v3845, 0
        %v3847 = vsel %vm3846, %v3845, 0
        %v3848 = vshrl.u32 %v3847, 5
        %v3849 = vand.u32 %v3847, 31
        %v3850 = vsub.s32 32, %v3849
        %v3851 = vshrl.u32 683565275, %v3850
        %v3852 = vshll.u32 683565275, %v3849
        %v3853 = vshrl.u32 2475754826, %v3850
        %v3854 = vor.u32 %v3852, %v3853
        %v3855 = vshll.u32 2475754826, %v3849
        %v3856 = vshrl.u32 2131351028, %v3850
        %v3857 = vor.u32 %v3855, %v3856
        %v3858 = vshll.u32 2131351028, %v3849
        %v3859 = vshrl.u32 2102212464, %v3850
        %v3860 = vor.u32 %v3858, %v3859
        %v3861 = vshll.u32 2102212464, %v3849
        %v3862 = vshrl.u32 920167782, %v3850
        %v3863 = vor.u32 %v3861, %v3862
        %v3864 = vshll.u32 920167782, %v3849
        %v3865 = vshrl.u32 1326507024, %v3850
        %v3866 = vor.u32 %v3864, %v3865
        %vm3867 = vcmp.lt.s32.totalorder %v3848, 1
        %vm3868 = vcmp.lt.s32.totalorder %v3848, 2
        %vm3869 = vcmp.lt.s32.totalorder %v3848, 3
        %vm3870 = vcmp.lt.s32.totalorder %v3848, 4
        %v3871 = vsel %vm3867, %v3851, %v3854
        %v3872 = vsel %vm3870, %v3860, 2102212464
        %v3873 = vsel %vm3869, %v3857, %v3872
        %v3874 = vsel %vm3868, %v3871, %v3873
        %v3875 = vsel %vm3867, %v3854, %v3857
        %v3876 = vsel %vm3870, %v3863, 920167782
        %v3877 = vsel %vm3869, %v3860, %v3876
        %v3878 = vsel %vm3868, %v3875, %v3877
        %v3879 = vsel %vm3867, %v3857, %v3860
        %v3880 = vsel %vm3870, %v3866, 1326507024
        %v3881 = vsel %vm3869, %v3863, %v3880
        %v3882 = vsel %vm3868, %v3879, %v3881
        %v3883 = vshll.u32 %v3843, 8
        %v3884 = vand.u32 %v3883, 65535
        %v3885 = vshrl.u32 %v3883, 16
        %v3886 = vand.u32 %v3882, 65535
        %v3887 = vshrl.u32 %v3882, 16
        %v3888 = vmul.u32 %v3884, %v3886
        %v3889 = vmul.u32 %v3884, %v3887
        %v3890 = vmul.u32 %v3885, %v3886
        %v3891 = vmul.u32 %v3885, %v3887
        %v3892 = vshll.u32 %v3889, 16
        %v3893 = vshrl.u32 %v3889, 16
        %v3894 = vshll.u32 %v3890, 16
        %v3895 = vshrl.u32 %v3890, 16
        %vm3896 = vc.u32 %v3888, %v3892
        %v3897 = vsel %vm3896, 1, 0
        %v3898 = vadd.s32 %v3888, %v3892
        %v3899 = vadd.s32 %v3891, %v3897
        %vm3900 = vc.u32 %v3898, %v3894
        %v3901 = vsel %vm3900, 1, 0
        %v3902 = vadd.s32 %v3898, %v3894
        %v3903 = vadd.s32 %v3899, %v3901
        %v3904 = vadd.s32 %v3903, %v3893
        %v3905 = vadd.s32 %v3904, %v3895
        %v3906 = vand.u32 %v3883, 65535
        %v3907 = vshrl.u32 %v3883, 16
        %v3908 = vand.u32 %v3878, 65535
        %v3909 = vshrl.u32 %v3878, 16
        %v3910 = vmul.u32 %v3906, %v3908
        %v3911 = vmul.u32 %v3906, %v3909
        %v3912 = vmul.u32 %v3907, %v3908
        %v3913 = vmul.u32 %v3907, %v3909
        %v3914 = vshll.u32 %v3911, 16
        %v3915 = vshrl.u32 %v3911, 16
        %v3916 = vshll.u32 %v3912, 16
        %v3917 = vshrl.u32 %v3912, 16
        %vm3918 = vc.u32 %v3910, %v3914
        %v3919 = vsel %vm3918, 1, 0
        %v3920 = vadd.s32 %v3910, %v3914
        %v3921 = vadd.s32 %v3913, %v3919
        %vm3922 = vc.u32 %v3920, %v3916
        %v3923 = vsel %vm3922, 1, 0
        %v3924 = vadd.s32 %v3920, %v3916
        %v3925 = vadd.s32 %v3921, %v3923
        %v3926 = vadd.s32 %v3925, %v3915
        %v3927 = vadd.s32 %v3926, %v3917
        %v3928 = vmul.u32 %v3883, %v3874
        %v3929 = vadd.s32 %v3905, %v3924
        %vm3930 = vc.u32 %v3905, %v3924
        %v3931 = vadd.s32 %v3927, 1
        %v3932 = vsel %vm3930, %v3931, %v3927
        %v3933 = vadd.s32 %v3928, %v3932
        %v3934 = vadd.s32 %v3933, 536870912
        %v3935 = vshrl.u32 %v3934, 30
        %v3936 = vshll.u32 %v3935, 30
        %v3937 = vsub.s32 %v3933, %v3936
        %vm3938 = vcmp.lt.s32.totalorder %v3937, 0
        %v3939 = vsub.s32 0, %v3937
        %v3940 = vsel %vm3938, %v3939, %v3937
        %v3941 = vclz %v3940
        %v3942 = vsub.s32 %v3941, 2
        %vm3943 = vcmp.gt.s32.totalorder 0, %v3942
        %v3944 = vsel %vm3943, 0, %v3942
        %v3945 = vsub.s32 32, %v3944
        %v3946 = vshll.u32 %v3937, %v3944
        %v3947 = vshrl.u32 %v3929, %v3945
        %v3948 = vor.u32 %v3946, %v3947
        %v3949 = vsub.s32 4294967266, %v3944
        %v3950 = vadd.s32 %v3949, 127
        %v3951 = vshll.u32 %v3950, 23
        %v3952 = vor.u32 4788187, %v3951
        %v3953 = vand.u32 2147483647, %v3952
        %v3955 = vcvt.s32.f32 %v3948
        %v3956 = vmul.f32 %v3955, %v3953
        %v3957 = vxor.u32 %v3956, 2147483648
        %v3958 = vsel %vm3837, %v3957, %v3956
        %v3959 = vsub.s32 4, %v3935
        %v3960 = vsel %vm3837, %v3959, %v3935
        %v3961 = vsel %vm3836, %v3831, %v3958
        %v3962 = vsel %vm3836, 0, %v3960
        %v3963 = vmul.f32 %v3961, %v3961
        %v3964 = vmul.f32 %v3963, -0.001358992
        %v3965 = vadd.f32 %v3964, 0.041655596
        %v3966 = vmul.f32 %v3963, %v3965
        %v3967 = vadd.f32 %v3966, -0.4999988
        %v3968 = vmul.f32 %v3963, %v3967
        %v3969 = vadd.f32 1.0, %v3968
        %v3970 = vmul.f32 %v3961, %v3961
        %v3971 = vmul.f32 %v3970, -0.00019511016
        %v3972 = vadd.f32 %v3971, 0.008332121
        %v3973 = vmul.f32 %v3970, %v3972
        %v3974 = vadd.f32 %v3973, -0.16666654
        %v3975 = vmul.f32 %v3970, %v3974
        %v3976 = vadd.f32 %v3975, 1.0
        %v3977 = vmul.f32 %v3976, %v3961
        %vm3978 = vweird.f32 %v3831
        %v3979 = vadd.s32 %v3962, 3
        %v3980 = vand.u32 %v3979, 3
        %vm3981 = vcmp.lt.s32.totalorder %v3980, 2
        %vm3982 = vcmp.eq.s32.totalorder %v3980, 0
        %v3983 = vxor.u32 %v3977, 2147483648
        %v3984 = vsel %vm3982, %v3969, %v3983
        %vm3985 = vcmp.eq.s32.totalorder %v3980, 2
        %v3986 = vxor.u32 %v3969, 2147483648
        %v3987 = vsel %vm3985, %v3986, %v3977
        %v3988 = vsel %vm3981, %v3984, %v3987
        %v3989 = vsel %vm3978, nan, %v3988
        %v3990 = vand.u32 2147483647, %v3832
        %vm3991 = vcmp.le.f32.partialorder %v3990, 0.7853982
        %vm3992 = vcmp.lt.s32.totalorder %v3832, 0
        %v3993 = vand.u32 %v3832, 2139095040
        %v3994 = vshrl.u32 %v3993, 23
        %v3995 = vsub.s32 %v3994, 127
        %v3996 = vand.u32 2147483647, %v3832
        %v3997 = vand.u32 %v3996, 8388607
        %v3998 = vor.u32 %v3997, 8388608
        %v3999 = vsub.s32 0, %v3998
        %v4000 = vadd.s32 %v3995, 1
        %vm4001 = vcmp.gt.s32.totalorder %v4000, 0
        %v4002 = vsel %vm4001, %v4000, 0
        %v4003 = vshrl.u32 %v4002, 5
        %v4004 = vand.u32 %v4002, 31
        %v4005 = vsub.s32 32, %v4004
        %v4006 = vshrl.u32 683565275, %v4005
        %v4007 = vshll.u32 683565275, %v4004
        %v4008 = vshrl.u32 2475754826, %v4005
        %v4009 = vor.u32 %v4007, %v4008
        %v4010 = vshll.u32 2475754826, %v4004
        %v4011 = vshrl.u32 2131351028, %v4005
        %v4012 = vor.u32 %v4010, %v4011
        %v4013 = vshll.u32 2131351028, %v4004
        %v4014 = vshrl.u32 2102212464, %v4005
        %v4015 = vor.u32 %v4013, %v4014
        %v4016 = vshll.u32 2102212464, %v4004
        %v4017 = vshrl.u32 920167782, %v4005
        %v4018 = vor.u32 %v4016, %v4017
        %v4019 = vshll.u32 920167782, %v4004
        %v4020 = vshrl.u32 1326507024, %v4005
        %v4021 = vor.u32 %v4019, %v4020
        %vm4022 = vcmp.lt.s32.totalorder %v4003, 1
        %vm4023 = vcmp.lt.s32.totalorder %v4003, 2
        %vm4024 = vcmp.lt.s32.totalorder %v4003, 3
        %vm4025 = vcmp.lt.s32.totalorder %v4003, 4
        %v4026 = vsel %vm4022, %v4006, %v4009
        %v4027 = vsel %vm4025, %v4015, 2102212464
        %v4028 = vsel %vm4024, %v4012, %v4027
        %v4029 = vsel %vm4023, %v4026, %v4028
        %v4030 = vsel %vm4022, %v4009, %v4012
        %v4031 = vsel %vm4025, %v4018, 920167782
        %v4032 = vsel %vm4024, %v4015, %v4031
        %v4033 = vsel %vm4023, %v4030, %v4032
        %v4034 = vsel %vm4022, %v4012, %v4015
        %v4035 = vsel %vm4025, %v4021, 1326507024
        %v4036 = vsel %vm4024, %v4018, %v4035
        %v4037 = vsel %vm4023, %v4034, %v4036
        %v4038 = vshll.u32 %v3998, 8
        %v4039 = vand.u32 %v4038, 65535
        %v4040 = vshrl.u32 %v4038, 16
        %v4041 = vand.u32 %v4037, 65535
        %v4042 = vshrl.u32 %v4037, 16
        %v4043 = vmul.u32 %v4039, %v4041
        %v4044 = vmul.u32 %v4039, %v4042
        %v4045 = vmul.u32 %v4040, %v4041
        %v4046 = vmul.u32 %v4040, %v4042
        %v4047 = vshll.u32 %v4044, 16
        %v4048 = vshrl.u32 %v4044, 16
        %v4049 = vshll.u32 %v4045, 16
        %v4050 = vshrl.u32 %v4045, 16
        %vm4051 = vc.u32 %v4043, %v4047
        %v4052 = vsel %vm4051, 1, 0
        %v4053 = vadd.s32 %v4043, %v4047
        %v4054 = vadd.s32 %v4046, %v4052
        %vm4055 = vc.u32 %v4053, %v4049
        %v4056 = vsel %vm4055, 1, 0
        %v4057 = vadd.s32 %v4053, %v4049
        %v4058 = vadd.s32 %v4054, %v4056
        %v4059 = vadd.s32 %v4058, %v4048
        %v4060 = vadd.s32 %v4059, %v4050
        %v4061 = vand.u32 %v4038, 65535
        %v4062 = vshrl.u32 %v4038, 16
        %v4063 = vand.u32 %v4033, 65535
        %v4064 = vshrl.u32 %v4033, 16
        %v4065 = vmul.u32 %v4061, %v4063
        %v4066 = vmul.u32 %v4061, %v4064
        %v4067 = vmul.u32 %v4062, %v4063
        %v4068 = vmul.u32 %v4062, %v4064
        %v4069 = vshll.u32 %v4066, 16
        %v4070 = vshrl.u32 %v4066, 16
        %v4071 = vshll.u32 %v4067, 16
        %v4072 = vshrl.u32 %v4067, 16
        %vm4073 = vc.u32 %v4065, %v4069
        %v4074 = vsel %vm4073, 1, 0
        %v4075 = vadd.s32 %v4065, %v4069
        %v4076 = vadd.s32 %v4068, %v4074
        %vm4077 = vc.u32 %v4075, %v4071
        %v4078 = vsel %vm4077, 1, 0
        %v4079 = vadd.s32 %v4075, %v4071
        %v4080 = vadd.s32 %v4076, %v4078
        %v4081 = vadd.s32 %v4080, %v4070
        %v4082 = vadd.s32 %v4081, %v4072
        %v4083 = vmul.u32 %v4038, %v4029
        %v4084 = vadd.s32 %v4060, %v4079
        %vm4085 = vc.u32 %v4060, %v4079
        %v4086 = vadd.s32 %v4082, 1
        %v4087 = vsel %vm4085, %v4086, %v4082
        %v4088 = vadd.s32 %v4083, %v4087
        %v4089 = vadd.s32 %v4088, 536870912
        %v4090 = vshrl.u32 %v4089, 30
        %v4091 = vshll.u32 %v4090, 30
        %v4092 = vsub.s32 %v4088, %v4091
        %vm4093 = vcmp.lt.s32.totalorder %v4092, 0
        %v4094 = vsub.s32 0, %v4092
        %v4095 = vsel %vm4093, %v4094, %v4092
        %v4096 = vclz %v4095
        %v4097 = vsub.s32 %v4096, 2
        %vm4098 = vcmp.gt.s32.totalorder 0, %v4097
        %v4099 = vsel %vm4098, 0, %v4097
        %v4100 = vsub.s32 32, %v4099
        %v4101 = vshll.u32 %v4092, %v4099
        %v4102 = vshrl.u32 %v4084, %v4100
        %v4103 = vor.u32 %v4101, %v4102
        %v4104 = vsub.s32 4294967266, %v4099
        %v4105 = vadd.s32 %v4104, 127
        %v4106 = vshll.u32 %v4105, 23
        %v4107 = vor.u32 4788187, %v4106
        %v4108 = vand.u32 2147483647, %v4107
        %v4110 = vcvt.s32.f32 %v4103
        %v4111 = vmul.f32 %v4110, %v4108
        %v4112 = vxor.u32 %v4111, 2147483648
        %v4113 = vsel %vm3992, %v4112, %v4111
        %v4114 = vsub.s32 4, %v4090
        %v4115 = vsel %vm3992, %v4114, %v4090
        %v4116 = vsel %vm3991, %v3832, %v4113
        %v4117 = vsel %vm3991, 0, %v4115
        %v4118 = vmul.f32 %v4116, %v4116
        %v4119 = vmul.f32 %v4118, -0.001358992
        %v4120 = vadd.f32 %v4119, 0.041655596
        %v4121 = vmul.f32 %v4118, %v4120
        %v4122 = vadd.f32 %v4121, -0.4999988
        %v4123 = vmul.f32 %v4118, %v4122
        %v4124 = vadd.f32 1.0, %v4123
        %v4125 = vmul.f32 %v4116, %v4116
        %v4126 = vmul.f32 %v4125, -0.00019511016
        %v4127 = vadd.f32 %v4126, 0.008332121
        %v4128 = vmul.f32 %v4125, %v4127
        %v4129 = vadd.f32 %v4128, -0.16666654
        %v4130 = vmul.f32 %v4125, %v4129
        %v4131 = vadd.f32 %v4130, 1.0
        %v4132 = vmul.f32 %v4131, %v4116
        %vm4133 = vweird.f32 %v3832
        %v4134 = vadd.s32 %v4117, 3
        %v4135 = vand.u32 %v4134, 3
        %vm4136 = vcmp.lt.s32.totalorder %v4135, 2
        %vm4137 = vcmp.eq.s32.totalorder %v4135, 0
        %v4138 = vxor.u32 %v4132, 2147483648
        %v4139 = vsel %vm4137, %v4124, %v4138
        %vm4140 = vcmp.eq.s32.totalorder %v4135, 2
        %v4141 = vxor.u32 %v4124, 2147483648
        %v4142 = vsel %vm4140, %v4141, %v4132
        %v4143 = vsel %vm4136, %v4139, %v4142
        %v4144 = vsel %vm4133, nan, %v4143
        %v4145 = vand.u32 2147483647, %v3833
        %vm4146 = vcmp.le.f32.partialorder %v4145, 0.7853982
        %vm4147 = vcmp.lt.s32.totalorder %v3833, 0
        %v4148 = vand.u32 %v3833, 2139095040
        %v4149 = vshrl.u32 %v4148, 23
        %v4150 = vsub.s32 %v4149, 127
        %v4151 = vand.u32 2147483647, %v3833
        %v4152 = vand.u32 %v4151, 8388607
        %v4153 = vor.u32 %v4152, 8388608
        %v4154 = vsub.s32 0, %v4153
        %v4155 = vadd.s32 %v4150, 1
        %vm4156 = vcmp.gt.s32.totalorder %v4155, 0
        %v4157 = vsel %vm4156, %v4155, 0
        %v4158 = vshrl.u32 %v4157, 5
        %v4159 = vand.u32 %v4157, 31
        %v4160 = vsub.s32 32, %v4159
        %v4161 = vshrl.u32 683565275, %v4160
        %v4162 = vshll.u32 683565275, %v4159
        %v4163 = vshrl.u32 2475754826, %v4160
        %v4164 = vor.u32 %v4162, %v4163
        %v4165 = vshll.u32 2475754826, %v4159
        %v4166 = vshrl.u32 2131351028, %v4160
        %v4167 = vor.u32 %v4165, %v4166
        %v4168 = vshll.u32 2131351028, %v4159
        %v4169 = vshrl.u32 2102212464, %v4160
        %v4170 = vor.u32 %v4168, %v4169
        %v4171 = vshll.u32 2102212464, %v4159
        %v4172 = vshrl.u32 920167782, %v4160
        %v4173 = vor.u32 %v4171, %v4172
        %v4174 = vshll.u32 920167782, %v4159
        %v4175 = vshrl.u32 1326507024, %v4160
        %v4176 = vor.u32 %v4174, %v4175
        %vm4177 = vcmp.lt.s32.totalorder %v4158, 1
        %vm4178 = vcmp.lt.s32.totalorder %v4158, 2
        %vm4179 = vcmp.lt.s32.totalorder %v4158, 3
        %vm4180 = vcmp.lt.s32.totalorder %v4158, 4
        %v4181 = vsel %vm4177, %v4161, %v4164
        %v4182 = vsel %vm4180, %v4170, 2102212464
        %v4183 = vsel %vm4179, %v4167, %v4182
        %v4184 = vsel %vm4178, %v4181, %v4183
        %v4185 = vsel %vm4177, %v4164, %v4167
        %v4186 = vsel %vm4180, %v4173, 920167782
        %v4187 = vsel %vm4179, %v4170, %v4186
        %v4188 = vsel %vm4178, %v4185, %v4187
        %v4189 = vsel %vm4177, %v4167, %v4170
        %v4190 = vsel %vm4180, %v4176, 1326507024
        %v4191 = vsel %vm4179, %v4173, %v4190
        %v4192 = vsel %vm4178, %v4189, %v4191
        %v4193 = vshll.u32 %v4153, 8
        %v4194 = vand.u32 %v4193, 65535
        %v4195 = vshrl.u32 %v4193, 16
        %v4196 = vand.u32 %v4192, 65535
        %v4197 = vshrl.u32 %v4192, 16
        %v4198 = vmul.u32 %v4194, %v4196
        %v4199 = vmul.u32 %v4194, %v4197
        %v4200 = vmul.u32 %v4195, %v4196
        %v4201 = vmul.u32 %v4195, %v4197
        %v4202 = vshll.u32 %v4199, 16
        %v4203 = vshrl.u32 %v4199, 16
        %v4204 = vshll.u32 %v4200, 16
        %v4205 = vshrl.u32 %v4200, 16
        %vm4206 = vc.u32 %v4198, %v4202
        %v4207 = vsel %vm4206, 1, 0
        %v4208 = vadd.s32 %v4198, %v4202
        %v4209 = vadd.s32 %v4201, %v4207
        %vm4210 = vc.u32 %v4208, %v4204
        %v4211 = vsel %vm4210, 1, 0
        %v4212 = vadd.s32 %v4208, %v4204
        %v4213 = vadd.s32 %v4209, %v4211
        %v4214 = vadd.s32 %v4213, %v4203
        %v4215 = vadd.s32 %v4214, %v4205
        %v4216 = vand.u32 %v4193, 65535
        %v4217 = vshrl.u32 %v4193, 16
        %v4218 = vand.u32 %v4188, 65535
        %v4219 = vshrl.u32 %v4188, 16
        %v4220 = vmul.u32 %v4216, %v4218
        %v4221 = vmul.u32 %v4216, %v4219
        %v4222 = vmul.u32 %v4217, %v4218
        %v4223 = vmul.u32 %v4217, %v4219
        %v4224 = vshll.u32 %v4221, 16
        %v4225 = vshrl.u32 %v4221, 16
        %v4226 = vshll.u32 %v4222, 16
        %v4227 = vshrl.u32 %v4222, 16
        %vm4228 = vc.u32 %v4220, %v4224
        %v4229 = vsel %vm4228, 1, 0
        %v4230 = vadd.s32 %v4220, %v4224
        %v4231 = vadd.s32 %v4223, %v4229
        %vm4232 = vc.u32 %v4230, %v4226
        %v4233 = vsel %vm4232, 1, 0
        %v4234 = vadd.s32 %v4230, %v4226
        %v4235 = vadd.s32 %v4231, %v4233
        %v4236 = vadd.s32 %v4235, %v4225
        %v4237 = vadd.s32 %v4236, %v4227
        %v4238 = vmul.u32 %v4193, %v4184
        %v4239 = vadd.s32 %v4215, %v4234
        %vm4240 = vc.u32 %v4215, %v4234
        %v4241 = vadd.s32 %v4237, 1
        %v4242 = vsel %vm4240, %v4241, %v4237
        %v4243 = vadd.s32 %v4238, %v4242
        %v4244 = vadd.s32 %v4243, 536870912
        %v4245 = vshrl.u32 %v4244, 30
        %v4246 = vshll.u32 %v4245, 30
        %v4247 = vsub.s32 %v4243, %v4246
        %vm4248 = vcmp.lt.s32.totalorder %v4247, 0
        %v4249 = vsub.s32 0, %v4247
        %v4250 = vsel %vm4248, %v4249, %v4247
        %v4251 = vclz %v4250
        %v4252 = vsub.s32 %v4251, 2
        %vm4253 = vcmp.gt.s32.totalorder 0, %v4252
        %v4254 = vsel %vm4253, 0, %v4252
        %v4255 = vsub.s32 32, %v4254
        %v4256 = vshll.u32 %v4247, %v4254
        %v4257 = vshrl.u32 %v4239, %v4255
        %v4258 = vor.u32 %v4256, %v4257
        %v4259 = vsub.s32 4294967266, %v4254
        %v4260 = vadd.s32 %v4259, 127
        %v4261 = vshll.u32 %v4260, 23
        %v4262 = vor.u32 4788187, %v4261
        %v4263 = vand.u32 2147483647, %v4262
        %v4265 = vcvt.s32.f32 %v4258
        %v4266 = vmul.f32 %v4265, %v4263
        %v4267 = vxor.u32 %v4266, 2147483648
        %v4268 = vsel %vm4147, %v4267, %v4266
        %v4269 = vsub.s32 4, %v4245
        %v4270 = vsel %vm4147, %v4269, %v4245
        %v4271 = vsel %vm4146, %v3833, %v4268
        %v4272 = vsel %vm4146, 0, %v4270
        %v4273 = vmul.f32 %v4271, %v4271
        %v4274 = vmul.f32 %v4273, -0.001358992
        %v4275 = vadd.f32 %v4274, 0.041655596
        %v4276 = vmul.f32 %v4273, %v4275
        %v4277 = vadd.f32 %v4276, -0.4999988
        %v4278 = vmul.f32 %v4273, %v4277
        %v4279 = vadd.f32 1.0, %v4278
        %v4280 = vmul.f32 %v4271, %v4271
        %v4281 = vmul.f32 %v4280, -0.00019511016
        %v4282 = vadd.f32 %v4281, 0.008332121
        %v4283 = vmul.f32 %v4280, %v4282
        %v4284 = vadd.f32 %v4283, -0.16666654
        %v4285 = vmul.f32 %v4280, %v4284
        %v4286 = vadd.f32 %v4285, 1.0
        %v4287 = vmul.f32 %v4286, %v4271
        %vm4288 = vweird.f32 %v3833
        %v4289 = vadd.s32 %v4272, 3
        %v4290 = vand.u32 %v4289, 3
        %vm4291 = vcmp.lt.s32.totalorder %v4290, 2
        %vm4292 = vcmp.eq.s32.totalorder %v4290, 0
        %v4293 = vxor.u32 %v4287, 2147483648
        %v4294 = vsel %vm4292, %v4279, %v4293
        %vm4295 = vcmp.eq.s32.totalorder %v4290, 2
        %v4296 = vxor.u32 %v4279, 2147483648
        %v4297 = vsel %vm4295, %v4296, %v4287
        %v4298 = vsel %vm4291, %v4294, %v4297
        %v4299 = vsel %vm4288, nan, %v4298
        %v4300 = vand.u32 2147483647, %v3834
        %vm4301 = vcmp.le.f32.partialorder %v4300, 0.7853982
        %vm4302 = vcmp.lt.s32.totalorder %v3834, 0
        %v4303 = vand.u32 %v3834, 2139095040
        %v4304 = vshrl.u32 %v4303, 23
        %v4305 = vsub.s32 %v4304, 127
        %v4306 = vand.u32 2147483647, %v3834
        %v4307 = vand.u32 %v4306, 8388607
        %v4308 = vor.u32 %v4307, 8388608
        %v4309 = vsub.s32 0, %v4308
        %v4310 = vadd.s32 %v4305, 1
        %vm4311 = vcmp.gt.s32.totalorder %v4310, 0
        %v4312 = vsel %vm4311, %v4310, 0
        %v4313 = vshrl.u32 %v4312, 5
        %v4314 = vand.u32 %v4312, 31
        %v4315 = vsub.s32 32, %v4314
        %v4316 = vshrl.u32 683565275, %v4315
        %v4317 = vshll.u32 683565275, %v4314
        %v4318 = vshrl.u32 2475754826, %v4315
        %v4319 = vor.u32 %v4317, %v4318
        %v4320 = vshll.u32 2475754826, %v4314
        %v4321 = vshrl.u32 2131351028, %v4315
        %v4322 = vor.u32 %v4320, %v4321
        %v4323 = vshll.u32 2131351028, %v4314
        %v4324 = vshrl.u32 2102212464, %v4315
        %v4325 = vor.u32 %v4323, %v4324
        %v4326 = vshll.u32 2102212464, %v4314
        %v4327 = vshrl.u32 920167782, %v4315
        %v4328 = vor.u32 %v4326, %v4327
        %v4329 = vshll.u32 920167782, %v4314
        %v4330 = vshrl.u32 1326507024, %v4315
        %v4331 = vor.u32 %v4329, %v4330
        %vm4332 = vcmp.lt.s32.totalorder %v4313, 1
        %vm4333 = vcmp.lt.s32.totalorder %v4313, 2
        %vm4334 = vcmp.lt.s32.totalorder %v4313, 3
        %vm4335 = vcmp.lt.s32.totalorder %v4313, 4
        %v4336 = vsel %vm4332, %v4316, %v4319
        %v4337 = vsel %vm4335, %v4325, 2102212464
        %v4338 = vsel %vm4334, %v4322, %v4337
        %v4339 = vsel %vm4333, %v4336, %v4338
        %v4340 = vsel %vm4332, %v4319, %v4322
        %v4341 = vsel %vm4335, %v4328, 920167782
        %v4342 = vsel %vm4334, %v4325, %v4341
        %v4343 = vsel %vm4333, %v4340, %v4342
        %v4344 = vsel %vm4332, %v4322, %v4325
        %v4345 = vsel %vm4335, %v4331, 1326507024
        %v4346 = vsel %vm4334, %v4328, %v4345
        %v4347 = vsel %vm4333, %v4344, %v4346
        %v4348 = vshll.u32 %v4308, 8
        %v4349 = vand.u32 %v4348, 65535
        %v4350 = vshrl.u32 %v4348, 16
        %v4351 = vand.u32 %v4347, 65535
        %v4352 = vshrl.u32 %v4347, 16
        %v4353 = vmul.u32 %v4349, %v4351
        %v4354 = vmul.u32 %v4349, %v4352
        %v4355 = vmul.u32 %v4350, %v4351
        %v4356 = vmul.u32 %v4350, %v4352
        %v4357 = vshll.u32 %v4354, 16
        %v4358 = vshrl.u32 %v4354, 16
        %v4359 = vshll.u32 %v4355, 16
        %v4360 = vshrl.u32 %v4355, 16
        %vm4361 = vc.u32 %v4353, %v4357
        %v4362 = vsel %vm4361, 1, 0
        %v4363 = vadd.s32 %v4353, %v4357
        %v4364 = vadd.s32 %v4356, %v4362
        %vm4365 = vc.u32 %v4363, %v4359
        %v4366 = vsel %vm4365, 1, 0
        %v4367 = vadd.s32 %v4363, %v4359
        %v4368 = vadd.s32 %v4364, %v4366
        %v4369 = vadd.s32 %v4368, %v4358
        %v4370 = vadd.s32 %v4369, %v4360
        %v4371 = vand.u32 %v4348, 65535
        %v4372 = vshrl.u32 %v4348, 16
        %v4373 = vand.u32 %v4343, 65535
        %v4374 = vshrl.u32 %v4343, 16
        %v4375 = vmul.u32 %v4371, %v4373
        %v4376 = vmul.u32 %v4371, %v4374
        %v4377 = vmul.u32 %v4372, %v4373
        %v4378 = vmul.u32 %v4372, %v4374
        %v4379 = vshll.u32 %v4376, 16
        %v4380 = vshrl.u32 %v4376, 16
        %v4381 = vshll.u32 %v4377, 16
        %v4382 = vshrl.u32 %v4377, 16
        %vm4383 = vc.u32 %v4375, %v4379
        %v4384 = vsel %vm4383, 1, 0
        %v4385 = vadd.s32 %v4375, %v4379
        %v4386 = vadd.s32 %v4378, %v4384
        %vm4387 = vc.u32 %v4385, %v4381
        %v4388 = vsel %vm4387, 1, 0
        %v4389 = vadd.s32 %v4385, %v4381
        %v4390 = vadd.s32 %v4386, %v4388
        %v4391 = vadd.s32 %v4390, %v4380
        %v4392 = vadd.s32 %v4391, %v4382
        %v4393 = vmul.u32 %v4348, %v4339
        %v4394 = vadd.s32 %v4370, %v4389
        %vm4395 = vc.u32 %v4370, %v4389
        %v4396 = vadd.s32 %v4392, 1
        %v4397 = vsel %vm4395, %v4396, %v4392
        %v4398 = vadd.s32 %v4393, %v4397
        %v4399 = vadd.s32 %v4398, 536870912
        %v4400 = vshrl.u32 %v4399, 30
        %v4401 = vshll.u32 %v4400, 30
        %v4402 = vsub.s32 %v4398, %v4401
        %vm4403 = vcmp.lt.s32.totalorder %v4402, 0
        %v4404 = vsub.s32 0, %v4402
        %v4405 = vsel %vm4403, %v4404, %v4402
        %v4406 = vclz %v4405
        %v4407 = vsub.s32 %v4406, 2
        %vm4408 = vcmp.gt.s32.totalorder 0, %v4407
        %v4409 = vsel %vm4408, 0, %v4407
        %v4410 = vsub.s32 32, %v4409
        %v4411 = vshll.u32 %v4402, %v4409
        %v4412 = vshrl.u32 %v4394, %v4410
        %v4413 = vor.u32 %v4411, %v4412
        %v4414 = vsub.s32 4294967266, %v4409
        %v4415 = vadd.s32 %v4414, 127
        %v4416 = vshll.u32 %v4415, 23
        %v4417 = vor.u32 4788187, %v4416
        %v4418 = vand.u32 2147483647, %v4417
        %v4420 = vcvt.s32.f32 %v4413
        %v4421 = vmul.f32 %v4420, %v4418
        %v4422 = vxor.u32 %v4421, 2147483648
        %v4423 = vsel %vm4302, %v4422, %v4421
        %v4424 = vsub.s32 4, %v4400
        %v4425 = vsel %vm4302, %v4424, %v4400
        %v4426 = vsel %vm4301, %v3834, %v4423
        %v4427 = vsel %vm4301, 0, %v4425
        %v4428 = vmul.f32 %v4426, %v4426
        %v4429 = vmul.f32 %v4428, -0.001358992
        %v4430 = vadd.f32 %v4429, 0.041655596
        %v4431 = vmul.f32 %v4428, %v4430
        %v4432 = vadd.f32 %v4431, -0.4999988
        %v4433 = vmul.f32 %v4428, %v4432
        %v4434 = vadd.f32 1.0, %v4433
        %v4435 = vmul.f32 %v4426, %v4426
        %v4436 = vmul.f32 %v4435, -0.00019511016
        %v4437 = vadd.f32 %v4436, 0.008332121
        %v4438 = vmul.f32 %v4435, %v4437
        %v4439 = vadd.f32 %v4438, -0.16666654
        %v4440 = vmul.f32 %v4435, %v4439
        %v4441 = vadd.f32 %v4440, 1.0
        %v4442 = vmul.f32 %v4441, %v4426
        %vm4443 = vweird.f32 %v3834
        %v4444 = vadd.s32 %v4427, 3
        %v4445 = vand.u32 %v4444, 3
        %vm4446 = vcmp.lt.s32.totalorder %v4445, 2
        %vm4447 = vcmp.eq.s32.totalorder %v4445, 0
        %v4448 = vxor.u32 %v4442, 2147483648
        %v4449 = vsel %vm4447, %v4434, %v4448
        %vm4450 = vcmp.eq.s32.totalorder %v4445, 2
        %v4451 = vxor.u32 %v4434, 2147483648
        %v4452 = vsel %vm4450, %v4451, %v4442
        %v4453 = vsel %vm4446, %v4449, %v4452
        %v4454 = vsel %vm4443, nan, %v4453
        %s4455 = scalar_lea.vmem %s3, 160
        %v4456 = vld [vmem:[%s4455] sm:$0xff]
        %v4457 = vld [vmem:[%s4455 + $0x8] sm:$0xff]
        %v4458 = vld [vmem:[%s4455 + $0x10] sm:$0xff]
        %v4459 = vld [vmem:[%s4455 + $0x18] sm:$0xff]
        %s4460 = scalar_lea.vmem %s4, 160
        %v4461 = vld [vmem:[%s4460] sm:$0xff]
        %v4462 = vld [vmem:[%s4460 + $0x8] sm:$0xff]
        %v4463 = vld [vmem:[%s4460 + $0x10] sm:$0xff]
        %v4464 = vld [vmem:[%s4460 + $0x18] sm:$0xff]
        %4466 = vset.pattern.permute.xlu0 0
        %4467 = vperm.xlu0 %4466, %v4461
        %v4468 = vpop.permute.xlu0 %4467
        %4471 = vset.pattern.permute.xlu0 0
        %4472 = vperm.xlu0 %4471, %v4462
        %v4473 = vpop.permute.xlu0 %4472
        %4476 = vset.pattern.permute.xlu0 0
        %4477 = vperm.xlu0 %4476, %v4463
        %v4478 = vpop.permute.xlu0 %4477
        %4481 = vset.pattern.permute.xlu0 0
        %4482 = vperm.xlu0 %4481, %v4464
        %v4483 = vpop.permute.xlu0 %4482
        %v4486 = vsel %vm1009, %v4456, 0
        %v4489 = vsel %vm1009, %v4457, 0
        %v4492 = vsel %vm1009, %v4458, 0
        %v4495 = vsel %vm1009, %v4459, 0
        %4497 = vmatpush.msra.mxu0 0.0
        %4498 = vmatpush.msra.mxu0 0.0
        %4499 = vmatpush.msra.mxu0 0.0
        %4500 = vmatpush.msra.mxu0 0.0
        %4501 = vmatpush.msra.mxu0 0.0
        %4502 = vmatpush.msra.mxu0 0.0
        %4503 = vmatpush.msra.mxu0 0.0
        %4504 = vmatpush.msra.mxu0 0.0
        %4505 = vmatpush.msra.mxu0 0.0
        %4506 = vmatpush.msra.mxu0 0.0
        %4507 = vmatpush.msra.mxu0 0.0
        %4508 = vmatpush.msra.mxu0 0.0
        %4509 = vmatpush.msra.mxu0 %v4454
        %4510 = vmatpush.msra.mxu0 %v4299
        %4511 = vmatpush.msra.mxu0 %v4144
        %4512 = vmatpush.msra.mxu0 %v3989
        %4513 = vmatmul.f32.gmra.mxu0 %v4486
        %v4514 = vpop.f32.mrf.mxu0
        %v4515 = vadd.f32 %v4468, %v4514
        %4516 = vmatmul.f32.gmra.mxu0 %v4489
        %v4517 = vpop.f32.mrf.mxu0
        %v4518 = vadd.f32 %v4473, %v4517
        %4519 = vmatmul.f32.gmra.mxu0 %v4492
        %v4520 = vpop.f32.mrf.mxu0
        %v4521 = vadd.f32 %v4478, %v4520
        %4522 = vmatmul.f32.gmra.mxu0 %v4495
        %v4523 = vpop.f32.mrf.mxu0
        %v4524 = vadd.f32 %v4483, %v4523
        %4525 = vdwg.mxu0
        %v4526 = vmul.f32 %v4515, 50.0
        %v4527 = vmul.f32 %v4518, 50.0
        %v4528 = vmul.f32 %v4521, 50.0
        %v4529 = vmul.f32 %v4524, 50.0
        %v4530 = vand.u32 2147483647, %v4526
        %vm4531 = vcmp.le.f32.partialorder %v4530, 0.7853982
        %vm4532 = vcmp.lt.s32.totalorder %v4526, 0
        %v4533 = vand.u32 %v4526, 2139095040
        %v4534 = vshrl.u32 %v4533, 23
        %v4535 = vsub.s32 %v4534, 127
        %v4536 = vand.u32 2147483647, %v4526
        %v4537 = vand.u32 %v4536, 8388607
        %v4538 = vor.u32 %v4537, 8388608
        %v4539 = vsub.s32 0, %v4538
        %v4540 = vadd.s32 %v4535, 1
        %vm4541 = vcmp.gt.s32.totalorder %v4540, 0
        %v4542 = vsel %vm4541, %v4540, 0
        %v4543 = vshrl.u32 %v4542, 5
        %v4544 = vand.u32 %v4542, 31
        %v4545 = vsub.s32 32, %v4544
        %v4546 = vshrl.u32 683565275, %v4545
        %v4547 = vshll.u32 683565275, %v4544
        %v4548 = vshrl.u32 2475754826, %v4545
        %v4549 = vor.u32 %v4547, %v4548
        %v4550 = vshll.u32 2475754826, %v4544
        %v4551 = vshrl.u32 2131351028, %v4545
        %v4552 = vor.u32 %v4550, %v4551
        %v4553 = vshll.u32 2131351028, %v4544
        %v4554 = vshrl.u32 2102212464, %v4545
        %v4555 = vor.u32 %v4553, %v4554
        %v4556 = vshll.u32 2102212464, %v4544
        %v4557 = vshrl.u32 920167782, %v4545
        %v4558 = vor.u32 %v4556, %v4557
        %v4559 = vshll.u32 920167782, %v4544
        %v4560 = vshrl.u32 1326507024, %v4545
        %v4561 = vor.u32 %v4559, %v4560
        %vm4562 = vcmp.lt.s32.totalorder %v4543, 1
        %vm4563 = vcmp.lt.s32.totalorder %v4543, 2
        %vm4564 = vcmp.lt.s32.totalorder %v4543, 3
        %vm4565 = vcmp.lt.s32.totalorder %v4543, 4
        %v4566 = vsel %vm4562, %v4546, %v4549
        %v4567 = vsel %vm4565, %v4555, 2102212464
        %v4568 = vsel %vm4564, %v4552, %v4567
        %v4569 = vsel %vm4563, %v4566, %v4568
        %v4570 = vsel %vm4562, %v4549, %v4552
        %v4571 = vsel %vm4565, %v4558, 920167782
        %v4572 = vsel %vm4564, %v4555, %v4571
        %v4573 = vsel %vm4563, %v4570, %v4572
        %v4574 = vsel %vm4562, %v4552, %v4555
        %v4575 = vsel %vm4565, %v4561, 1326507024
        %v4576 = vsel %vm4564, %v4558, %v4575
        %v4577 = vsel %vm4563, %v4574, %v4576
        %v4578 = vshll.u32 %v4538, 8
        %v4579 = vand.u32 %v4578, 65535
        %v4580 = vshrl.u32 %v4578, 16
        %v4581 = vand.u32 %v4577, 65535
        %v4582 = vshrl.u32 %v4577, 16
        %v4583 = vmul.u32 %v4579, %v4581
        %v4584 = vmul.u32 %v4579, %v4582
        %v4585 = vmul.u32 %v4580, %v4581
        %v4586 = vmul.u32 %v4580, %v4582
        %v4587 = vshll.u32 %v4584, 16
        %v4588 = vshrl.u32 %v4584, 16
        %v4589 = vshll.u32 %v4585, 16
        %v4590 = vshrl.u32 %v4585, 16
        %vm4591 = vc.u32 %v4583, %v4587
        %v4592 = vsel %vm4591, 1, 0
        %v4593 = vadd.s32 %v4583, %v4587
        %v4594 = vadd.s32 %v4586, %v4592
        %vm4595 = vc.u32 %v4593, %v4589
        %v4596 = vsel %vm4595, 1, 0
        %v4597 = vadd.s32 %v4593, %v4589
        %v4598 = vadd.s32 %v4594, %v4596
        %v4599 = vadd.s32 %v4598, %v4588
        %v4600 = vadd.s32 %v4599, %v4590
        %v4601 = vand.u32 %v4578, 65535
        %v4602 = vshrl.u32 %v4578, 16
        %v4603 = vand.u32 %v4573, 65535
        %v4604 = vshrl.u32 %v4573, 16
        %v4605 = vmul.u32 %v4601, %v4603
        %v4606 = vmul.u32 %v4601, %v4604
        %v4607 = vmul.u32 %v4602, %v4603
        %v4608 = vmul.u32 %v4602, %v4604
        %v4609 = vshll.u32 %v4606, 16
        %v4610 = vshrl.u32 %v4606, 16
        %v4611 = vshll.u32 %v4607, 16
        %v4612 = vshrl.u32 %v4607, 16
        %vm4613 = vc.u32 %v4605, %v4609
        %v4614 = vsel %vm4613, 1, 0
        %v4615 = vadd.s32 %v4605, %v4609
        %v4616 = vadd.s32 %v4608, %v4614
        %vm4617 = vc.u32 %v4615, %v4611
        %v4618 = vsel %vm4617, 1, 0
        %v4619 = vadd.s32 %v4615, %v4611
        %v4620 = vadd.s32 %v4616, %v4618
        %v4621 = vadd.s32 %v4620, %v4610
        %v4622 = vadd.s32 %v4621, %v4612
        %v4623 = vmul.u32 %v4578, %v4569
        %v4624 = vadd.s32 %v4600, %v4619
        %vm4625 = vc.u32 %v4600, %v4619
        %v4626 = vadd.s32 %v4622, 1
        %v4627 = vsel %vm4625, %v4626, %v4622
        %v4628 = vadd.s32 %v4623, %v4627
        %v4629 = vadd.s32 %v4628, 536870912
        %v4630 = vshrl.u32 %v4629, 30
        %v4631 = vshll.u32 %v4630, 30
        %v4632 = vsub.s32 %v4628, %v4631
        %vm4633 = vcmp.lt.s32.totalorder %v4632, 0
        %v4634 = vsub.s32 0, %v4632
        %v4635 = vsel %vm4633, %v4634, %v4632
        %v4636 = vclz %v4635
        %v4637 = vsub.s32 %v4636, 2
        %vm4638 = vcmp.gt.s32.totalorder 0, %v4637
        %v4639 = vsel %vm4638, 0, %v4637
        %v4640 = vsub.s32 32, %v4639
        %v4641 = vshll.u32 %v4632, %v4639
        %v4642 = vshrl.u32 %v4624, %v4640
        %v4643 = vor.u32 %v4641, %v4642
        %v4644 = vsub.s32 4294967266, %v4639
        %v4645 = vadd.s32 %v4644, 127
        %v4646 = vshll.u32 %v4645, 23
        %v4647 = vor.u32 4788187, %v4646
        %v4648 = vand.u32 2147483647, %v4647
        %v4650 = vcvt.s32.f32 %v4643
        %v4651 = vmul.f32 %v4650, %v4648
        %v4652 = vxor.u32 %v4651, 2147483648
        %v4653 = vsel %vm4532, %v4652, %v4651
        %v4654 = vsub.s32 4, %v4630
        %v4655 = vsel %vm4532, %v4654, %v4630
        %v4656 = vsel %vm4531, %v4526, %v4653
        %v4657 = vsel %vm4531, 0, %v4655
        %v4658 = vmul.f32 %v4656, %v4656
        %v4659 = vmul.f32 %v4658, -0.001358992
        %v4660 = vadd.f32 %v4659, 0.041655596
        %v4661 = vmul.f32 %v4658, %v4660
        %v4662 = vadd.f32 %v4661, -0.4999988
        %v4663 = vmul.f32 %v4658, %v4662
        %v4664 = vadd.f32 1.0, %v4663
        %v4665 = vmul.f32 %v4656, %v4656
        %v4666 = vmul.f32 %v4665, -0.00019511016
        %v4667 = vadd.f32 %v4666, 0.008332121
        %v4668 = vmul.f32 %v4665, %v4667
        %v4669 = vadd.f32 %v4668, -0.16666654
        %v4670 = vmul.f32 %v4665, %v4669
        %v4671 = vadd.f32 %v4670, 1.0
        %v4672 = vmul.f32 %v4671, %v4656
        %vm4673 = vweird.f32 %v4526
        %v4674 = vadd.s32 %v4657, 3
        %v4675 = vand.u32 %v4674, 3
        %vm4676 = vcmp.lt.s32.totalorder %v4675, 2
        %vm4677 = vcmp.eq.s32.totalorder %v4675, 0
        %v4678 = vxor.u32 %v4672, 2147483648
        %v4679 = vsel %vm4677, %v4664, %v4678
        %vm4680 = vcmp.eq.s32.totalorder %v4675, 2
        %v4681 = vxor.u32 %v4664, 2147483648
        %v4682 = vsel %vm4680, %v4681, %v4672
        %v4683 = vsel %vm4676, %v4679, %v4682
        %v4684 = vsel %vm4673, nan, %v4683
        %v4685 = vand.u32 2147483647, %v4527
        %vm4686 = vcmp.le.f32.partialorder %v4685, 0.7853982
        %vm4687 = vcmp.lt.s32.totalorder %v4527, 0
        %v4688 = vand.u32 %v4527, 2139095040
        %v4689 = vshrl.u32 %v4688, 23
        %v4690 = vsub.s32 %v4689, 127
        %v4691 = vand.u32 2147483647, %v4527
        %v4692 = vand.u32 %v4691, 8388607
        %v4693 = vor.u32 %v4692, 8388608
        %v4694 = vsub.s32 0, %v4693
        %v4695 = vadd.s32 %v4690, 1
        %vm4696 = vcmp.gt.s32.totalorder %v4695, 0
        %v4697 = vsel %vm4696, %v4695, 0
        %v4698 = vshrl.u32 %v4697, 5
        %v4699 = vand.u32 %v4697, 31
        %v4700 = vsub.s32 32, %v4699
        %v4701 = vshrl.u32 683565275, %v4700
        %v4702 = vshll.u32 683565275, %v4699
        %v4703 = vshrl.u32 2475754826, %v4700
        %v4704 = vor.u32 %v4702, %v4703
        %v4705 = vshll.u32 2475754826, %v4699
        %v4706 = vshrl.u32 2131351028, %v4700
        %v4707 = vor.u32 %v4705, %v4706
        %v4708 = vshll.u32 2131351028, %v4699
        %v4709 = vshrl.u32 2102212464, %v4700
        %v4710 = vor.u32 %v4708, %v4709
        %v4711 = vshll.u32 2102212464, %v4699
        %v4712 = vshrl.u32 920167782, %v4700
        %v4713 = vor.u32 %v4711, %v4712
        %v4714 = vshll.u32 920167782, %v4699
        %v4715 = vshrl.u32 1326507024, %v4700
        %v4716 = vor.u32 %v4714, %v4715
        %vm4717 = vcmp.lt.s32.totalorder %v4698, 1
        %vm4718 = vcmp.lt.s32.totalorder %v4698, 2
        %vm4719 = vcmp.lt.s32.totalorder %v4698, 3
        %vm4720 = vcmp.lt.s32.totalorder %v4698, 4
        %v4721 = vsel %vm4717, %v4701, %v4704
        %v4722 = vsel %vm4720, %v4710, 2102212464
        %v4723 = vsel %vm4719, %v4707, %v4722
        %v4724 = vsel %vm4718, %v4721, %v4723
        %v4725 = vsel %vm4717, %v4704, %v4707
        %v4726 = vsel %vm4720, %v4713, 920167782
        %v4727 = vsel %vm4719, %v4710, %v4726
        %v4728 = vsel %vm4718, %v4725, %v4727
        %v4729 = vsel %vm4717, %v4707, %v4710
        %v4730 = vsel %vm4720, %v4716, 1326507024
        %v4731 = vsel %vm4719, %v4713, %v4730
        %v4732 = vsel %vm4718, %v4729, %v4731
        %v4733 = vshll.u32 %v4693, 8
        %v4734 = vand.u32 %v4733, 65535
        %v4735 = vshrl.u32 %v4733, 16
        %v4736 = vand.u32 %v4732, 65535
        %v4737 = vshrl.u32 %v4732, 16
        %v4738 = vmul.u32 %v4734, %v4736
        %v4739 = vmul.u32 %v4734, %v4737
        %v4740 = vmul.u32 %v4735, %v4736
        %v4741 = vmul.u32 %v4735, %v4737
        %v4742 = vshll.u32 %v4739, 16
        %v4743 = vshrl.u32 %v4739, 16
        %v4744 = vshll.u32 %v4740, 16
        %v4745 = vshrl.u32 %v4740, 16
        %vm4746 = vc.u32 %v4738, %v4742
        %v4747 = vsel %vm4746, 1, 0
        %v4748 = vadd.s32 %v4738, %v4742
        %v4749 = vadd.s32 %v4741, %v4747
        %vm4750 = vc.u32 %v4748, %v4744
        %v4751 = vsel %vm4750, 1, 0
        %v4752 = vadd.s32 %v4748, %v4744
        %v4753 = vadd.s32 %v4749, %v4751
        %v4754 = vadd.s32 %v4753, %v4743
        %v4755 = vadd.s32 %v4754, %v4745
        %v4756 = vand.u32 %v4733, 65535
        %v4757 = vshrl.u32 %v4733, 16
        %v4758 = vand.u32 %v4728, 65535
        %v4759 = vshrl.u32 %v4728, 16
        %v4760 = vmul.u32 %v4756, %v4758
        %v4761 = vmul.u32 %v4756, %v4759
        %v4762 = vmul.u32 %v4757, %v4758
        %v4763 = vmul.u32 %v4757, %v4759
        %v4764 = vshll.u32 %v4761, 16
        %v4765 = vshrl.u32 %v4761, 16
        %v4766 = vshll.u32 %v4762, 16
        %v4767 = vshrl.u32 %v4762, 16
        %vm4768 = vc.u32 %v4760, %v4764
        %v4769 = vsel %vm4768, 1, 0
        %v4770 = vadd.s32 %v4760, %v4764
        %v4771 = vadd.s32 %v4763, %v4769
        %vm4772 = vc.u32 %v4770, %v4766
        %v4773 = vsel %vm4772, 1, 0
        %v4774 = vadd.s32 %v4770, %v4766
        %v4775 = vadd.s32 %v4771, %v4773
        %v4776 = vadd.s32 %v4775, %v4765
        %v4777 = vadd.s32 %v4776, %v4767
        %v4778 = vmul.u32 %v4733, %v4724
        %v4779 = vadd.s32 %v4755, %v4774
        %vm4780 = vc.u32 %v4755, %v4774
        %v4781 = vadd.s32 %v4777, 1
        %v4782 = vsel %vm4780, %v4781, %v4777
        %v4783 = vadd.s32 %v4778, %v4782
        %v4784 = vadd.s32 %v4783, 536870912
        %v4785 = vshrl.u32 %v4784, 30
        %v4786 = vshll.u32 %v4785, 30
        %v4787 = vsub.s32 %v4783, %v4786
        %vm4788 = vcmp.lt.s32.totalorder %v4787, 0
        %v4789 = vsub.s32 0, %v4787
        %v4790 = vsel %vm4788, %v4789, %v4787
        %v4791 = vclz %v4790
        %v4792 = vsub.s32 %v4791, 2
        %vm4793 = vcmp.gt.s32.totalorder 0, %v4792
        %v4794 = vsel %vm4793, 0, %v4792
        %v4795 = vsub.s32 32, %v4794
        %v4796 = vshll.u32 %v4787, %v4794
        %v4797 = vshrl.u32 %v4779, %v4795
        %v4798 = vor.u32 %v4796, %v4797
        %v4799 = vsub.s32 4294967266, %v4794
        %v4800 = vadd.s32 %v4799, 127
        %v4801 = vshll.u32 %v4800, 23
        %v4802 = vor.u32 4788187, %v4801
        %v4803 = vand.u32 2147483647, %v4802
        %v4805 = vcvt.s32.f32 %v4798
        %v4806 = vmul.f32 %v4805, %v4803
        %v4807 = vxor.u32 %v4806, 2147483648
        %v4808 = vsel %vm4687, %v4807, %v4806
        %v4809 = vsub.s32 4, %v4785
        %v4810 = vsel %vm4687, %v4809, %v4785
        %v4811 = vsel %vm4686, %v4527, %v4808
        %v4812 = vsel %vm4686, 0, %v4810
        %v4813 = vmul.f32 %v4811, %v4811
        %v4814 = vmul.f32 %v4813, -0.001358992
        %v4815 = vadd.f32 %v4814, 0.041655596
        %v4816 = vmul.f32 %v4813, %v4815
        %v4817 = vadd.f32 %v4816, -0.4999988
        %v4818 = vmul.f32 %v4813, %v4817
        %v4819 = vadd.f32 1.0, %v4818
        %v4820 = vmul.f32 %v4811, %v4811
        %v4821 = vmul.f32 %v4820, -0.00019511016
        %v4822 = vadd.f32 %v4821, 0.008332121
        %v4823 = vmul.f32 %v4820, %v4822
        %v4824 = vadd.f32 %v4823, -0.16666654
        %v4825 = vmul.f32 %v4820, %v4824
        %v4826 = vadd.f32 %v4825, 1.0
        %v4827 = vmul.f32 %v4826, %v4811
        %vm4828 = vweird.f32 %v4527
        %v4829 = vadd.s32 %v4812, 3
        %v4830 = vand.u32 %v4829, 3
        %vm4831 = vcmp.lt.s32.totalorder %v4830, 2
        %vm4832 = vcmp.eq.s32.totalorder %v4830, 0
        %v4833 = vxor.u32 %v4827, 2147483648
        %v4834 = vsel %vm4832, %v4819, %v4833
        %vm4835 = vcmp.eq.s32.totalorder %v4830, 2
        %v4836 = vxor.u32 %v4819, 2147483648
        %v4837 = vsel %vm4835, %v4836, %v4827
        %v4838 = vsel %vm4831, %v4834, %v4837
        %v4839 = vsel %vm4828, nan, %v4838
        %v4840 = vand.u32 2147483647, %v4528
        %vm4841 = vcmp.le.f32.partialorder %v4840, 0.7853982
        %vm4842 = vcmp.lt.s32.totalorder %v4528, 0
        %v4843 = vand.u32 %v4528, 2139095040
        %v4844 = vshrl.u32 %v4843, 23
        %v4845 = vsub.s32 %v4844, 127
        %v4846 = vand.u32 2147483647, %v4528
        %v4847 = vand.u32 %v4846, 8388607
        %v4848 = vor.u32 %v4847, 8388608
        %v4849 = vsub.s32 0, %v4848
        %v4850 = vadd.s32 %v4845, 1
        %vm4851 = vcmp.gt.s32.totalorder %v4850, 0
        %v4852 = vsel %vm4851, %v4850, 0
        %v4853 = vshrl.u32 %v4852, 5
        %v4854 = vand.u32 %v4852, 31
        %v4855 = vsub.s32 32, %v4854
        %v4856 = vshrl.u32 683565275, %v4855
        %v4857 = vshll.u32 683565275, %v4854
        %v4858 = vshrl.u32 2475754826, %v4855
        %v4859 = vor.u32 %v4857, %v4858
        %v4860 = vshll.u32 2475754826, %v4854
        %v4861 = vshrl.u32 2131351028, %v4855
        %v4862 = vor.u32 %v4860, %v4861
        %v4863 = vshll.u32 2131351028, %v4854
        %v4864 = vshrl.u32 2102212464, %v4855
        %v4865 = vor.u32 %v4863, %v4864
        %v4866 = vshll.u32 2102212464, %v4854
        %v4867 = vshrl.u32 920167782, %v4855
        %v4868 = vor.u32 %v4866, %v4867
        %v4869 = vshll.u32 920167782, %v4854
        %v4870 = vshrl.u32 1326507024, %v4855
        %v4871 = vor.u32 %v4869, %v4870
        %vm4872 = vcmp.lt.s32.totalorder %v4853, 1
        %vm4873 = vcmp.lt.s32.totalorder %v4853, 2
        %vm4874 = vcmp.lt.s32.totalorder %v4853, 3
        %vm4875 = vcmp.lt.s32.totalorder %v4853, 4
        %v4876 = vsel %vm4872, %v4856, %v4859
        %v4877 = vsel %vm4875, %v4865, 2102212464
        %v4878 = vsel %vm4874, %v4862, %v4877
        %v4879 = vsel %vm4873, %v4876, %v4878
        %v4880 = vsel %vm4872, %v4859, %v4862
        %v4881 = vsel %vm4875, %v4868, 920167782
        %v4882 = vsel %vm4874, %v4865, %v4881
        %v4883 = vsel %vm4873, %v4880, %v4882
        %v4884 = vsel %vm4872, %v4862, %v4865
        %v4885 = vsel %vm4875, %v4871, 1326507024
        %v4886 = vsel %vm4874, %v4868, %v4885
        %v4887 = vsel %vm4873, %v4884, %v4886
        %v4888 = vshll.u32 %v4848, 8
        %v4889 = vand.u32 %v4888, 65535
        %v4890 = vshrl.u32 %v4888, 16
        %v4891 = vand.u32 %v4887, 65535
        %v4892 = vshrl.u32 %v4887, 16
        %v4893 = vmul.u32 %v4889, %v4891
        %v4894 = vmul.u32 %v4889, %v4892
        %v4895 = vmul.u32 %v4890, %v4891
        %v4896 = vmul.u32 %v4890, %v4892
        %v4897 = vshll.u32 %v4894, 16
        %v4898 = vshrl.u32 %v4894, 16
        %v4899 = vshll.u32 %v4895, 16
        %v4900 = vshrl.u32 %v4895, 16
        %vm4901 = vc.u32 %v4893, %v4897
        %v4902 = vsel %vm4901, 1, 0
        %v4903 = vadd.s32 %v4893, %v4897
        %v4904 = vadd.s32 %v4896, %v4902
        %vm4905 = vc.u32 %v4903, %v4899
        %v4906 = vsel %vm4905, 1, 0
        %v4907 = vadd.s32 %v4903, %v4899
        %v4908 = vadd.s32 %v4904, %v4906
        %v4909 = vadd.s32 %v4908, %v4898
        %v4910 = vadd.s32 %v4909, %v4900
        %v4911 = vand.u32 %v4888, 65535
        %v4912 = vshrl.u32 %v4888, 16
        %v4913 = vand.u32 %v4883, 65535
        %v4914 = vshrl.u32 %v4883, 16
        %v4915 = vmul.u32 %v4911, %v4913
        %v4916 = vmul.u32 %v4911, %v4914
        %v4917 = vmul.u32 %v4912, %v4913
        %v4918 = vmul.u32 %v4912, %v4914
        %v4919 = vshll.u32 %v4916, 16
        %v4920 = vshrl.u32 %v4916, 16
        %v4921 = vshll.u32 %v4917, 16
        %v4922 = vshrl.u32 %v4917, 16
        %vm4923 = vc.u32 %v4915, %v4919
        %v4924 = vsel %vm4923, 1, 0
        %v4925 = vadd.s32 %v4915, %v4919
        %v4926 = vadd.s32 %v4918, %v4924
        %vm4927 = vc.u32 %v4925, %v4921
        %v4928 = vsel %vm4927, 1, 0
        %v4929 = vadd.s32 %v4925, %v4921
        %v4930 = vadd.s32 %v4926, %v4928
        %v4931 = vadd.s32 %v4930, %v4920
        %v4932 = vadd.s32 %v4931, %v4922
        %v4933 = vmul.u32 %v4888, %v4879
        %v4934 = vadd.s32 %v4910, %v4929
        %vm4935 = vc.u32 %v4910, %v4929
        %v4936 = vadd.s32 %v4932, 1
        %v4937 = vsel %vm4935, %v4936, %v4932
        %v4938 = vadd.s32 %v4933, %v4937
        %v4939 = vadd.s32 %v4938, 536870912
        %v4940 = vshrl.u32 %v4939, 30
        %v4941 = vshll.u32 %v4940, 30
        %v4942 = vsub.s32 %v4938, %v4941
        %vm4943 = vcmp.lt.s32.totalorder %v4942, 0
        %v4944 = vsub.s32 0, %v4942
        %v4945 = vsel %vm4943, %v4944, %v4942
        %v4946 = vclz %v4945
        %v4947 = vsub.s32 %v4946, 2
        %vm4948 = vcmp.gt.s32.totalorder 0, %v4947
        %v4949 = vsel %vm4948, 0, %v4947
        %v4950 = vsub.s32 32, %v4949
        %v4951 = vshll.u32 %v4942, %v4949
        %v4952 = vshrl.u32 %v4934, %v4950
        %v4953 = vor.u32 %v4951, %v4952
        %v4954 = vsub.s32 4294967266, %v4949
        %v4955 = vadd.s32 %v4954, 127
        %v4956 = vshll.u32 %v4955, 23
        %v4957 = vor.u32 4788187, %v4956
        %v4958 = vand.u32 2147483647, %v4957
        %v4960 = vcvt.s32.f32 %v4953
        %v4961 = vmul.f32 %v4960, %v4958
        %v4962 = vxor.u32 %v4961, 2147483648
        %v4963 = vsel %vm4842, %v4962, %v4961
        %v4964 = vsub.s32 4, %v4940
        %v4965 = vsel %vm4842, %v4964, %v4940
        %v4966 = vsel %vm4841, %v4528, %v4963
        %v4967 = vsel %vm4841, 0, %v4965
        %v4968 = vmul.f32 %v4966, %v4966
        %v4969 = vmul.f32 %v4968, -0.001358992
        %v4970 = vadd.f32 %v4969, 0.041655596
        %v4971 = vmul.f32 %v4968, %v4970
        %v4972 = vadd.f32 %v4971, -0.4999988
        %v4973 = vmul.f32 %v4968, %v4972
        %v4974 = vadd.f32 1.0, %v4973
        %v4975 = vmul.f32 %v4966, %v4966
        %v4976 = vmul.f32 %v4975, -0.00019511016
        %v4977 = vadd.f32 %v4976, 0.008332121
        %v4978 = vmul.f32 %v4975, %v4977
        %v4979 = vadd.f32 %v4978, -0.16666654
        %v4980 = vmul.f32 %v4975, %v4979
        %v4981 = vadd.f32 %v4980, 1.0
        %v4982 = vmul.f32 %v4981, %v4966
        %vm4983 = vweird.f32 %v4528
        %v4984 = vadd.s32 %v4967, 3
        %v4985 = vand.u32 %v4984, 3
        %vm4986 = vcmp.lt.s32.totalorder %v4985, 2
        %vm4987 = vcmp.eq.s32.totalorder %v4985, 0
        %v4988 = vxor.u32 %v4982, 2147483648
        %v4989 = vsel %vm4987, %v4974, %v4988
        %vm4990 = vcmp.eq.s32.totalorder %v4985, 2
        %v4991 = vxor.u32 %v4974, 2147483648
        %v4992 = vsel %vm4990, %v4991, %v4982
        %v4993 = vsel %vm4986, %v4989, %v4992
        %v4994 = vsel %vm4983, nan, %v4993
        %v4995 = vand.u32 2147483647, %v4529
        %vm4996 = vcmp.le.f32.partialorder %v4995, 0.7853982
        %vm4997 = vcmp.lt.s32.totalorder %v4529, 0
        %v4998 = vand.u32 %v4529, 2139095040
        %v4999 = vshrl.u32 %v4998, 23
        %v5000 = vsub.s32 %v4999, 127
        %v5001 = vand.u32 2147483647, %v4529
        %v5002 = vand.u32 %v5001, 8388607
        %v5003 = vor.u32 %v5002, 8388608
        %v5004 = vsub.s32 0, %v5003
        %v5005 = vadd.s32 %v5000, 1
        %vm5006 = vcmp.gt.s32.totalorder %v5005, 0
        %v5007 = vsel %vm5006, %v5005, 0
        %v5008 = vshrl.u32 %v5007, 5
        %v5009 = vand.u32 %v5007, 31
        %v5010 = vsub.s32 32, %v5009
        %v5011 = vshrl.u32 683565275, %v5010
        %v5012 = vshll.u32 683565275, %v5009
        %v5013 = vshrl.u32 2475754826, %v5010
        %v5014 = vor.u32 %v5012, %v5013
        %v5015 = vshll.u32 2475754826, %v5009
        %v5016 = vshrl.u32 2131351028, %v5010
        %v5017 = vor.u32 %v5015, %v5016
        %v5018 = vshll.u32 2131351028, %v5009
        %v5019 = vshrl.u32 2102212464, %v5010
        %v5020 = vor.u32 %v5018, %v5019
        %v5021 = vshll.u32 2102212464, %v5009
        %v5022 = vshrl.u32 920167782, %v5010
        %v5023 = vor.u32 %v5021, %v5022
        %v5024 = vshll.u32 920167782, %v5009
        %v5025 = vshrl.u32 1326507024, %v5010
        %v5026 = vor.u32 %v5024, %v5025
        %vm5027 = vcmp.lt.s32.totalorder %v5008, 1
        %vm5028 = vcmp.lt.s32.totalorder %v5008, 2
        %vm5029 = vcmp.lt.s32.totalorder %v5008, 3
        %vm5030 = vcmp.lt.s32.totalorder %v5008, 4
        %v5031 = vsel %vm5027, %v5011, %v5014
        %v5032 = vsel %vm5030, %v5020, 2102212464
        %v5033 = vsel %vm5029, %v5017, %v5032
        %v5034 = vsel %vm5028, %v5031, %v5033
        %v5035 = vsel %vm5027, %v5014, %v5017
        %v5036 = vsel %vm5030, %v5023, 920167782
        %v5037 = vsel %vm5029, %v5020, %v5036
        %v5038 = vsel %vm5028, %v5035, %v5037
        %v5039 = vsel %vm5027, %v5017, %v5020
        %v5040 = vsel %vm5030, %v5026, 1326507024
        %v5041 = vsel %vm5029, %v5023, %v5040
        %v5042 = vsel %vm5028, %v5039, %v5041
        %v5043 = vshll.u32 %v5003, 8
        %v5044 = vand.u32 %v5043, 65535
        %v5045 = vshrl.u32 %v5043, 16
        %v5046 = vand.u32 %v5042, 65535
        %v5047 = vshrl.u32 %v5042, 16
        %v5048 = vmul.u32 %v5044, %v5046
        %v5049 = vmul.u32 %v5044, %v5047
        %v5050 = vmul.u32 %v5045, %v5046
        %v5051 = vmul.u32 %v5045, %v5047
        %v5052 = vshll.u32 %v5049, 16
        %v5053 = vshrl.u32 %v5049, 16
        %v5054 = vshll.u32 %v5050, 16
        %v5055 = vshrl.u32 %v5050, 16
        %vm5056 = vc.u32 %v5048, %v5052
        %v5057 = vsel %vm5056, 1, 0
        %v5058 = vadd.s32 %v5048, %v5052
        %v5059 = vadd.s32 %v5051, %v5057
        %vm5060 = vc.u32 %v5058, %v5054
        %v5061 = vsel %vm5060, 1, 0
        %v5062 = vadd.s32 %v5058, %v5054
        %v5063 = vadd.s32 %v5059, %v5061
        %v5064 = vadd.s32 %v5063, %v5053
        %v5065 = vadd.s32 %v5064, %v5055
        %v5066 = vand.u32 %v5043, 65535
        %v5067 = vshrl.u32 %v5043, 16
        %v5068 = vand.u32 %v5038, 65535
        %v5069 = vshrl.u32 %v5038, 16
        %v5070 = vmul.u32 %v5066, %v5068
        %v5071 = vmul.u32 %v5066, %v5069
        %v5072 = vmul.u32 %v5067, %v5068
        %v5073 = vmul.u32 %v5067, %v5069
        %v5074 = vshll.u32 %v5071, 16
        %v5075 = vshrl.u32 %v5071, 16
        %v5076 = vshll.u32 %v5072, 16
        %v5077 = vshrl.u32 %v5072, 16
        %vm5078 = vc.u32 %v5070, %v5074
        %v5079 = vsel %vm5078, 1, 0
        %v5080 = vadd.s32 %v5070, %v5074
        %v5081 = vadd.s32 %v5073, %v5079
        %vm5082 = vc.u32 %v5080, %v5076
        %v5083 = vsel %vm5082, 1, 0
        %v5084 = vadd.s32 %v5080, %v5076
        %v5085 = vadd.s32 %v5081, %v5083
        %v5086 = vadd.s32 %v5085, %v5075
        %v5087 = vadd.s32 %v5086, %v5077
        %v5088 = vmul.u32 %v5043, %v5034
        %v5089 = vadd.s32 %v5065, %v5084
        %vm5090 = vc.u32 %v5065, %v5084
        %v5091 = vadd.s32 %v5087, 1
        %v5092 = vsel %vm5090, %v5091, %v5087
        %v5093 = vadd.s32 %v5088, %v5092
        %v5094 = vadd.s32 %v5093, 536870912
        %v5095 = vshrl.u32 %v5094, 30
        %v5096 = vshll.u32 %v5095, 30
        %v5097 = vsub.s32 %v5093, %v5096
        %vm5098 = vcmp.lt.s32.totalorder %v5097, 0
        %v5099 = vsub.s32 0, %v5097
        %v5100 = vsel %vm5098, %v5099, %v5097
        %v5101 = vclz %v5100
        %v5102 = vsub.s32 %v5101, 2
        %vm5103 = vcmp.gt.s32.totalorder 0, %v5102
        %v5104 = vsel %vm5103, 0, %v5102
        %v5105 = vsub.s32 32, %v5104
        %v5106 = vshll.u32 %v5097, %v5104
        %v5107 = vshrl.u32 %v5089, %v5105
        %v5108 = vor.u32 %v5106, %v5107
        %v5109 = vsub.s32 4294967266, %v5104
        %v5110 = vadd.s32 %v5109, 127
        %v5111 = vshll.u32 %v5110, 23
        %v5112 = vor.u32 4788187, %v5111
        %v5113 = vand.u32 2147483647, %v5112
        %v5115 = vcvt.s32.f32 %v5108
        %v5116 = vmul.f32 %v5115, %v5113
        %v5117 = vxor.u32 %v5116, 2147483648
        %v5118 = vsel %vm4997, %v5117, %v5116
        %v5119 = vsub.s32 4, %v5095
        %v5120 = vsel %vm4997, %v5119, %v5095
        %v5121 = vsel %vm4996, %v4529, %v5118
        %v5122 = vsel %vm4996, 0, %v5120
        %v5123 = vmul.f32 %v5121, %v5121
        %v5124 = vmul.f32 %v5123, -0.001358992
        %v5125 = vadd.f32 %v5124, 0.041655596
        %v5126 = vmul.f32 %v5123, %v5125
        %v5127 = vadd.f32 %v5126, -0.4999988
        %v5128 = vmul.f32 %v5123, %v5127
        %v5129 = vadd.f32 1.0, %v5128
        %v5130 = vmul.f32 %v5121, %v5121
        %v5131 = vmul.f32 %v5130, -0.00019511016
        %v5132 = vadd.f32 %v5131, 0.008332121
        %v5133 = vmul.f32 %v5130, %v5132
        %v5134 = vadd.f32 %v5133, -0.16666654
        %v5135 = vmul.f32 %v5130, %v5134
        %v5136 = vadd.f32 %v5135, 1.0
        %v5137 = vmul.f32 %v5136, %v5121
        %vm5138 = vweird.f32 %v4529
        %v5139 = vadd.s32 %v5122, 3
        %v5140 = vand.u32 %v5139, 3
        %vm5141 = vcmp.lt.s32.totalorder %v5140, 2
        %vm5142 = vcmp.eq.s32.totalorder %v5140, 0
        %v5143 = vxor.u32 %v5137, 2147483648
        %v5144 = vsel %vm5142, %v5129, %v5143
        %vm5145 = vcmp.eq.s32.totalorder %v5140, 2
        %v5146 = vxor.u32 %v5129, 2147483648
        %v5147 = vsel %vm5145, %v5146, %v5137
        %v5148 = vsel %vm5141, %v5144, %v5147
        %v5149 = vsel %vm5138, nan, %v5148
        %v5150 = vld [vmem:[%s5] sm:$0x7]
        %v5151 = vld [vmem:[%s6] sm:$0x7]
        %5153 = vset.pattern.permute.xlu0 0
        %5154 = vperm.xlu0 %5153, %v5151
        %v5155 = vpop.permute.xlu0 %5154
        %v5158 = vsel %vm1009, %v5150, 0
        %5160 = vmatpush.msra.mxu0 0.0
        %5161 = vmatpush.msra.mxu0 0.0
        %5162 = vmatpush.msra.mxu0 0.0
        %5163 = vmatpush.msra.mxu0 0.0
        %5164 = vmatpush.msra.mxu0 0.0
        %5165 = vmatpush.msra.mxu0 0.0
        %5166 = vmatpush.msra.mxu0 0.0
        %5167 = vmatpush.msra.mxu0 0.0
        %5168 = vmatpush.msra.mxu0 0.0
        %5169 = vmatpush.msra.mxu0 0.0
        %5170 = vmatpush.msra.mxu0 0.0
        %5171 = vmatpush.msra.mxu0 0.0
        %5172 = vmatpush.msra.mxu0 %v5149
        %5173 = vmatpush.msra.mxu0 %v4994
        %5174 = vmatpush.msra.mxu0 %v4839
        %5175 = vmatpush.msra.mxu0 %v4684
        %5176 = vmatmul.f32.gmra.mxu0 %v5158
        %v5177 = vpop.f32.mrf.mxu0
        %v5178 = vadd.f32 %v5155, %v5177
        %5179 = vdwg.mxu0
        %5180 = vst [vmem:[%s269] sm:$0x7] %v5178
        %s5181 = sand.u32 %s181, 1
        %s5182 = scalar_lea.sflag [#allocation3], %s5181
        %s5183 = sand.u32 %s181, 1
        %s5184 = smul.addr %s5183, 4
        %s5185 = scalar_lea.vmem [#allocation2], %s5184
        // Predicated region
        $region49: #{tpu_custom_call.1} parent=47 // pred_check
          %p5186 = pneg %p191
        $region50: #{tpu_custom_call.1} parent=47 // pred_check_branch
          %5188 = sbr.rel (%p5186) target = $region52
        $region51: #{tpu_custom_call.1} parent=47 // pred_region
          %5190 = vsyncadd %s5182, 0
          %s5191 = smul.addr %s21, 4
          %s5192 = scalar_lea.hbm %s7, %s5191
          %s5194 = sshll.u32 %s5185, 4
          %s5195 = int_to_ptr.vmem [resolvable:$true] %s5194
          %s5196 = sshll.u32 %s5192, 4
          %s5197 = int_to_ptr.hbm [resolvable:$true] %s5196
          %5199 = dma.vmem_to_hbm [thread:$0]  %s5195, 64, %s5197, %s5182
        $region52: #{tpu_custom_call.1} parent=47 // pred_fallthru
          _
      $region48: #{tpu_custom_call.1} parent=5 // pred_fallthru
        _
      %p5200 = scmp.le.s32.totalorder 2, %s16
      // Predicated region
      $region53: #{tpu_custom_call.1} parent=5 // pred_check
        %p5201 = pneg %p5200
      $region54: #{tpu_custom_call.1} parent=5 // pred_check_branch
        %5203 = sbr.rel (%p5201) target = $region56
      $region55: #{tpu_custom_call.1} parent=5 // pred_region
        %s5204 = ssub.s32 %s16, 2
        // Predicated region
        $region57: #{tpu_custom_call.1} parent=55 // pred_check
          %p5205 = pneg %p197
        $region58: #{tpu_custom_call.1} parent=55 // pred_check_branch
          %5207 = sbr.rel (%p5205) target = $region60
        $region59: #{tpu_custom_call.1} parent=55 // pred_region
          %s5208 = sand.u32 %s182, 1
          %s5209 = scalar_lea.sflag [#allocation3], %s5208
          %s5210 = sand.u32 %s182, 1
          %s5211 = smul.addr %s5210, 4
          %s5212 = scalar_lea.vmem [#allocation2], %s5211
          %5214 = dma.done %s5209, 64
        $region60: #{tpu_custom_call.1} parent=55 // pred_fallthru
          _
      $region56: #{tpu_custom_call.1} parent=5 // pred_fallthru
        _
    $region6: #{tpu_custom_call.1} parent=1 // loop_footer
      %s20 = sadd.s32 1, %s16
    $region7: #{tpu_custom_call.1} parent=1 // loop_footer_branch
      %15 = sbr.rel target = $region3
    $region8: #{tpu_custom_call.1} parent=1 // loop_exit
      _
    %5215 = vsyncpa [#allocation3], 1
    %s5216 = scalar_lea.sflag [#allocation3], 1
    %5217 = vsyncpa %s5216, 1

</llo_original>
